<compile_context>
chip_gen: v6e
topology: v6e:2x2x1
jax: 0.10.0
libtpu: 0.0.40
codegen_flags: <defaults>
</compile_context>

<pallas_src>
from functools import partial

import jax
import jax.numpy as jnp
from jax import lax
from jax.experimental import pallas as pl
from jax.experimental.pallas import tpu as pltpu


def _low_mixer_kernel(x_ref, w_ref, pool_ref, up_ref, o_ref, *, num_heads):
    """Fully fused LowMixer forward, all batches in one grid step.

    x_ref    : (B, C, H*W)  NCHW input, spatial flattened on lanes (lane-dense).
    w_ref    : (3C, C)      packed QKV weight; 1/sqrt(hd) pre-folded into q rows.
    pool_ref : (H*W, N)     avg-pool matrix (entries 1/ps^2 or 0).
    up_ref   : (N, H*W)     nearest-upsample matrix (entries 1 or 0).
    o_ref    : (B, C, H*W)  output, same layout as the input (lane-dense store).
    """
    w = w_ref[...]          # resident in VMEM for the whole (single-step) call
    pool = pool_ref[...]
    up = up_ref[...]
    B = x_ref.shape[0]
    C = w.shape[1]
    hd = C // num_heads
    N = pool.shape[1]

    for b in range(B):                                   # static, tiny (B=2)
        x_cm = x_ref[b]                                  # (C, HW) channel-major
        # Fused avg-pool (+ implicit NCHW->token layout): one MXU matmul.
        xp = jnp.dot(x_cm, pool, preferred_element_type=jnp.float32)    # (C, N)
        # Fused, pre-scaled QKV projection (single MXU push, 3C output rows).
        qkv = jnp.dot(w, xp, preferred_element_type=jnp.float32)        # (3C, N)

        # Per-head q/k/v are cheap sublane row-slices (channel-major).
        q = qkv[:C].reshape(num_heads, hd, N)            # (H, hd, N), q pre-scaled
        k = qkv[C:2 * C].reshape(num_heads, hd, N)       # (H, hd, N)
        v = qkv[2 * C:].reshape(num_heads, hd, N)        # (H, hd, N)

        # One minor-dims transpose so both attention matmuls use the two
        # canonical batched dot_general forms (head axis = batch dim 0).
        q_t = jnp.transpose(q, (0, 2, 1))                # (H, N, hd)
        s = lax.dot_general(q_t, k, (((2,), (1,)), ((0,), (0,))),
                            preferred_element_type=jnp.float32)          # (H, N, N)

        # Numerically stable softmax over keys (f32 VPU/EUP math).
        s = s - jnp.max(s, axis=-1, keepdims=True)
        e = jnp.exp(s)
        denom = jnp.sum(e, axis=-1, keepdims=True)
        r = pl.reciprocal(denom, approx=True)            # EUP slot, nearly free
        r = r * (2.0 - denom * r)                        # one Newton step -> f32 accuracy
        p = e * r                                        # attn_drop(p=0.0) == identity

        # o[h, d, n] = sum_m v[h, d, m] * p[h, n, m]  -> channel-major head output.
        o = lax.dot_general(v, p, (((2,), (2,)), ((0,), (0,))),
                            preferred_element_type=jnp.float32)          # (H, hd, N)
        o_cm = o.reshape(C, N)                           # heads stacked on rows

        # Fused nearest-upsample back to (C, H*W); 256-lane-dense unmasked store.
        o_ref[b] = jnp.dot(o_cm, up,
                           preferred_element_type=jnp.float32).astype(o_ref.dtype)


def _low_mixer_pallas(x2, w_packed, pool_mat, up_mat, *, num_heads):
    """x2: (B, C, H*W) -> (B, C, H*W).  Single fused grid step."""
    B, C, HW = x2.shape
    N = pool_mat.shape[1]
    kernel = partial(_low_mixer_kernel, num_heads=num_heads)
    return pl.pallas_call(
        kernel,
        out_shape=jax.ShapeDtypeStruct((B, C, HW), x2.dtype),
        grid_spec=pltpu.PrefetchScalarGridSpec(
            num_scalar_prefetch=0,
            grid=(1,),                                   # whole problem in one step
            in_specs=[
                pl.BlockSpec((B, C, HW), lambda i: (0, 0, 0)),
                pl.BlockSpec((3 * C, C), lambda i: (0, 0)),
                pl.BlockSpec((HW, N), lambda i: (0, 0)),
                pl.BlockSpec((N, HW), lambda i: (0, 0)),
            ],
            out_specs=pl.BlockSpec((B, C, HW), lambda i: (0, 0, 0)),
        ),
        compiler_params=pltpu.CompilerParams(
            dimension_semantics=("arbitrary",)),
    )(x2, w_packed, pool_mat, up_mat)


def prepare_low_mixer_params(w_qkv, *, num_heads, pool_size, height, width,
                             dtype=jnp.float32):
    """One-time packing, hoisted out of the per-call forward.

    Returns (w_packed, pool_mat, up_mat):
      w_packed : (3C, C) QKV weight with 1/sqrt(head_dim) folded into q rows.
      pool_mat : (H*W, N) AvgPool2d(pool_size) as a matmul.
      up_mat   : (N, H*W) nearest Upsample(pool_size) as a matmul.
    """
    three_c, dim = w_qkv.shape
    assert three_c == 3 * dim and dim % num_heads == 0
    assert height % pool_size == 0 and width % pool_size == 0
    hd = dim // num_heads
    scale = hd ** (-0.5)
    w_packed = jnp.asarray(w_qkv, dtype).at[:dim, :].multiply(scale)

    hp, wp = height // pool_size, width // pool_size
    hw, n = height * width, hp * wp
    pos = jnp.arange(hw)
    src_i, src_j = pos // width, pos % width
    tok = jnp.arange(n)
    dst_i, dst_j = tok // wp, tok % wp
    match = ((src_i[:, None] // pool_size) == dst_i[None, :]) & \
            ((src_j[:, None] // pool_size) == dst_j[None, :])
    pool_mat = match.astype(dtype) / float(pool_size * pool_size)   # (HW, N)
    up_mat = match.astype(dtype).T                                  # (N, HW)
    return w_packed, pool_mat, up_mat


def low_mixer_forward(x, w_packed, pool_mat, up_mat, *, num_heads):
    """Pallas-backed LowMixer.forward.  x: (B, C, H, W) NCHW."""
    B, C, H, W = x.shape
    x2 = x.reshape(B, C, H * W)                 # free row-major reshape
    out = _low_mixer_pallas(x2, w_packed, pool_mat, up_mat, num_heads=num_heads)
    return out.reshape(B, C, H, W)              # free row-major reshape


def low_mixer_reference(x, w_qkv, *, num_heads, pool_size):
    """Pure-JAX reference mirroring the PyTorch module."""
    B, C, H, W = x.shape
    hd = C // num_heads
    scale = hd ** (-0.5)
    hi = lax.Precision.HIGHEST
    if pool_size > 1:
        xp = x.reshape(B, C, H // pool_size, pool_size,
                       W // pool_size, pool_size).mean(axis=(3, 5))
    else:
        xp = x
    Hp, Wp = xp.shape[2], xp.shape[3]
    xa = jnp.transpose(xp, (0, 2, 3, 1)).reshape(B, -1, C)
    N = xa.shape[1]
    qkv = jnp.einsum('bnc,dc->bnd', xa, w_qkv, precision=hi)
    qkv = qkv.reshape(B, N, 3, num_heads, hd).transpose(2, 0, 3, 1, 4)
    q, k, v = qkv[0], qkv[1], qkv[2]
    attn = jnp.einsum('bhnd,bhmd->bhnm', q, k, precision=hi) * scale
    attn = jax.nn.softmax(attn, axis=-1)
    o = jnp.einsum('bhnm,bhmd->bhnd', attn, v, precision=hi)
    xc = jnp.transpose(o, (0, 1, 3, 2)).reshape(B, C, N)
    xi = xc.reshape(B, C, Hp, Wp)
    if pool_size > 1:
        xi = jnp.repeat(jnp.repeat(xi, pool_size, axis=2), pool_size, axis=3)
    return xi


if __name__ == "__main__":
    # Module config (dim must be divisible by num_heads=8).
    dim = 32
    num_heads = 8
    pool_size = 2
    B, H, W = 2, 16, 16

    key = jax.random.PRNGKey(0)
    kx, kw = jax.random.split(key)
    x = jax.random.normal(kx, (B, dim, H, W), dtype=jnp.float32)
    # nn.Linear(dim, 3*dim, bias=False) weight, deterministic init.
    w_qkv = jax.random.normal(kw, (3 * dim, dim), dtype=jnp.float32) * 0.02

    # Init-time packing (scale fold + pool/upsample matrices), not per forward.
    w_packed, pool_mat, up_mat = prepare_low_mixer_params(
        w_qkv, num_heads=num_heads, pool_size=pool_size, height=H, width=W)

    fwd = jax.jit(partial(low_mixer_forward, num_heads=num_heads))
    out = fwd(x, w_packed, pool_mat, up_mat)
    out = jax.block_until_ready(out)

    ref = low_mixer_reference(x, w_qkv, num_heads=num_heads, pool_size=pool_size)
    assert out.shape == (B, dim, H, W), out.shape
    max_err = float(jnp.max(jnp.abs(out - ref)))
    assert jnp.allclose(out, ref, atol=2e-5, rtol=1e-4), max_err

    print("KERNEL_OK")
</pallas_src>

<mosaic_0001>
module attributes {stable_mosaic.version = 11 : i64} {
  func.func @_low_mixer_kernel(%arg0: i32, %arg1: memref<2x32x256xf32, #tpu.memory_space<vmem>>, %arg2: memref<96x32xf32, #tpu.memory_space<vmem>>, %arg3: memref<256x64xf32, #tpu.memory_space<vmem>>, %arg4: memref<64x256xf32, #tpu.memory_space<vmem>>, %arg5: memref<2x32x256xf32, #tpu.memory_space<vmem>>) attributes {dimension_semantics = [#tpu.dimension_semantics<arbitrary>], iteration_bounds = array<i64: 1>, scalar_prefetch = 0 : i64, scratch_operands = 0 : i64, tpu.core_type = #tpu.core_type<tc>, window_params = [{pipeline_mode = #tpu.pipeline_mode<synchronous>, transform_indices = @transform_0, window_bounds = array<i64: 2, 32, 256>}, {pipeline_mode = #tpu.pipeline_mode<synchronous>, transform_indices = @transform_1, window_bounds = array<i64: 96, 32>}, {pipeline_mode = #tpu.pipeline_mode<synchronous>, transform_indices = @transform_2, window_bounds = array<i64: 256, 64>}, {pipeline_mode = #tpu.pipeline_mode<synchronous>, transform_indices = @transform_3, window_bounds = array<i64: 64, 256>}, {pipeline_mode = #tpu.pipeline_mode<synchronous>, transform_indices = @transform_4, window_bounds = array<i64: 2, 32, 256>}]} {
    %c0 = arith.constant 0 : index
    %c0_0 = arith.constant 0 : index
    %0 = vector.load %arg2[%c0, %c0_0] : memref<96x32xf32, #tpu.memory_space<vmem>>, vector<96x32xf32>
    %c0_1 = arith.constant 0 : index
    %c0_2 = arith.constant 0 : index
    %1 = vector.load %arg3[%c0_1, %c0_2] : memref<256x64xf32, #tpu.memory_space<vmem>>, vector<256x64xf32>
    %c0_3 = arith.constant 0 : index
    %c0_4 = arith.constant 0 : index
    %2 = vector.load %arg4[%c0_3, %c0_4] : memref<64x256xf32, #tpu.memory_space<vmem>>, vector<64x256xf32>
    %c0_5 = arith.constant 0 : index
    %c0_6 = arith.constant 0 : index
    %c0_7 = arith.constant 0 : index
    %3 = vector.load %arg1[%c0_5, %c0_6, %c0_7] : memref<2x32x256xf32, #tpu.memory_space<vmem>>, vector<1x32x256xf32>
    %4 = vector.shape_cast %3 : vector<1x32x256xf32> to vector<32x256xf32>
    %cst = arith.constant dense<0.000000e+00> : vector<32x64xf32>
    %5 = tpu.matmul %4, %1, %cst {dimension_numbers = #tpu.dot_dimension_numbers<[1], [0], [0], [1], [0, 0, 1, 1], [], []>} : vector<32x256xf32>, vector<256x64xf32>, vector<32x64xf32> -> vector<32x64xf32>
    %cst_8 = arith.constant dense<0.000000e+00> : vector<96x64xf32>
    %6 = tpu.matmul %0, %5, %cst_8 {dimension_numbers = #tpu.dot_dimension_numbers<[1], [0], [0], [1], [0, 0, 1, 1], [], []>} : vector<96x32xf32>, vector<32x64xf32>, vector<96x64xf32> -> vector<96x64xf32>
    %7 = vector.extract_strided_slice %6 {offsets = [0, 0], sizes = [32, 64], strides = [1, 1]} : vector<96x64xf32> to vector<32x64xf32>
    %8 = vector.shape_cast %7 : vector<32x64xf32> to vector<8x4x64xf32>
    %9 = vector.extract_strided_slice %6 {offsets = [32, 0], sizes = [32, 64], strides = [1, 1]} : vector<96x64xf32> to vector<32x64xf32>
    %10 = vector.shape_cast %9 : vector<32x64xf32> to vector<8x4x64xf32>
    %11 = vector.extract_strided_slice %6 {offsets = [64, 0], sizes = [32, 64], strides = [1, 1]} : vector<96x64xf32> to vector<32x64xf32>
    %12 = vector.shape_cast %11 : vector<32x64xf32> to vector<8x4x64xf32>
    %13 = tpu.transpose %8, [0, 2, 1] : vector<8x4x64xf32> -> vector<8x64x4xf32>
    %cst_9 = arith.constant dense<0.000000e+00> : vector<8x64x64xf32>
    %14 = tpu.matmul %13, %10, %cst_9 {dimension_numbers = #tpu.dot_dimension_numbers<[2], [1], [1], [2], [0, 0, 0, 1, 1, 2], [0], [0]>} : vector<8x64x4xf32>, vector<8x4x64xf32>, vector<8x64x64xf32> -> vector<8x64x64xf32>
    %cst_10 = arith.constant dense<0xFF800000> : vector<8x64xf32>
    %15 = vector.multi_reduction <maximumf>, %14, %cst_10 [2] : vector<8x64x64xf32> to vector<8x64xf32>
    %16 = vector.shape_cast %15 : vector<8x64xf32> to vector<8x64x1xf32>
    %17 = vector.broadcast %16 : vector<8x64x1xf32> to vector<8x64x64xf32>
    %18 = arith.subf %14, %17 : vector<8x64x64xf32>
    %19 = math.exp %18 : vector<8x64x64xf32>
    %cst_11 = arith.constant dense<0.000000e+00> : vector<8x64xf32>
    %20 = vector.multi_reduction <add>, %19, %cst_11 [2] : vector<8x64x64xf32> to vector<8x64xf32>
    %21 = vector.shape_cast %20 : vector<8x64xf32> to vector<8x64x1xf32>
    %22 = tpu.reciprocal %21 {approx = true} : vector<8x64x1xf32> -> vector<8x64x1xf32>
    %23 = arith.mulf %21, %22 : vector<8x64x1xf32>
    %cst_12 = arith.constant 2.000000e+00 : f32
    %24 = vector.broadcast %cst_12 : f32 to vector<8x64x1xf32>
    %25 = arith.subf %24, %23 : vector<8x64x1xf32>
    %26 = arith.mulf %22, %25 : vector<8x64x1xf32>
    %27 = vector.broadcast %26 : vector<8x64x1xf32> to vector<8x64x64xf32>
    %28 = arith.mulf %19, %27 : vector<8x64x64xf32>
    %cst_13 = arith.constant dense<0.000000e+00> : vector<8x4x64xf32>
    %29 = tpu.matmul %12, %28, %cst_13 {dimension_numbers = #tpu.dot_dimension_numbers<[2], [2], [1], [1], [0, 0, 0, 1, 1, 1], [0], [0]>} : vector<8x4x64xf32>, vector<8x64x64xf32>, vector<8x4x64xf32> -> vector<8x4x64xf32>
    %30 = vector.shape_cast %29 : vector<8x4x64xf32> to vector<32x64xf32>
    %cst_14 = arith.constant dense<0.000000e+00> : vector<32x256xf32>
    %31 = tpu.matmul %30, %2, %cst_14 {dimension_numbers = #tpu.dot_dimension_numbers<[1], [0], [0], [1], [0, 0, 1, 1], [], []>} : vector<32x64xf32>, vector<64x256xf32>, vector<32x256xf32> -> vector<32x256xf32>
    %c0_15 = arith.constant 0 : index
    %c0_16 = arith.constant 0 : index
    %c0_17 = arith.constant 0 : index
    %32 = vector.load %arg5[%c0_15, %c0_16, %c0_17] : memref<2x32x256xf32, #tpu.memory_space<vmem>>, vector<1x32x256xf32>
    %33 = vector.shape_cast %32 : vector<1x32x256xf32> to vector<32x256xf32>
    %34 = vector.shape_cast %31 : vector<32x256xf32> to vector<1x32x256xf32>
    tpu.vector_store %arg5[%c0_15, %c0_16, %c0_17], %34 {strides = array<i32>} : memref<2x32x256xf32, #tpu.memory_space<vmem>>, vector<1x32x256xf32>,
    %c1 = arith.constant 1 : index
    %c0_18 = arith.constant 0 : index
    %c0_19 = arith.constant 0 : index
    %35 = vector.load %arg1[%c1, %c0_18, %c0_19] : memref<2x32x256xf32, #tpu.memory_space<vmem>>, vector<1x32x256xf32>
    %36 = vector.shape_cast %35 : vector<1x32x256xf32> to vector<32x256xf32>
    %cst_20 = arith.constant dense<0.000000e+00> : vector<32x64xf32>
    %37 = tpu.matmul %36, %1, %cst_20 {dimension_numbers = #tpu.dot_dimension_numbers<[1], [0], [0], [1], [0, 0, 1, 1], [], []>} : vector<32x256xf32>, vector<256x64xf32>, vector<32x64xf32> -> vector<32x64xf32>
    %cst_21 = arith.constant dense<0.000000e+00> : vector<96x64xf32>
    %38 = tpu.matmul %0, %37, %cst_21 {dimension_numbers = #tpu.dot_dimension_numbers<[1], [0], [0], [1], [0, 0, 1, 1], [], []>} : vector<96x32xf32>, vector<32x64xf32>, vector<96x64xf32> -> vector<96x64xf32>
    %39 = vector.extract_strided_slice %38 {offsets = [0, 0], sizes = [32, 64], strides = [1, 1]} : vector<96x64xf32> to vector<32x64xf32>
    %40 = vector.shape_cast %39 : vector<32x64xf32> to vector<8x4x64xf32>
    %41 = vector.extract_strided_slice %38 {offsets = [32, 0], sizes = [32, 64], strides = [1, 1]} : vector<96x64xf32> to vector<32x64xf32>
    %42 = vector.shape_cast %41 : vector<32x64xf32> to vector<8x4x64xf32>
    %43 = vector.extract_strided_slice %38 {offsets = [64, 0], sizes = [32, 64], strides = [1, 1]} : vector<96x64xf32> to vector<32x64xf32>
    %44 = vector.shape_cast %43 : vector<32x64xf32> to vector<8x4x64xf32>
    %45 = tpu.transpose %40, [0, 2, 1] : vector<8x4x64xf32> -> vector<8x64x4xf32>
    %cst_22 = arith.constant dense<0.000000e+00> : vector<8x64x64xf32>
    %46 = tpu.matmul %45, %42, %cst_22 {dimension_numbers = #tpu.dot_dimension_numbers<[2], [1], [1], [2], [0, 0, 0, 1, 1, 2], [0], [0]>} : vector<8x64x4xf32>, vector<8x4x64xf32>, vector<8x64x64xf32> -> vector<8x64x64xf32>
    %cst_23 = arith.constant dense<0xFF800000> : vector<8x64xf32>
    %47 = vector.multi_reduction <maximumf>, %46, %cst_23 [2] : vector<8x64x64xf32> to vector<8x64xf32>
    %48 = vector.shape_cast %47 : vector<8x64xf32> to vector<8x64x1xf32>
    %49 = vector.broadcast %48 : vector<8x64x1xf32> to vector<8x64x64xf32>
    %50 = arith.subf %46, %49 : vector<8x64x64xf32>
    %51 = math.exp %50 : vector<8x64x64xf32>
    %cst_24 = arith.constant dense<0.000000e+00> : vector<8x64xf32>
    %52 = vector.multi_reduction <add>, %51, %cst_24 [2] : vector<8x64x64xf32> to vector<8x64xf32>
    %53 = vector.shape_cast %52 : vector<8x64xf32> to vector<8x64x1xf32>
    %54 = tpu.reciprocal %53 {approx = true} : vector<8x64x1xf32> -> vector<8x64x1xf32>
    %55 = arith.mulf %53, %54 : vector<8x64x1xf32>
    %cst_25 = arith.constant 2.000000e+00 : f32
    %56 = vector.broadcast %cst_25 : f32 to vector<8x64x1xf32>
    %57 = arith.subf %56, %55 : vector<8x64x1xf32>
    %58 = arith.mulf %54, %57 : vector<8x64x1xf32>
    %59 = vector.broadcast %58 : vector<8x64x1xf32> to vector<8x64x64xf32>
    %60 = arith.mulf %51, %59 : vector<8x64x64xf32>
    %cst_26 = arith.constant dense<0.000000e+00> : vector<8x4x64xf32>
    %61 = tpu.matmul %44, %60, %cst_26 {dimension_numbers = #tpu.dot_dimension_numbers<[2], [2], [1], [1], [0, 0, 0, 1, 1, 1], [0], [0]>} : vector<8x4x64xf32>, vector<8x64x64xf32>, vector<8x4x64xf32> -> vector<8x4x64xf32>
    %62 = vector.shape_cast %61 : vector<8x4x64xf32> to vector<32x64xf32>
    %cst_27 = arith.constant dense<0.000000e+00> : vector<32x256xf32>
    %63 = tpu.matmul %62, %2, %cst_27 {dimension_numbers = #tpu.dot_dimension_numbers<[1], [0], [0], [1], [0, 0, 1, 1], [], []>} : vector<32x64xf32>, vector<64x256xf32>, vector<32x256xf32> -> vector<32x256xf32>
    %c1_28 = arith.constant 1 : index
    %c0_29 = arith.constant 0 : index
    %c0_30 = arith.constant 0 : index
    %64 = vector.load %arg5[%c1_28, %c0_29, %c0_30] : memref<2x32x256xf32, #tpu.memory_space<vmem>>, vector<1x32x256xf32>
    %65 = vector.shape_cast %64 : vector<1x32x256xf32> to vector<32x256xf32>
    %66 = vector.shape_cast %63 : vector<32x256xf32> to vector<1x32x256xf32>
    tpu.vector_store %arg5[%c1_28, %c0_29, %c0_30], %66 {strides = array<i32>} : memref<2x32x256xf32, #tpu.memory_space<vmem>>, vector<1x32x256xf32>,
    return
  }
  func.func @transform_0(%arg0: i32) -> (i32, i32, i32) {
    %c0_i32 = arith.constant 0 : i32
    %c0_i32_0 = arith.constant 0 : i32
    %c0_i32_1 = arith.constant 0 : i32
    %c0_i32_2 = arith.constant 0 : i32
    return %c0_i32, %c0_i32_0, %c0_i32_1 : i32, i32, i32
  }
  func.func @transform_1(%arg0: i32) -> (i32, i32) {
    %c0_i32 = arith.constant 0 : i32
    %c0_i32_0 = arith.constant 0 : i32
    %c0_i32_1 = arith.constant 0 : i32
    return %c0_i32, %c0_i32_0 : i32, i32
  }
  func.func @transform_2(%arg0: i32) -> (i32, i32) {
    %c0_i32 = arith.constant 0 : i32
    %c0_i32_0 = arith.constant 0 : i32
    %c0_i32_1 = arith.constant 0 : i32
    return %c0_i32, %c0_i32_0 : i32, i32
  }
  func.func @transform_3(%arg0: i32) -> (i32, i32) {
    %c0_i32 = arith.constant 0 : i32
    %c0_i32_0 = arith.constant 0 : i32
    %c0_i32_1 = arith.constant 0 : i32
    return %c0_i32, %c0_i32_0 : i32, i32
  }
  func.func @transform_4(%arg0: i32) -> (i32, i32, i32) {
    %c0_i32 = arith.constant 0 : i32
    %c0_i32_0 = arith.constant 0 : i32
    %c0_i32_1 = arith.constant 0 : i32
    %c0_i32_2 = arith.constant 0 : i32
    return %c0_i32, %c0_i32_0, %c0_i32_1 : i32, i32, i32
  }
}

</mosaic_0001>

<llo_original>
// kernel: low_mixer_forward.1
$region0: #{low_mixer_forward.1}
  #allocation0 [shape = 'u32[]', space=smem, size = 0x4, offset = 0x4, fixed_abs, tag = 'smem constant byte address 0x4 - core index']
  #allocation1 [shape = 'u32[144,128]{1,0:T(1,128)}', space=vmem, size = 0x12000, scoped, tag = 'internal scratch']
  %s0 = inlined_call_operand.vmem [shape: f32[2,32,256], index: 0, kind: input, shape index: {}]
  %s1 = inlined_call_operand.vmem [shape: f32[96,32], index: 1, kind: input, shape index: {}]
  %s2 = inlined_call_operand.vmem [shape: f32[256,64], index: 2, kind: input, shape index: {}]
  %s3 = inlined_call_operand.vmem [shape: f32[64,256], index: 3, kind: input, shape index: {}]
  %s4 = inlined_call_operand.vmem [shape: f32[2,32,256], index: 4, kind: output, shape index: {}]
  %s5 = sld [smem:[#allocation0]]
  $region26: #{low_mixer_forward.1} parent=0
    _
  %s7 = ssub.s32 1, %s5
  %s8 = scalar_select 0, %s7, %s5
  // Predicated region
  $region2: #{low_mixer_forward.1} parent=0 // pred_check
    _
  $region3: #{low_mixer_forward.1} parent=0 // pred_check_branch
    %10 = sbr.rel (0) target = $region5
  $region4: #{low_mixer_forward.1} parent=0 // pred_region
    _
  $region5: #{low_mixer_forward.1} parent=0 // pred_fallthru
    _
  // Predicated region
  $region6: #{low_mixer_forward.1} parent=0 // pred_check
    _
  $region7: #{low_mixer_forward.1} parent=0 // pred_check_branch
    %12 = sbr.rel (0) target = $region9
  $region8: #{low_mixer_forward.1} parent=0 // pred_region
    _
  $region9: #{low_mixer_forward.1} parent=0 // pred_fallthru
    _
  // Predicated region
  $region10: #{low_mixer_forward.1} parent=0 // pred_check
    _
  $region11: #{low_mixer_forward.1} parent=0 // pred_check_branch
    %14 = sbr.rel (0) target = $region13
  $region12: #{low_mixer_forward.1} parent=0 // pred_region
    _
  $region13: #{low_mixer_forward.1} parent=0 // pred_fallthru
    _
  // Predicated region
  $region14: #{low_mixer_forward.1} parent=0 // pred_check
    _
  $region15: #{low_mixer_forward.1} parent=0 // pred_check_branch
    %16 = sbr.rel (0) target = $region17
  $region16: #{low_mixer_forward.1} parent=0 // pred_region
    _
  $region17: #{low_mixer_forward.1} parent=0 // pred_fallthru
    _
  %v17 = vld [vmem:[%s1] sm:$0xff]
  %v18 = vld [vmem:[%s1 + $0x8] sm:$0xff]
  %v19 = vld [vmem:[%s1 + $0x10] sm:$0xff]
  %v20 = vld [vmem:[%s1 + $0x18] sm:$0xff]
  %v21 = vld [vmem:[%s1 + $0x20] sm:$0xff]
  %v22 = vld [vmem:[%s1 + $0x28] sm:$0xff]
  %v23 = vld [vmem:[%s1 + $0x30] sm:$0xff]
  %v24 = vld [vmem:[%s1 + $0x38] sm:$0xff]
  %v25 = vld [vmem:[%s1 + $0x40] sm:$0xff]
  %v26 = vld [vmem:[%s1 + $0x48] sm:$0xff]
  %v27 = vld [vmem:[%s1 + $0x50] sm:$0xff]
  %v28 = vld [vmem:[%s1 + $0x58] sm:$0xff]
  %v29 = vld [vmem:[%s2] sm:$0xff]
  %v30 = vld [vmem:[%s2 + $0x8] sm:$0xff]
  %v31 = vld [vmem:[%s2 + $0x10] sm:$0xff]
  %v32 = vld [vmem:[%s2 + $0x18] sm:$0xff]
  %v33 = vld [vmem:[%s2 + $0x20] sm:$0xff]
  %v34 = vld [vmem:[%s2 + $0x28] sm:$0xff]
  %v35 = vld [vmem:[%s2 + $0x30] sm:$0xff]
  %v36 = vld [vmem:[%s2 + $0x38] sm:$0xff]
  %v37 = vld [vmem:[%s2 + $0x40] sm:$0xff]
  %v38 = vld [vmem:[%s2 + $0x48] sm:$0xff]
  %v39 = vld [vmem:[%s2 + $0x50] sm:$0xff]
  %v40 = vld [vmem:[%s2 + $0x58] sm:$0xff]
  %v41 = vld [vmem:[%s2 + $0x60] sm:$0xff]
  %v42 = vld [vmem:[%s2 + $0x68] sm:$0xff]
  %v43 = vld [vmem:[%s2 + $0x70] sm:$0xff]
  %v44 = vld [vmem:[%s2 + $0x78] sm:$0xff]
  %v45 = vld [vmem:[%s2 + $0x80] sm:$0xff]
  %v46 = vld [vmem:[%s2 + $0x88] sm:$0xff]
  %v47 = vld [vmem:[%s2 + $0x90] sm:$0xff]
  %v48 = vld [vmem:[%s2 + $0x98] sm:$0xff]
  %v49 = vld [vmem:[%s2 + $0xa0] sm:$0xff]
  %v50 = vld [vmem:[%s2 + $0xa8] sm:$0xff]
  %v51 = vld [vmem:[%s2 + $0xb0] sm:$0xff]
  %v52 = vld [vmem:[%s2 + $0xb8] sm:$0xff]
  %v53 = vld [vmem:[%s2 + $0xc0] sm:$0xff]
  %v54 = vld [vmem:[%s2 + $0xc8] sm:$0xff]
  %v55 = vld [vmem:[%s2 + $0xd0] sm:$0xff]
  %v56 = vld [vmem:[%s2 + $0xd8] sm:$0xff]
  %v57 = vld [vmem:[%s2 + $0xe0] sm:$0xff]
  %v58 = vld [vmem:[%s2 + $0xe8] sm:$0xff]
  %v59 = vld [vmem:[%s2 + $0xf0] sm:$0xff]
  %v60 = vld [vmem:[%s2 + $0xf8] sm:$0xff]
  %v61 = vld [vmem:[%s3] sm:$0xff]
  %v62 = vld [vmem:[%s3 + $0x8] sm:$0xff]
  %v63 = vld [vmem:[%s3 + $0x10] sm:$0xff]
  %v64 = vld [vmem:[%s3 + $0x18] sm:$0xff]
  %v65 = vld [vmem:[%s3 + $0x20] sm:$0xff]
  %v66 = vld [vmem:[%s3 + $0x28] sm:$0xff]
  %v67 = vld [vmem:[%s3 + $0x30] sm:$0xff]
  %v68 = vld [vmem:[%s3 + $0x38] sm:$0xff]
  %v69 = vld [vmem:[%s3 + $0x40] sm:$0xff]
  %v70 = vld [vmem:[%s3 + $0x48] sm:$0xff]
  %v71 = vld [vmem:[%s3 + $0x50] sm:$0xff]
  %v72 = vld [vmem:[%s3 + $0x58] sm:$0xff]
  %v73 = vld [vmem:[%s3 + $0x60] sm:$0xff]
  %v74 = vld [vmem:[%s3 + $0x68] sm:$0xff]
  %v75 = vld [vmem:[%s3 + $0x70] sm:$0xff]
  %v76 = vld [vmem:[%s3 + $0x78] sm:$0xff]
  %v77 = vld [vmem:[%s0] sm:$0xff]
  %v78 = vld [vmem:[%s0 + $0x8] sm:$0xff]
  %v79 = vld [vmem:[%s0 + $0x10] sm:$0xff]
  %v80 = vld [vmem:[%s0 + $0x18] sm:$0xff]
  %v81 = vld [vmem:[%s0 + $0x20] sm:$0xff]
  %v82 = vld [vmem:[%s0 + $0x28] sm:$0xff]
  %v83 = vld [vmem:[%s0 + $0x30] sm:$0xff]
  %v84 = vld [vmem:[%s0 + $0x38] sm:$0xff]
  %85 = vmatprep.subr.mxu0 0.0
  %86 = vmatpush1.msra.mxu0 %v44
  %87 = vmatprep.subr.mxu0 0.0
  %88 = vmatpush1.msra.mxu0 %v43
  %89 = vmatprep.subr.mxu0 0.0
  %90 = vmatpush1.msra.mxu0 %v42
  %91 = vmatprep.subr.mxu0 0.0
  %92 = vmatpush1.msra.mxu0 %v41
  %93 = vmatprep.subr.mxu0 0.0
  %94 = vmatpush1.msra.mxu0 %v40
  %95 = vmatprep.subr.mxu0 0.0
  %96 = vmatpush1.msra.mxu0 %v39
  %97 = vmatprep.subr.mxu0 0.0
  %98 = vmatpush1.msra.mxu0 %v38
  %99 = vmatprep.subr.mxu0 0.0
  %100 = vmatpush1.msra.mxu0 %v37
  %101 = vmatprep.subr.mxu0 0.0
  %102 = vmatpush1.msra.mxu0 %v36
  %103 = vmatprep.subr.mxu0 0.0
  %104 = vmatpush1.msra.mxu0 %v35
  %105 = vmatprep.subr.mxu0 0.0
  %106 = vmatpush1.msra.mxu0 %v34
  %107 = vmatprep.subr.mxu0 0.0
  %108 = vmatpush1.msra.mxu0 %v33
  %109 = vmatprep.subr.mxu0 0.0
  %110 = vmatpush1.msra.mxu0 %v32
  %111 = vmatprep.subr.mxu0 0.0
  %112 = vmatpush1.msra.mxu0 %v31
  %113 = vmatprep.subr.mxu0 0.0
  %114 = vmatpush1.msra.mxu0 %v30
  %115 = vmatprep.subr.mxu0 0.0
  %116 = vmatpush1.msra.mxu0 %v29
  %117 = vmatprep.subr.mxu0 0.0
  %118 = vmatpush2.msra.mxu0 %v60
  %119 = vmatprep.subr.mxu0 0.0
  %120 = vmatpush2.msra.mxu0 %v59
  %121 = vmatprep.subr.mxu0 0.0
  %122 = vmatpush2.msra.mxu0 %v58
  %123 = vmatprep.subr.mxu0 0.0
  %124 = vmatpush2.msra.mxu0 %v57
  %125 = vmatprep.subr.mxu0 0.0
  %126 = vmatpush2.msra.mxu0 %v56
  %127 = vmatprep.subr.mxu0 0.0
  %128 = vmatpush2.msra.mxu0 %v55
  %129 = vmatprep.subr.mxu0 0.0
  %130 = vmatpush2.msra.mxu0 %v54
  %131 = vmatprep.subr.mxu0 0.0
  %132 = vmatpush2.msra.mxu0 %v53
  %133 = vmatprep.subr.mxu0 0.0
  %134 = vmatpush2.msra.mxu0 %v52
  %135 = vmatprep.subr.mxu0 0.0
  %136 = vmatpush2.msra.mxu0 %v51
  %137 = vmatprep.subr.mxu0 0.0
  %138 = vmatpush2.msra.mxu0 %v50
  %139 = vmatprep.subr.mxu0 0.0
  %140 = vmatpush2.msra.mxu0 %v49
  %141 = vmatprep.subr.mxu0 0.0
  %142 = vmatpush2.msra.mxu0 %v48
  %143 = vmatprep.subr.mxu0 0.0
  %144 = vmatpush2.msra.mxu0 %v47
  %145 = vmatprep.subr.mxu0 0.0
  %146 = vmatpush2.msra.mxu0 %v46
  %147 = vmatprep.subr.mxu0 0.0
  %148 = vmatpush2.msra.mxu0 %v45
  %149 = vmatprep.mubr.f32.mxu0 %v78
  %150 = vmatmul.mubr.f32.gmra.mxu0 %v77
  %v151 = vpop.f32.mrf.mxu0
  %v152 = vadd.f32 0.0, %v151
  %v153 = vpop.f32.mrf.mxu0
  %154 = vmatprep.mubr.f32.mxu0 %v80
  %155 = vmatmul.mubr.f32.gmra.mxu0 %v79
  %v156 = vpop.f32.mrf.mxu0
  %v157 = vadd.f32 0.0, %v156
  %v158 = vpop.f32.mrf.mxu0
  %159 = vmatprep.mubr.f32.mxu0 %v82
  %160 = vmatmul.mubr.f32.gmra.mxu0 %v81
  %v161 = vpop.f32.mrf.mxu0
  %v162 = vadd.f32 0.0, %v161
  %v163 = vpop.f32.mrf.mxu0
  %164 = vmatprep.mubr.f32.mxu0 %v84
  %165 = vmatmul.mubr.f32.gmra.mxu0 %v83
  %v166 = vpop.f32.mrf.mxu0
  %v167 = vadd.f32 0.0, %v166
  %v168 = vpop.f32.mrf.mxu0
  %169 = vdwg.mxu0
  %vm170 = vcmask 261120
  %v172 = vsel %vm170, %v17, 0
  %v175 = vsel %vm170, %v18, 0
  %v178 = vsel %vm170, %v19, 0
  %v181 = vsel %vm170, %v20, 0
  %v184 = vsel %vm170, %v21, 0
  %v187 = vsel %vm170, %v22, 0
  %v190 = vsel %vm170, %v23, 0
  %v193 = vsel %vm170, %v24, 0
  %v196 = vsel %vm170, %v25, 0
  %v199 = vsel %vm170, %v26, 0
  %v202 = vsel %vm170, %v27, 0
  %v205 = vsel %vm170, %v28, 0
  %207 = vmatprep.subr.mxu0 0.0
  %208 = vmatpush1.msra.mxu0 0.0
  %209 = vmatprep.subr.mxu0 0.0
  %210 = vmatpush1.msra.mxu0 0.0
  %211 = vmatprep.subr.mxu0 0.0
  %212 = vmatpush1.msra.mxu0 0.0
  %213 = vmatprep.subr.mxu0 0.0
  %214 = vmatpush1.msra.mxu0 0.0
  %215 = vmatprep.subr.mxu0 0.0
  %216 = vmatpush1.msra.mxu0 0.0
  %217 = vmatprep.subr.mxu0 0.0
  %218 = vmatpush1.msra.mxu0 0.0
  %219 = vmatprep.subr.mxu0 0.0
  %220 = vmatpush1.msra.mxu0 0.0
  %221 = vmatprep.subr.mxu0 0.0
  %222 = vmatpush1.msra.mxu0 0.0
  %223 = vmatprep.subr.mxu0 0.0
  %224 = vmatpush1.msra.mxu0 0.0
  %225 = vmatprep.subr.mxu0 0.0
  %226 = vmatpush1.msra.mxu0 0.0
  %227 = vmatprep.subr.mxu0 0.0
  %228 = vmatpush1.msra.mxu0 0.0
  %229 = vmatprep.subr.mxu0 0.0
  %230 = vmatpush1.msra.mxu0 0.0
  %231 = vmatprep.subr.mxu0 0.0
  %232 = vmatpush1.msra.mxu0 %v167
  %233 = vmatprep.subr.mxu0 0.0
  %234 = vmatpush1.msra.mxu0 %v162
  %235 = vmatprep.subr.mxu0 0.0
  %236 = vmatpush1.msra.mxu0 %v157
  %237 = vmatprep.subr.mxu0 0.0
  %238 = vmatpush1.msra.mxu0 %v152
  %239 = vmatprep.subr.mxu0 0.0
  %240 = vmatpush2.msra.mxu0 0.0
  %241 = vmatprep.subr.mxu0 0.0
  %242 = vmatpush2.msra.mxu0 0.0
  %243 = vmatprep.subr.mxu0 0.0
  %244 = vmatpush2.msra.mxu0 0.0
  %245 = vmatprep.subr.mxu0 0.0
  %246 = vmatpush2.msra.mxu0 0.0
  %247 = vmatprep.subr.mxu0 0.0
  %248 = vmatpush2.msra.mxu0 0.0
  %249 = vmatprep.subr.mxu0 0.0
  %250 = vmatpush2.msra.mxu0 0.0
  %251 = vmatprep.subr.mxu0 0.0
  %252 = vmatpush2.msra.mxu0 0.0
  %253 = vmatprep.subr.mxu0 0.0
  %254 = vmatpush2.msra.mxu0 0.0
  %255 = vmatprep.subr.mxu0 0.0
  %256 = vmatpush2.msra.mxu0 0.0
  %257 = vmatprep.subr.mxu0 0.0
  %258 = vmatpush2.msra.mxu0 0.0
  %259 = vmatprep.subr.mxu0 0.0
  %260 = vmatpush2.msra.mxu0 0.0
  %261 = vmatprep.subr.mxu0 0.0
  %262 = vmatpush2.msra.mxu0 0.0
  %263 = vmatprep.subr.mxu0 0.0
  %264 = vmatpush2.msra.mxu0 0.0
  %265 = vmatprep.subr.mxu0 0.0
  %266 = vmatpush2.msra.mxu0 0.0
  %267 = vmatprep.subr.mxu0 0.0
  %268 = vmatpush2.msra.mxu0 0.0
  %269 = vmatprep.subr.mxu0 0.0
  %270 = vmatpush2.msra.mxu0 0.0
  %271 = vmatprep.mubr.f32.mxu0 0.0
  %272 = vmatmul.mubr.f32.gmra.mxu0 %v172
  %v273 = vpop.f32.mrf.mxu0
  %v274 = vadd.f32 0.0, %v273
  %v275 = vpop.f32.mrf.mxu0
  %276 = vmatprep.mubr.f32.mxu0 0.0
  %277 = vmatmul.mubr.f32.gmra.mxu0 %v175
  %v278 = vpop.f32.mrf.mxu0
  %v279 = vadd.f32 0.0, %v278
  %v280 = vpop.f32.mrf.mxu0
  %281 = vmatprep.mubr.f32.mxu0 0.0
  %282 = vmatmul.mubr.f32.gmra.mxu0 %v178
  %v283 = vpop.f32.mrf.mxu0
  %v284 = vadd.f32 0.0, %v283
  %v285 = vpop.f32.mrf.mxu0
  %286 = vmatprep.mubr.f32.mxu0 0.0
  %287 = vmatmul.mubr.f32.gmra.mxu0 %v181
  %v288 = vpop.f32.mrf.mxu0
  %v289 = vadd.f32 0.0, %v288
  %v290 = vpop.f32.mrf.mxu0
  %291 = vmatprep.mubr.f32.mxu0 0.0
  %292 = vmatmul.mubr.f32.gmra.mxu0 %v184
  %v293 = vpop.f32.mrf.mxu0
  %v294 = vadd.f32 0.0, %v293
  %v295 = vpop.f32.mrf.mxu0
  %296 = vmatprep.mubr.f32.mxu0 0.0
  %297 = vmatmul.mubr.f32.gmra.mxu0 %v187
  %v298 = vpop.f32.mrf.mxu0
  %v299 = vadd.f32 0.0, %v298
  %v300 = vpop.f32.mrf.mxu0
  %301 = vmatprep.mubr.f32.mxu0 0.0
  %302 = vmatmul.mubr.f32.gmra.mxu0 %v190
  %v303 = vpop.f32.mrf.mxu0
  %v304 = vadd.f32 0.0, %v303
  %v305 = vpop.f32.mrf.mxu0
  %306 = vmatprep.mubr.f32.mxu0 0.0
  %307 = vmatmul.mubr.f32.gmra.mxu0 %v193
  %v308 = vpop.f32.mrf.mxu0
  %v309 = vadd.f32 0.0, %v308
  %v310 = vpop.f32.mrf.mxu0
  %311 = vmatprep.mubr.f32.mxu0 0.0
  %312 = vmatmul.mubr.f32.gmra.mxu0 %v196
  %v313 = vpop.f32.mrf.mxu0
  %v314 = vadd.f32 0.0, %v313
  %v315 = vpop.f32.mrf.mxu0
  %316 = vmatprep.mubr.f32.mxu0 0.0
  %317 = vmatmul.mubr.f32.gmra.mxu0 %v199
  %v318 = vpop.f32.mrf.mxu0
  %v319 = vadd.f32 0.0, %v318
  %v320 = vpop.f32.mrf.mxu0
  %321 = vmatprep.mubr.f32.mxu0 0.0
  %322 = vmatmul.mubr.f32.gmra.mxu0 %v202
  %v323 = vpop.f32.mrf.mxu0
  %v324 = vadd.f32 0.0, %v323
  %v325 = vpop.f32.mrf.mxu0
  %326 = vmatprep.mubr.f32.mxu0 0.0
  %327 = vmatmul.mubr.f32.gmra.mxu0 %v205
  %v328 = vpop.f32.mrf.mxu0
  %v329 = vadd.f32 0.0, %v328
  %v330 = vpop.f32.mrf.mxu0
  %331 = vdwg.mxu0
  %v336 = vcombine.high %v274, %v274
  %v337 = vcombine.high %v279, %v279
  %v338 = vcombine.high %v284, %v284
  %v339 = vcombine.high %v289, %v289
  %v348 = vcombine.high %v294, %v294
  %v349 = vcombine.high %v299, %v299
  %v350 = vcombine.high %v304, %v304
  %v351 = vcombine.high %v309, %v309
  %v356 = vcombine.high %v314, %v314
  %v357 = vcombine.high %v319, %v319
  %v358 = vcombine.high %v324, %v324
  %v359 = vcombine.high %v329, %v329
  %360 = vxpose.xlu0.b32.start [1/16] %v274, 128
  %361 = vxpose.xlu0.b32.cont [2/16] 0.0, 128
  %362 = vxpose.xlu0.b32.cont [3/16] 0.0, 128
  %363 = vxpose.xlu0.b32.cont [4/16] 0.0, 128
  %364 = vxpose.xlu0.b32.cont [5/16] 0.0, 128
  %365 = vxpose.xlu0.b32.cont [6/16] 0.0, 128
  %366 = vxpose.xlu0.b32.cont [7/16] 0.0, 128
  %367 = vxpose.xlu0.b32.cont [8/16] 0.0, 128
  %368 = vxpose.xlu0.b32.cont [9/16] 0.0, 128
  %369 = vxpose.xlu0.b32.cont [10/16] 0.0, 128
  %370 = vxpose.xlu0.b32.cont [11/16] 0.0, 128
  %371 = vxpose.xlu0.b32.cont [12/16] 0.0, 128
  %372 = vxpose.xlu0.b32.cont [13/16] 0.0, 128
  %373 = vxpose.xlu0.b32.cont [14/16] 0.0, 128
  %374 = vxpose.xlu0.b32.cont [15/16] 0.0, 128
  %375 = vxpose.xlu0.b32.end [16/16] 0.0, 128
  %v376 = vpop.trf.xlu0
  %v377 = vpop.trf.xlu0
  %v378 = vpop.trf.xlu0
  %v379 = vpop.trf.xlu0
  %v380 = vpop.trf.xlu0
  %v381 = vpop.trf.xlu0
  %v382 = vpop.trf.xlu0
  %v383 = vpop.trf.xlu0
  %v384 = vpop.trf.xlu0
  %v385 = vpop.trf.xlu0
  %v386 = vpop.trf.xlu0
  %v387 = vpop.trf.xlu0
  %v388 = vpop.trf.xlu0
  %v389 = vpop.trf.xlu0
  %v390 = vpop.trf.xlu0
  %v391 = vpop.trf.xlu0
  %392 = vxpose.xlu0.b32.start [1/16] %v336, 128
  %393 = vxpose.xlu0.b32.cont [2/16] 0.0, 128
  %394 = vxpose.xlu0.b32.cont [3/16] 0.0, 128
  %395 = vxpose.xlu0.b32.cont [4/16] 0.0, 128
  %396 = vxpose.xlu0.b32.cont [5/16] 0.0, 128
  %397 = vxpose.xlu0.b32.cont [6/16] 0.0, 128
  %398 = vxpose.xlu0.b32.cont [7/16] 0.0, 128
  %399 = vxpose.xlu0.b32.cont [8/16] 0.0, 128
  %400 = vxpose.xlu0.b32.cont [9/16] 0.0, 128
  %401 = vxpose.xlu0.b32.cont [10/16] 0.0, 128
  %402 = vxpose.xlu0.b32.cont [11/16] 0.0, 128
  %403 = vxpose.xlu0.b32.cont [12/16] 0.0, 128
  %404 = vxpose.xlu0.b32.cont [13/16] 0.0, 128
  %405 = vxpose.xlu0.b32.cont [14/16] 0.0, 128
  %406 = vxpose.xlu0.b32.cont [15/16] 0.0, 128
  %407 = vxpose.xlu0.b32.end [16/16] 0.0, 128
  %v408 = vpop.trf.xlu0
  %v409 = vpop.trf.xlu0
  %v410 = vpop.trf.xlu0
  %v411 = vpop.trf.xlu0
  %v412 = vpop.trf.xlu0
  %v413 = vpop.trf.xlu0
  %v414 = vpop.trf.xlu0
  %v415 = vpop.trf.xlu0
  %v416 = vpop.trf.xlu0
  %v417 = vpop.trf.xlu0
  %v418 = vpop.trf.xlu0
  %v419 = vpop.trf.xlu0
  %v420 = vpop.trf.xlu0
  %v421 = vpop.trf.xlu0
  %v422 = vpop.trf.xlu0
  %v423 = vpop.trf.xlu0
  %424 = vxpose.xlu0.b32.start [1/16] %v279, 128
  %425 = vxpose.xlu0.b32.cont [2/16] 0.0, 128
  %426 = vxpose.xlu0.b32.cont [3/16] 0.0, 128
  %427 = vxpose.xlu0.b32.cont [4/16] 0.0, 128
  %428 = vxpose.xlu0.b32.cont [5/16] 0.0, 128
  %429 = vxpose.xlu0.b32.cont [6/16] 0.0, 128
  %430 = vxpose.xlu0.b32.cont [7/16] 0.0, 128
  %431 = vxpose.xlu0.b32.cont [8/16] 0.0, 128
  %432 = vxpose.xlu0.b32.cont [9/16] 0.0, 128
  %433 = vxpose.xlu0.b32.cont [10/16] 0.0, 128
  %434 = vxpose.xlu0.b32.cont [11/16] 0.0, 128
  %435 = vxpose.xlu0.b32.cont [12/16] 0.0, 128
  %436 = vxpose.xlu0.b32.cont [13/16] 0.0, 128
  %437 = vxpose.xlu0.b32.cont [14/16] 0.0, 128
  %438 = vxpose.xlu0.b32.cont [15/16] 0.0, 128
  %439 = vxpose.xlu0.b32.end [16/16] 0.0, 128
  %v440 = vpop.trf.xlu0
  %v441 = vpop.trf.xlu0
  %v442 = vpop.trf.xlu0
  %v443 = vpop.trf.xlu0
  %v444 = vpop.trf.xlu0
  %v445 = vpop.trf.xlu0
  %v446 = vpop.trf.xlu0
  %v447 = vpop.trf.xlu0
  %v448 = vpop.trf.xlu0
  %v449 = vpop.trf.xlu0
  %v450 = vpop.trf.xlu0
  %v451 = vpop.trf.xlu0
  %v452 = vpop.trf.xlu0
  %v453 = vpop.trf.xlu0
  %v454 = vpop.trf.xlu0
  %v455 = vpop.trf.xlu0
  %456 = vxpose.xlu0.b32.start [1/16] %v337, 128
  %457 = vxpose.xlu0.b32.cont [2/16] 0.0, 128
  %458 = vxpose.xlu0.b32.cont [3/16] 0.0, 128
  %459 = vxpose.xlu0.b32.cont [4/16] 0.0, 128
  %460 = vxpose.xlu0.b32.cont [5/16] 0.0, 128
  %461 = vxpose.xlu0.b32.cont [6/16] 0.0, 128
  %462 = vxpose.xlu0.b32.cont [7/16] 0.0, 128
  %463 = vxpose.xlu0.b32.cont [8/16] 0.0, 128
  %464 = vxpose.xlu0.b32.cont [9/16] 0.0, 128
  %465 = vxpose.xlu0.b32.cont [10/16] 0.0, 128
  %466 = vxpose.xlu0.b32.cont [11/16] 0.0, 128
  %467 = vxpose.xlu0.b32.cont [12/16] 0.0, 128
  %468 = vxpose.xlu0.b32.cont [13/16] 0.0, 128
  %469 = vxpose.xlu0.b32.cont [14/16] 0.0, 128
  %470 = vxpose.xlu0.b32.cont [15/16] 0.0, 128
  %471 = vxpose.xlu0.b32.end [16/16] 0.0, 128
  %v472 = vpop.trf.xlu0
  %v473 = vpop.trf.xlu0
  %v474 = vpop.trf.xlu0
  %v475 = vpop.trf.xlu0
  %v476 = vpop.trf.xlu0
  %v477 = vpop.trf.xlu0
  %v478 = vpop.trf.xlu0
  %v479 = vpop.trf.xlu0
  %v480 = vpop.trf.xlu0
  %v481 = vpop.trf.xlu0
  %v482 = vpop.trf.xlu0
  %v483 = vpop.trf.xlu0
  %v484 = vpop.trf.xlu0
  %v485 = vpop.trf.xlu0
  %v486 = vpop.trf.xlu0
  %v487 = vpop.trf.xlu0
  %488 = vxpose.xlu0.b32.start [1/16] %v284, 128
  %489 = vxpose.xlu0.b32.cont [2/16] 0.0, 128
  %490 = vxpose.xlu0.b32.cont [3/16] 0.0, 128
  %491 = vxpose.xlu0.b32.cont [4/16] 0.0, 128
  %492 = vxpose.xlu0.b32.cont [5/16] 0.0, 128
  %493 = vxpose.xlu0.b32.cont [6/16] 0.0, 128
  %494 = vxpose.xlu0.b32.cont [7/16] 0.0, 128
  %495 = vxpose.xlu0.b32.cont [8/16] 0.0, 128
  %496 = vxpose.xlu0.b32.cont [9/16] 0.0, 128
  %497 = vxpose.xlu0.b32.cont [10/16] 0.0, 128
  %498 = vxpose.xlu0.b32.cont [11/16] 0.0, 128
  %499 = vxpose.xlu0.b32.cont [12/16] 0.0, 128
  %500 = vxpose.xlu0.b32.cont [13/16] 0.0, 128
  %501 = vxpose.xlu0.b32.cont [14/16] 0.0, 128
  %502 = vxpose.xlu0.b32.cont [15/16] 0.0, 128
  %503 = vxpose.xlu0.b32.end [16/16] 0.0, 128
  %v504 = vpop.trf.xlu0
  %v505 = vpop.trf.xlu0
  %v506 = vpop.trf.xlu0
  %v507 = vpop.trf.xlu0
  %v508 = vpop.trf.xlu0
  %v509 = vpop.trf.xlu0
  %v510 = vpop.trf.xlu0
  %v511 = vpop.trf.xlu0
  %v512 = vpop.trf.xlu0
  %v513 = vpop.trf.xlu0
  %v514 = vpop.trf.xlu0
  %v515 = vpop.trf.xlu0
  %v516 = vpop.trf.xlu0
  %v517 = vpop.trf.xlu0
  %v518 = vpop.trf.xlu0
  %v519 = vpop.trf.xlu0
  %520 = vxpose.xlu0.b32.start [1/16] %v338, 128
  %521 = vxpose.xlu0.b32.cont [2/16] 0.0, 128
  %522 = vxpose.xlu0.b32.cont [3/16] 0.0, 128
  %523 = vxpose.xlu0.b32.cont [4/16] 0.0, 128
  %524 = vxpose.xlu0.b32.cont [5/16] 0.0, 128
  %525 = vxpose.xlu0.b32.cont [6/16] 0.0, 128
  %526 = vxpose.xlu0.b32.cont [7/16] 0.0, 128
  %527 = vxpose.xlu0.b32.cont [8/16] 0.0, 128
  %528 = vxpose.xlu0.b32.cont [9/16] 0.0, 128
  %529 = vxpose.xlu0.b32.cont [10/16] 0.0, 128
  %530 = vxpose.xlu0.b32.cont [11/16] 0.0, 128
  %531 = vxpose.xlu0.b32.cont [12/16] 0.0, 128
  %532 = vxpose.xlu0.b32.cont [13/16] 0.0, 128
  %533 = vxpose.xlu0.b32.cont [14/16] 0.0, 128
  %534 = vxpose.xlu0.b32.cont [15/16] 0.0, 128
  %535 = vxpose.xlu0.b32.end [16/16] 0.0, 128
  %v536 = vpop.trf.xlu0
  %v537 = vpop.trf.xlu0
  %v538 = vpop.trf.xlu0
  %v539 = vpop.trf.xlu0
  %v540 = vpop.trf.xlu0
  %v541 = vpop.trf.xlu0
  %v542 = vpop.trf.xlu0
  %v543 = vpop.trf.xlu0
  %v544 = vpop.trf.xlu0
  %v545 = vpop.trf.xlu0
  %v546 = vpop.trf.xlu0
  %v547 = vpop.trf.xlu0
  %v548 = vpop.trf.xlu0
  %v549 = vpop.trf.xlu0
  %v550 = vpop.trf.xlu0
  %v551 = vpop.trf.xlu0
  %552 = vxpose.xlu0.b32.start [1/16] %v289, 128
  %553 = vxpose.xlu0.b32.cont [2/16] 0.0, 128
  %554 = vxpose.xlu0.b32.cont [3/16] 0.0, 128
  %555 = vxpose.xlu0.b32.cont [4/16] 0.0, 128
  %556 = vxpose.xlu0.b32.cont [5/16] 0.0, 128
  %557 = vxpose.xlu0.b32.cont [6/16] 0.0, 128
  %558 = vxpose.xlu0.b32.cont [7/16] 0.0, 128
  %559 = vxpose.xlu0.b32.cont [8/16] 0.0, 128
  %560 = vxpose.xlu0.b32.cont [9/16] 0.0, 128
  %561 = vxpose.xlu0.b32.cont [10/16] 0.0, 128
  %562 = vxpose.xlu0.b32.cont [11/16] 0.0, 128
  %563 = vxpose.xlu0.b32.cont [12/16] 0.0, 128
  %564 = vxpose.xlu0.b32.cont [13/16] 0.0, 128
  %565 = vxpose.xlu0.b32.cont [14/16] 0.0, 128
  %566 = vxpose.xlu0.b32.cont [15/16] 0.0, 128
  %567 = vxpose.xlu0.b32.end [16/16] 0.0, 128
  %v568 = vpop.trf.xlu0
  %v569 = vpop.trf.xlu0
  %v570 = vpop.trf.xlu0
  %v571 = vpop.trf.xlu0
  %v572 = vpop.trf.xlu0
  %v573 = vpop.trf.xlu0
  %v574 = vpop.trf.xlu0
  %v575 = vpop.trf.xlu0
  %v576 = vpop.trf.xlu0
  %v577 = vpop.trf.xlu0
  %v578 = vpop.trf.xlu0
  %v579 = vpop.trf.xlu0
  %v580 = vpop.trf.xlu0
  %v581 = vpop.trf.xlu0
  %v582 = vpop.trf.xlu0
  %v583 = vpop.trf.xlu0
  %584 = vxpose.xlu0.b32.start [1/16] %v339, 128
  %585 = vxpose.xlu0.b32.cont [2/16] 0.0, 128
  %586 = vxpose.xlu0.b32.cont [3/16] 0.0, 128
  %587 = vxpose.xlu0.b32.cont [4/16] 0.0, 128
  %588 = vxpose.xlu0.b32.cont [5/16] 0.0, 128
  %589 = vxpose.xlu0.b32.cont [6/16] 0.0, 128
  %590 = vxpose.xlu0.b32.cont [7/16] 0.0, 128
  %591 = vxpose.xlu0.b32.cont [8/16] 0.0, 128
  %592 = vxpose.xlu0.b32.cont [9/16] 0.0, 128
  %593 = vxpose.xlu0.b32.cont [10/16] 0.0, 128
  %594 = vxpose.xlu0.b32.cont [11/16] 0.0, 128
  %595 = vxpose.xlu0.b32.cont [12/16] 0.0, 128
  %596 = vxpose.xlu0.b32.cont [13/16] 0.0, 128
  %597 = vxpose.xlu0.b32.cont [14/16] 0.0, 128
  %598 = vxpose.xlu0.b32.cont [15/16] 0.0, 128
  %599 = vxpose.xlu0.b32.end [16/16] 0.0, 128
  %v600 = vpop.trf.xlu0
  %v601 = vpop.trf.xlu0
  %v602 = vpop.trf.xlu0
  %v603 = vpop.trf.xlu0
  %v604 = vpop.trf.xlu0
  %v605 = vpop.trf.xlu0
  %v606 = vpop.trf.xlu0
  %v607 = vpop.trf.xlu0
  %v608 = vpop.trf.xlu0
  %v609 = vpop.trf.xlu0
  %v610 = vpop.trf.xlu0
  %v611 = vpop.trf.xlu0
  %v612 = vpop.trf.xlu0
  %v613 = vpop.trf.xlu0
  %v614 = vpop.trf.xlu0
  %v615 = vpop.trf.xlu0
  %vm616 = vcmask 31744
  %v618 = vsel %vm616, %v376, 0
  %v621 = vsel %vm616, %v377, 0
  %v624 = vsel %vm616, %v378, 0
  %v627 = vsel %vm616, %v379, 0
  %v630 = vsel %vm616, %v380, 0
  %v633 = vsel %vm616, %v381, 0
  %v636 = vsel %vm616, %v382, 0
  %v639 = vsel %vm616, %v383, 0
  %vm641 = vcmask 1043456
  %v642 = vsel %vm641, %v294, 0
  %644 = vmatprep.subr.mxu0 0.0
  %645 = vmatpush1.msra.mxu0 0.0
  %646 = vmatprep.subr.mxu0 0.0
  %647 = vmatpush1.msra.mxu0 0.0
  %648 = vmatprep.subr.mxu0 0.0
  %649 = vmatpush1.msra.mxu0 0.0
  %650 = vmatprep.subr.mxu0 0.0
  %651 = vmatpush1.msra.mxu0 0.0
  %652 = vmatprep.subr.mxu0 0.0
  %653 = vmatpush1.msra.mxu0 0.0
  %654 = vmatprep.subr.mxu0 0.0
  %655 = vmatpush1.msra.mxu0 0.0
  %656 = vmatprep.subr.mxu0 0.0
  %657 = vmatpush1.msra.mxu0 0.0
  %658 = vmatprep.subr.mxu0 0.0
  %659 = vmatpush1.msra.mxu0 0.0
  %660 = vmatprep.subr.mxu0 0.0
  %661 = vmatpush1.msra.mxu0 0.0
  %662 = vmatprep.subr.mxu0 0.0
  %663 = vmatpush1.msra.mxu0 0.0
  %664 = vmatprep.subr.mxu0 0.0
  %665 = vmatpush1.msra.mxu0 0.0
  %666 = vmatprep.subr.mxu0 0.0
  %667 = vmatpush1.msra.mxu0 0.0
  %668 = vmatprep.subr.mxu0 0.0
  %669 = vmatpush1.msra.mxu0 0.0
  %670 = vmatprep.subr.mxu0 0.0
  %671 = vmatpush1.msra.mxu0 0.0
  %672 = vmatprep.subr.mxu0 0.0
  %673 = vmatpush1.msra.mxu0 0.0
  %674 = vmatprep.subr.mxu0 0.0
  %675 = vmatpush1.msra.mxu0 %v642
  %676 = vmatprep.subr.mxu0 0.0
  %677 = vmatpush2.msra.mxu0 0.0
  %678 = vmatprep.subr.mxu0 0.0
  %679 = vmatpush2.msra.mxu0 0.0
  %680 = vmatprep.subr.mxu0 0.0
  %681 = vmatpush2.msra.mxu0 0.0
  %682 = vmatprep.subr.mxu0 0.0
  %683 = vmatpush2.msra.mxu0 0.0
  %684 = vmatprep.subr.mxu0 0.0
  %685 = vmatpush2.msra.mxu0 0.0
  %686 = vmatprep.subr.mxu0 0.0
  %687 = vmatpush2.msra.mxu0 0.0
  %688 = vmatprep.subr.mxu0 0.0
  %689 = vmatpush2.msra.mxu0 0.0
  %690 = vmatprep.subr.mxu0 0.0
  %691 = vmatpush2.msra.mxu0 0.0
  %692 = vmatprep.subr.mxu0 0.0
  %693 = vmatpush2.msra.mxu0 0.0
  %694 = vmatprep.subr.mxu0 0.0
  %695 = vmatpush2.msra.mxu0 0.0
  %696 = vmatprep.subr.mxu0 0.0
  %697 = vmatpush2.msra.mxu0 0.0
  %698 = vmatprep.subr.mxu0 0.0
  %699 = vmatpush2.msra.mxu0 0.0
  %700 = vmatprep.subr.mxu0 0.0
  %701 = vmatpush2.msra.mxu0 0.0
  %702 = vmatprep.subr.mxu0 0.0
  %703 = vmatpush2.msra.mxu0 0.0
  %704 = vmatprep.subr.mxu0 0.0
  %705 = vmatpush2.msra.mxu0 0.0
  %706 = vmatprep.subr.mxu0 0.0
  %707 = vmatpush2.msra.mxu0 0.0
  %708 = vmatprep.mubr.f32.mxu0 0.0
  %709 = vmatmul.mubr.f32.gmra.mxu0 %v618
  %v710 = vpop.f32.mrf.mxu0
  %v711 = vadd.f32 0.0, %v710
  %v712 = vpop.f32.mrf.mxu0
  %713 = vmatprep.mubr.f32.mxu0 0.0
  %714 = vmatmul.mubr.f32.gmra.mxu0 %v621
  %v715 = vpop.f32.mrf.mxu0
  %v716 = vadd.f32 0.0, %v715
  %v717 = vpop.f32.mrf.mxu0
  %718 = vmatprep.mubr.f32.mxu0 0.0
  %719 = vmatmul.mubr.f32.gmra.mxu0 %v624
  %v720 = vpop.f32.mrf.mxu0
  %v721 = vadd.f32 0.0, %v720
  %v722 = vpop.f32.mrf.mxu0
  %723 = vmatprep.mubr.f32.mxu0 0.0
  %724 = vmatmul.mubr.f32.gmra.mxu0 %v627
  %v725 = vpop.f32.mrf.mxu0
  %v726 = vadd.f32 0.0, %v725
  %v727 = vpop.f32.mrf.mxu0
  %728 = vmatprep.mubr.f32.mxu0 0.0
  %729 = vmatmul.mubr.f32.gmra.mxu0 %v630
  %v730 = vpop.f32.mrf.mxu0
  %v731 = vadd.f32 0.0, %v730
  %v732 = vpop.f32.mrf.mxu0
  %733 = vmatprep.mubr.f32.mxu0 0.0
  %734 = vmatmul.mubr.f32.gmra.mxu0 %v633
  %v735 = vpop.f32.mrf.mxu0
  %v736 = vadd.f32 0.0, %v735
  %v737 = vpop.f32.mrf.mxu0
  %738 = vmatprep.mubr.f32.mxu0 0.0
  %739 = vmatmul.mubr.f32.gmra.mxu0 %v636
  %v740 = vpop.f32.mrf.mxu0
  %v741 = vadd.f32 0.0, %v740
  %v742 = vpop.f32.mrf.mxu0
  %743 = vmatprep.mubr.f32.mxu0 0.0
  %744 = vmatmul.mubr.f32.gmra.mxu0 %v639
  %v745 = vpop.f32.mrf.mxu0
  %v746 = vadd.f32 0.0, %v745
  %v747 = vpop.f32.mrf.mxu0
  %748 = vdwg.mxu0
  %v750 = vsel %vm616, %v408, 0
  %v753 = vsel %vm616, %v409, 0
  %v756 = vsel %vm616, %v410, 0
  %v759 = vsel %vm616, %v411, 0
  %v762 = vsel %vm616, %v412, 0
  %v765 = vsel %vm616, %v413, 0
  %v768 = vsel %vm616, %v414, 0
  %v771 = vsel %vm616, %v415, 0
  %v773 = vsel %vm641, %v348, 0
  %775 = vmatprep.subr.mxu0 0.0
  %776 = vmatpush1.msra.mxu0 0.0
  %777 = vmatprep.subr.mxu0 0.0
  %778 = vmatpush1.msra.mxu0 0.0
  %779 = vmatprep.subr.mxu0 0.0
  %780 = vmatpush1.msra.mxu0 0.0
  %781 = vmatprep.subr.mxu0 0.0
  %782 = vmatpush1.msra.mxu0 0.0
  %783 = vmatprep.subr.mxu0 0.0
  %784 = vmatpush1.msra.mxu0 0.0
  %785 = vmatprep.subr.mxu0 0.0
  %786 = vmatpush1.msra.mxu0 0.0
  %787 = vmatprep.subr.mxu0 0.0
  %788 = vmatpush1.msra.mxu0 0.0
  %789 = vmatprep.subr.mxu0 0.0
  %790 = vmatpush1.msra.mxu0 0.0
  %791 = vmatprep.subr.mxu0 0.0
  %792 = vmatpush1.msra.mxu0 0.0
  %793 = vmatprep.subr.mxu0 0.0
  %794 = vmatpush1.msra.mxu0 0.0
  %795 = vmatprep.subr.mxu0 0.0
  %796 = vmatpush1.msra.mxu0 0.0
  %797 = vmatprep.subr.mxu0 0.0
  %798 = vmatpush1.msra.mxu0 0.0
  %799 = vmatprep.subr.mxu0 0.0
  %800 = vmatpush1.msra.mxu0 0.0
  %801 = vmatprep.subr.mxu0 0.0
  %802 = vmatpush1.msra.mxu0 0.0
  %803 = vmatprep.subr.mxu0 0.0
  %804 = vmatpush1.msra.mxu0 0.0
  %805 = vmatprep.subr.mxu0 0.0
  %806 = vmatpush1.msra.mxu0 %v773
  %807 = vmatprep.subr.mxu0 0.0
  %808 = vmatpush2.msra.mxu0 0.0
  %809 = vmatprep.subr.mxu0 0.0
  %810 = vmatpush2.msra.mxu0 0.0
  %811 = vmatprep.subr.mxu0 0.0
  %812 = vmatpush2.msra.mxu0 0.0
  %813 = vmatprep.subr.mxu0 0.0
  %814 = vmatpush2.msra.mxu0 0.0
  %815 = vmatprep.subr.mxu0 0.0
  %816 = vmatpush2.msra.mxu0 0.0
  %817 = vmatprep.subr.mxu0 0.0
  %818 = vmatpush2.msra.mxu0 0.0
  %819 = vmatprep.subr.mxu0 0.0
  %820 = vmatpush2.msra.mxu0 0.0
  %821 = vmatprep.subr.mxu0 0.0
  %822 = vmatpush2.msra.mxu0 0.0
  %823 = vmatprep.subr.mxu0 0.0
  %824 = vmatpush2.msra.mxu0 0.0
  %825 = vmatprep.subr.mxu0 0.0
  %826 = vmatpush2.msra.mxu0 0.0
  %827 = vmatprep.subr.mxu0 0.0
  %828 = vmatpush2.msra.mxu0 0.0
  %829 = vmatprep.subr.mxu0 0.0
  %830 = vmatpush2.msra.mxu0 0.0
  %831 = vmatprep.subr.mxu0 0.0
  %832 = vmatpush2.msra.mxu0 0.0
  %833 = vmatprep.subr.mxu0 0.0
  %834 = vmatpush2.msra.mxu0 0.0
  %835 = vmatprep.subr.mxu0 0.0
  %836 = vmatpush2.msra.mxu0 0.0
  %837 = vmatprep.subr.mxu0 0.0
  %838 = vmatpush2.msra.mxu0 0.0
  %839 = vmatprep.mubr.f32.mxu0 0.0
  %840 = vmatmul.mubr.f32.gmra.mxu0 %v750
  %v841 = vpop.f32.mrf.mxu0
  %v842 = vadd.f32 0.0, %v841
  %v843 = vpop.f32.mrf.mxu0
  %844 = vmatprep.mubr.f32.mxu0 0.0
  %845 = vmatmul.mubr.f32.gmra.mxu0 %v753
  %v846 = vpop.f32.mrf.mxu0
  %v847 = vadd.f32 0.0, %v846
  %v848 = vpop.f32.mrf.mxu0
  %849 = vmatprep.mubr.f32.mxu0 0.0
  %850 = vmatmul.mubr.f32.gmra.mxu0 %v756
  %v851 = vpop.f32.mrf.mxu0
  %v852 = vadd.f32 0.0, %v851
  %v853 = vpop.f32.mrf.mxu0
  %854 = vmatprep.mubr.f32.mxu0 0.0
  %855 = vmatmul.mubr.f32.gmra.mxu0 %v759
  %v856 = vpop.f32.mrf.mxu0
  %v857 = vadd.f32 0.0, %v856
  %v858 = vpop.f32.mrf.mxu0
  %859 = vmatprep.mubr.f32.mxu0 0.0
  %860 = vmatmul.mubr.f32.gmra.mxu0 %v762
  %v861 = vpop.f32.mrf.mxu0
  %v862 = vadd.f32 0.0, %v861
  %v863 = vpop.f32.mrf.mxu0
  %864 = vmatprep.mubr.f32.mxu0 0.0
  %865 = vmatmul.mubr.f32.gmra.mxu0 %v765
  %v866 = vpop.f32.mrf.mxu0
  %v867 = vadd.f32 0.0, %v866
  %v868 = vpop.f32.mrf.mxu0
  %869 = vmatprep.mubr.f32.mxu0 0.0
  %870 = vmatmul.mubr.f32.gmra.mxu0 %v768
  %v871 = vpop.f32.mrf.mxu0
  %v872 = vadd.f32 0.0, %v871
  %v873 = vpop.f32.mrf.mxu0
  %874 = vmatprep.mubr.f32.mxu0 0.0
  %875 = vmatmul.mubr.f32.gmra.mxu0 %v771
  %v876 = vpop.f32.mrf.mxu0
  %v877 = vadd.f32 0.0, %v876
  %v878 = vpop.f32.mrf.mxu0
  %879 = vdwg.mxu0
  %v881 = vsel %vm616, %v440, 0
  %v884 = vsel %vm616, %v441, 0
  %v887 = vsel %vm616, %v442, 0
  %v890 = vsel %vm616, %v443, 0
  %v893 = vsel %vm616, %v444, 0
  %v896 = vsel %vm616, %v445, 0
  %v899 = vsel %vm616, %v446, 0
  %v902 = vsel %vm616, %v447, 0
  %v904 = vsel %vm641, %v299, 0
  %906 = vmatprep.subr.mxu0 0.0
  %907 = vmatpush1.msra.mxu0 0.0
  %908 = vmatprep.subr.mxu0 0.0
  %909 = vmatpush1.msra.mxu0 0.0
  %910 = vmatprep.subr.mxu0 0.0
  %911 = vmatpush1.msra.mxu0 0.0
  %912 = vmatprep.subr.mxu0 0.0
  %913 = vmatpush1.msra.mxu0 0.0
  %914 = vmatprep.subr.mxu0 0.0
  %915 = vmatpush1.msra.mxu0 0.0
  %916 = vmatprep.subr.mxu0 0.0
  %917 = vmatpush1.msra.mxu0 0.0
  %918 = vmatprep.subr.mxu0 0.0
  %919 = vmatpush1.msra.mxu0 0.0
  %920 = vmatprep.subr.mxu0 0.0
  %921 = vmatpush1.msra.mxu0 0.0
  %922 = vmatprep.subr.mxu0 0.0
  %923 = vmatpush1.msra.mxu0 0.0
  %924 = vmatprep.subr.mxu0 0.0
  %925 = vmatpush1.msra.mxu0 0.0
  %926 = vmatprep.subr.mxu0 0.0
  %927 = vmatpush1.msra.mxu0 0.0
  %928 = vmatprep.subr.mxu0 0.0
  %929 = vmatpush1.msra.mxu0 0.0
  %930 = vmatprep.subr.mxu0 0.0
  %931 = vmatpush1.msra.mxu0 0.0
  %932 = vmatprep.subr.mxu0 0.0
  %933 = vmatpush1.msra.mxu0 0.0
  %934 = vmatprep.subr.mxu0 0.0
  %935 = vmatpush1.msra.mxu0 0.0
  %936 = vmatprep.subr.mxu0 0.0
  %937 = vmatpush1.msra.mxu0 %v904
  %938 = vmatprep.subr.mxu0 0.0
  %939 = vmatpush2.msra.mxu0 0.0
  %940 = vmatprep.subr.mxu0 0.0
  %941 = vmatpush2.msra.mxu0 0.0
  %942 = vmatprep.subr.mxu0 0.0
  %943 = vmatpush2.msra.mxu0 0.0
  %944 = vmatprep.subr.mxu0 0.0
  %945 = vmatpush2.msra.mxu0 0.0
  %946 = vmatprep.subr.mxu0 0.0
  %947 = vmatpush2.msra.mxu0 0.0
  %948 = vmatprep.subr.mxu0 0.0
  %949 = vmatpush2.msra.mxu0 0.0
  %950 = vmatprep.subr.mxu0 0.0
  %951 = vmatpush2.msra.mxu0 0.0
  %952 = vmatprep.subr.mxu0 0.0
  %953 = vmatpush2.msra.mxu0 0.0
  %954 = vmatprep.subr.mxu0 0.0
  %955 = vmatpush2.msra.mxu0 0.0
  %956 = vmatprep.subr.mxu0 0.0
  %957 = vmatpush2.msra.mxu0 0.0
  %958 = vmatprep.subr.mxu0 0.0
  %959 = vmatpush2.msra.mxu0 0.0
  %960 = vmatprep.subr.mxu0 0.0
  %961 = vmatpush2.msra.mxu0 0.0
  %962 = vmatprep.subr.mxu0 0.0
  %963 = vmatpush2.msra.mxu0 0.0
  %964 = vmatprep.subr.mxu0 0.0
  %965 = vmatpush2.msra.mxu0 0.0
  %966 = vmatprep.subr.mxu0 0.0
  %967 = vmatpush2.msra.mxu0 0.0
  %968 = vmatprep.subr.mxu0 0.0
  %969 = vmatpush2.msra.mxu0 0.0
  %970 = vmatprep.mubr.f32.mxu0 0.0
  %971 = vmatmul.mubr.f32.gmra.mxu0 %v881
  %v972 = vpop.f32.mrf.mxu0
  %v973 = vadd.f32 0.0, %v972
  %v974 = vpop.f32.mrf.mxu0
  %975 = vmatprep.mubr.f32.mxu0 0.0
  %976 = vmatmul.mubr.f32.gmra.mxu0 %v884
  %v977 = vpop.f32.mrf.mxu0
  %v978 = vadd.f32 0.0, %v977
  %v979 = vpop.f32.mrf.mxu0
  %980 = vmatprep.mubr.f32.mxu0 0.0
  %981 = vmatmul.mubr.f32.gmra.mxu0 %v887
  %v982 = vpop.f32.mrf.mxu0
  %v983 = vadd.f32 0.0, %v982
  %v984 = vpop.f32.mrf.mxu0
  %985 = vmatprep.mubr.f32.mxu0 0.0
  %986 = vmatmul.mubr.f32.gmra.mxu0 %v890
  %v987 = vpop.f32.mrf.mxu0
  %v988 = vadd.f32 0.0, %v987
  %v989 = vpop.f32.mrf.mxu0
  %990 = vmatprep.mubr.f32.mxu0 0.0
  %991 = vmatmul.mubr.f32.gmra.mxu0 %v893
  %v992 = vpop.f32.mrf.mxu0
  %v993 = vadd.f32 0.0, %v992
  %v994 = vpop.f32.mrf.mxu0
  %995 = vmatprep.mubr.f32.mxu0 0.0
  %996 = vmatmul.mubr.f32.gmra.mxu0 %v896
  %v997 = vpop.f32.mrf.mxu0
  %v998 = vadd.f32 0.0, %v997
  %v999 = vpop.f32.mrf.mxu0
  %1000 = vmatprep.mubr.f32.mxu0 0.0
  %1001 = vmatmul.mubr.f32.gmra.mxu0 %v899
  %v1002 = vpop.f32.mrf.mxu0
  %v1003 = vadd.f32 0.0, %v1002
  %v1004 = vpop.f32.mrf.mxu0
  %1005 = vmatprep.mubr.f32.mxu0 0.0
  %1006 = vmatmul.mubr.f32.gmra.mxu0 %v902
  %v1007 = vpop.f32.mrf.mxu0
  %v1008 = vadd.f32 0.0, %v1007
  %v1009 = vpop.f32.mrf.mxu0
  %1010 = vdwg.mxu0
  %v1012 = vsel %vm616, %v472, 0
  %v1015 = vsel %vm616, %v473, 0
  %v1018 = vsel %vm616, %v474, 0
  %v1021 = vsel %vm616, %v475, 0
  %v1024 = vsel %vm616, %v476, 0
  %v1027 = vsel %vm616, %v477, 0
  %v1030 = vsel %vm616, %v478, 0
  %v1033 = vsel %vm616, %v479, 0
  %v1035 = vsel %vm641, %v349, 0
  %1037 = vmatprep.subr.mxu0 0.0
  %1038 = vmatpush1.msra.mxu0 0.0
  %1039 = vmatprep.subr.mxu0 0.0
  %1040 = vmatpush1.msra.mxu0 0.0
  %1041 = vmatprep.subr.mxu0 0.0
  %1042 = vmatpush1.msra.mxu0 0.0
  %1043 = vmatprep.subr.mxu0 0.0
  %1044 = vmatpush1.msra.mxu0 0.0
  %1045 = vmatprep.subr.mxu0 0.0
  %1046 = vmatpush1.msra.mxu0 0.0
  %1047 = vmatprep.subr.mxu0 0.0
  %1048 = vmatpush1.msra.mxu0 0.0
  %1049 = vmatprep.subr.mxu0 0.0
  %1050 = vmatpush1.msra.mxu0 0.0
  %1051 = vmatprep.subr.mxu0 0.0
  %1052 = vmatpush1.msra.mxu0 0.0
  %1053 = vmatprep.subr.mxu0 0.0
  %1054 = vmatpush1.msra.mxu0 0.0
  %1055 = vmatprep.subr.mxu0 0.0
  %1056 = vmatpush1.msra.mxu0 0.0
  %1057 = vmatprep.subr.mxu0 0.0
  %1058 = vmatpush1.msra.mxu0 0.0
  %1059 = vmatprep.subr.mxu0 0.0
  %1060 = vmatpush1.msra.mxu0 0.0
  %1061 = vmatprep.subr.mxu0 0.0
  %1062 = vmatpush1.msra.mxu0 0.0
  %1063 = vmatprep.subr.mxu0 0.0
  %1064 = vmatpush1.msra.mxu0 0.0
  %1065 = vmatprep.subr.mxu0 0.0
  %1066 = vmatpush1.msra.mxu0 0.0
  %1067 = vmatprep.subr.mxu0 0.0
  %1068 = vmatpush1.msra.mxu0 %v1035
  %1069 = vmatprep.subr.mxu0 0.0
  %1070 = vmatpush2.msra.mxu0 0.0
  %1071 = vmatprep.subr.mxu0 0.0
  %1072 = vmatpush2.msra.mxu0 0.0
  %1073 = vmatprep.subr.mxu0 0.0
  %1074 = vmatpush2.msra.mxu0 0.0
  %1075 = vmatprep.subr.mxu0 0.0
  %1076 = vmatpush2.msra.mxu0 0.0
  %1077 = vmatprep.subr.mxu0 0.0
  %1078 = vmatpush2.msra.mxu0 0.0
  %1079 = vmatprep.subr.mxu0 0.0
  %1080 = vmatpush2.msra.mxu0 0.0
  %1081 = vmatprep.subr.mxu0 0.0
  %1082 = vmatpush2.msra.mxu0 0.0
  %1083 = vmatprep.subr.mxu0 0.0
  %1084 = vmatpush2.msra.mxu0 0.0
  %1085 = vmatprep.subr.mxu0 0.0
  %1086 = vmatpush2.msra.mxu0 0.0
  %1087 = vmatprep.subr.mxu0 0.0
  %1088 = vmatpush2.msra.mxu0 0.0
  %1089 = vmatprep.subr.mxu0 0.0
  %1090 = vmatpush2.msra.mxu0 0.0
  %1091 = vmatprep.subr.mxu0 0.0
  %1092 = vmatpush2.msra.mxu0 0.0
  %1093 = vmatprep.subr.mxu0 0.0
  %1094 = vmatpush2.msra.mxu0 0.0
  %1095 = vmatprep.subr.mxu0 0.0
  %1096 = vmatpush2.msra.mxu0 0.0
  %1097 = vmatprep.subr.mxu0 0.0
  %1098 = vmatpush2.msra.mxu0 0.0
  %1099 = vmatprep.subr.mxu0 0.0
  %1100 = vmatpush2.msra.mxu0 0.0
  %1101 = vmatprep.mubr.f32.mxu0 0.0
  %1102 = vmatmul.mubr.f32.gmra.mxu0 %v1012
  %v1103 = vpop.f32.mrf.mxu0
  %v1104 = vadd.f32 0.0, %v1103
  %v1105 = vpop.f32.mrf.mxu0
  %1106 = vmatprep.mubr.f32.mxu0 0.0
  %1107 = vmatmul.mubr.f32.gmra.mxu0 %v1015
  %v1108 = vpop.f32.mrf.mxu0
  %v1109 = vadd.f32 0.0, %v1108
  %v1110 = vpop.f32.mrf.mxu0
  %1111 = vmatprep.mubr.f32.mxu0 0.0
  %1112 = vmatmul.mubr.f32.gmra.mxu0 %v1018
  %v1113 = vpop.f32.mrf.mxu0
  %v1114 = vadd.f32 0.0, %v1113
  %v1115 = vpop.f32.mrf.mxu0
  %1116 = vmatprep.mubr.f32.mxu0 0.0
  %1117 = vmatmul.mubr.f32.gmra.mxu0 %v1021
  %v1118 = vpop.f32.mrf.mxu0
  %v1119 = vadd.f32 0.0, %v1118
  %v1120 = vpop.f32.mrf.mxu0
  %1121 = vmatprep.mubr.f32.mxu0 0.0
  %1122 = vmatmul.mubr.f32.gmra.mxu0 %v1024
  %v1123 = vpop.f32.mrf.mxu0
  %v1124 = vadd.f32 0.0, %v1123
  %v1125 = vpop.f32.mrf.mxu0
  %1126 = vmatprep.mubr.f32.mxu0 0.0
  %1127 = vmatmul.mubr.f32.gmra.mxu0 %v1027
  %v1128 = vpop.f32.mrf.mxu0
  %v1129 = vadd.f32 0.0, %v1128
  %v1130 = vpop.f32.mrf.mxu0
  %1131 = vmatprep.mubr.f32.mxu0 0.0
  %1132 = vmatmul.mubr.f32.gmra.mxu0 %v1030
  %v1133 = vpop.f32.mrf.mxu0
  %v1134 = vadd.f32 0.0, %v1133
  %v1135 = vpop.f32.mrf.mxu0
  %1136 = vmatprep.mubr.f32.mxu0 0.0
  %1137 = vmatmul.mubr.f32.gmra.mxu0 %v1033
  %v1138 = vpop.f32.mrf.mxu0
  %v1139 = vadd.f32 0.0, %v1138
  %v1140 = vpop.f32.mrf.mxu0
  %1141 = vdwg.mxu0
  %v1143 = vsel %vm616, %v504, 0
  %v1146 = vsel %vm616, %v505, 0
  %v1149 = vsel %vm616, %v506, 0
  %v1152 = vsel %vm616, %v507, 0
  %v1155 = vsel %vm616, %v508, 0
  %v1158 = vsel %vm616, %v509, 0
  %v1161 = vsel %vm616, %v510, 0
  %v1164 = vsel %vm616, %v511, 0
  %v1166 = vsel %vm641, %v304, 0
  %1168 = vmatprep.subr.mxu0 0.0
  %1169 = vmatpush1.msra.mxu0 0.0
  %1170 = vmatprep.subr.mxu0 0.0
  %1171 = vmatpush1.msra.mxu0 0.0
  %1172 = vmatprep.subr.mxu0 0.0
  %1173 = vmatpush1.msra.mxu0 0.0
  %1174 = vmatprep.subr.mxu0 0.0
  %1175 = vmatpush1.msra.mxu0 0.0
  %1176 = vmatprep.subr.mxu0 0.0
  %1177 = vmatpush1.msra.mxu0 0.0
  %1178 = vmatprep.subr.mxu0 0.0
  %1179 = vmatpush1.msra.mxu0 0.0
  %1180 = vmatprep.subr.mxu0 0.0
  %1181 = vmatpush1.msra.mxu0 0.0
  %1182 = vmatprep.subr.mxu0 0.0
  %1183 = vmatpush1.msra.mxu0 0.0
  %1184 = vmatprep.subr.mxu0 0.0
  %1185 = vmatpush1.msra.mxu0 0.0
  %1186 = vmatprep.subr.mxu0 0.0
  %1187 = vmatpush1.msra.mxu0 0.0
  %1188 = vmatprep.subr.mxu0 0.0
  %1189 = vmatpush1.msra.mxu0 0.0
  %1190 = vmatprep.subr.mxu0 0.0
  %1191 = vmatpush1.msra.mxu0 0.0
  %1192 = vmatprep.subr.mxu0 0.0
  %1193 = vmatpush1.msra.mxu0 0.0
  %1194 = vmatprep.subr.mxu0 0.0
  %1195 = vmatpush1.msra.mxu0 0.0
  %1196 = vmatprep.subr.mxu0 0.0
  %1197 = vmatpush1.msra.mxu0 0.0
  %1198 = vmatprep.subr.mxu0 0.0
  %1199 = vmatpush1.msra.mxu0 %v1166
  %1200 = vmatprep.subr.mxu0 0.0
  %1201 = vmatpush2.msra.mxu0 0.0
  %1202 = vmatprep.subr.mxu0 0.0
  %1203 = vmatpush2.msra.mxu0 0.0
  %1204 = vmatprep.subr.mxu0 0.0
  %1205 = vmatpush2.msra.mxu0 0.0
  %1206 = vmatprep.subr.mxu0 0.0
  %1207 = vmatpush2.msra.mxu0 0.0
  %1208 = vmatprep.subr.mxu0 0.0
  %1209 = vmatpush2.msra.mxu0 0.0
  %1210 = vmatprep.subr.mxu0 0.0
  %1211 = vmatpush2.msra.mxu0 0.0
  %1212 = vmatprep.subr.mxu0 0.0
  %1213 = vmatpush2.msra.mxu0 0.0
  %1214 = vmatprep.subr.mxu0 0.0
  %1215 = vmatpush2.msra.mxu0 0.0
  %1216 = vmatprep.subr.mxu0 0.0
  %1217 = vmatpush2.msra.mxu0 0.0
  %1218 = vmatprep.subr.mxu0 0.0
  %1219 = vmatpush2.msra.mxu0 0.0
  %1220 = vmatprep.subr.mxu0 0.0
  %1221 = vmatpush2.msra.mxu0 0.0
  %1222 = vmatprep.subr.mxu0 0.0
  %1223 = vmatpush2.msra.mxu0 0.0
  %1224 = vmatprep.subr.mxu0 0.0
  %1225 = vmatpush2.msra.mxu0 0.0
  %1226 = vmatprep.subr.mxu0 0.0
  %1227 = vmatpush2.msra.mxu0 0.0
  %1228 = vmatprep.subr.mxu0 0.0
  %1229 = vmatpush2.msra.mxu0 0.0
  %1230 = vmatprep.subr.mxu0 0.0
  %1231 = vmatpush2.msra.mxu0 0.0
  %1232 = vmatprep.mubr.f32.mxu0 0.0
  %1233 = vmatmul.mubr.f32.gmra.mxu0 %v1143
  %v1234 = vpop.f32.mrf.mxu0
  %v1235 = vadd.f32 0.0, %v1234
  %v1236 = vpop.f32.mrf.mxu0
  %1237 = vmatprep.mubr.f32.mxu0 0.0
  %1238 = vmatmul.mubr.f32.gmra.mxu0 %v1146
  %v1239 = vpop.f32.mrf.mxu0
  %v1240 = vadd.f32 0.0, %v1239
  %v1241 = vpop.f32.mrf.mxu0
  %1242 = vmatprep.mubr.f32.mxu0 0.0
  %1243 = vmatmul.mubr.f32.gmra.mxu0 %v1149
  %v1244 = vpop.f32.mrf.mxu0
  %v1245 = vadd.f32 0.0, %v1244
  %v1246 = vpop.f32.mrf.mxu0
  %1247 = vmatprep.mubr.f32.mxu0 0.0
  %1248 = vmatmul.mubr.f32.gmra.mxu0 %v1152
  %v1249 = vpop.f32.mrf.mxu0
  %v1250 = vadd.f32 0.0, %v1249
  %v1251 = vpop.f32.mrf.mxu0
  %1252 = vmatprep.mubr.f32.mxu0 0.0
  %1253 = vmatmul.mubr.f32.gmra.mxu0 %v1155
  %v1254 = vpop.f32.mrf.mxu0
  %v1255 = vadd.f32 0.0, %v1254
  %v1256 = vpop.f32.mrf.mxu0
  %1257 = vmatprep.mubr.f32.mxu0 0.0
  %1258 = vmatmul.mubr.f32.gmra.mxu0 %v1158
  %v1259 = vpop.f32.mrf.mxu0
  %v1260 = vadd.f32 0.0, %v1259
  %v1261 = vpop.f32.mrf.mxu0
  %1262 = vmatprep.mubr.f32.mxu0 0.0
  %1263 = vmatmul.mubr.f32.gmra.mxu0 %v1161
  %v1264 = vpop.f32.mrf.mxu0
  %v1265 = vadd.f32 0.0, %v1264
  %v1266 = vpop.f32.mrf.mxu0
  %1267 = vmatprep.mubr.f32.mxu0 0.0
  %1268 = vmatmul.mubr.f32.gmra.mxu0 %v1164
  %v1269 = vpop.f32.mrf.mxu0
  %v1270 = vadd.f32 0.0, %v1269
  %v1271 = vpop.f32.mrf.mxu0
  %1272 = vdwg.mxu0
  %v1274 = vsel %vm616, %v536, 0
  %v1277 = vsel %vm616, %v537, 0
  %v1280 = vsel %vm616, %v538, 0
  %v1283 = vsel %vm616, %v539, 0
  %v1286 = vsel %vm616, %v540, 0
  %v1289 = vsel %vm616, %v541, 0
  %v1292 = vsel %vm616, %v542, 0
  %v1295 = vsel %vm616, %v543, 0
  %v1297 = vsel %vm641, %v350, 0
  %1299 = vmatprep.subr.mxu0 0.0
  %1300 = vmatpush1.msra.mxu0 0.0
  %1301 = vmatprep.subr.mxu0 0.0
  %1302 = vmatpush1.msra.mxu0 0.0
  %1303 = vmatprep.subr.mxu0 0.0
  %1304 = vmatpush1.msra.mxu0 0.0
  %1305 = vmatprep.subr.mxu0 0.0
  %1306 = vmatpush1.msra.mxu0 0.0
  %1307 = vmatprep.subr.mxu0 0.0
  %1308 = vmatpush1.msra.mxu0 0.0
  %1309 = vmatprep.subr.mxu0 0.0
  %1310 = vmatpush1.msra.mxu0 0.0
  %1311 = vmatprep.subr.mxu0 0.0
  %1312 = vmatpush1.msra.mxu0 0.0
  %1313 = vmatprep.subr.mxu0 0.0
  %1314 = vmatpush1.msra.mxu0 0.0
  %1315 = vmatprep.subr.mxu0 0.0
  %1316 = vmatpush1.msra.mxu0 0.0
  %1317 = vmatprep.subr.mxu0 0.0
  %1318 = vmatpush1.msra.mxu0 0.0
  %1319 = vmatprep.subr.mxu0 0.0
  %1320 = vmatpush1.msra.mxu0 0.0
  %1321 = vmatprep.subr.mxu0 0.0
  %1322 = vmatpush1.msra.mxu0 0.0
  %1323 = vmatprep.subr.mxu0 0.0
  %1324 = vmatpush1.msra.mxu0 0.0
  %1325 = vmatprep.subr.mxu0 0.0
  %1326 = vmatpush1.msra.mxu0 0.0
  %1327 = vmatprep.subr.mxu0 0.0
  %1328 = vmatpush1.msra.mxu0 0.0
  %1329 = vmatprep.subr.mxu0 0.0
  %1330 = vmatpush1.msra.mxu0 %v1297
  %1331 = vmatprep.subr.mxu0 0.0
  %1332 = vmatpush2.msra.mxu0 0.0
  %1333 = vmatprep.subr.mxu0 0.0
  %1334 = vmatpush2.msra.mxu0 0.0
  %1335 = vmatprep.subr.mxu0 0.0
  %1336 = vmatpush2.msra.mxu0 0.0
  %1337 = vmatprep.subr.mxu0 0.0
  %1338 = vmatpush2.msra.mxu0 0.0
  %1339 = vmatprep.subr.mxu0 0.0
  %1340 = vmatpush2.msra.mxu0 0.0
  %1341 = vmatprep.subr.mxu0 0.0
  %1342 = vmatpush2.msra.mxu0 0.0
  %1343 = vmatprep.subr.mxu0 0.0
  %1344 = vmatpush2.msra.mxu0 0.0
  %1345 = vmatprep.subr.mxu0 0.0
  %1346 = vmatpush2.msra.mxu0 0.0
  %1347 = vmatprep.subr.mxu0 0.0
  %1348 = vmatpush2.msra.mxu0 0.0
  %1349 = vmatprep.subr.mxu0 0.0
  %1350 = vmatpush2.msra.mxu0 0.0
  %1351 = vmatprep.subr.mxu0 0.0
  %1352 = vmatpush2.msra.mxu0 0.0
  %1353 = vmatprep.subr.mxu0 0.0
  %1354 = vmatpush2.msra.mxu0 0.0
  %1355 = vmatprep.subr.mxu0 0.0
  %1356 = vmatpush2.msra.mxu0 0.0
  %1357 = vmatprep.subr.mxu0 0.0
  %1358 = vmatpush2.msra.mxu0 0.0
  %1359 = vmatprep.subr.mxu0 0.0
  %1360 = vmatpush2.msra.mxu0 0.0
  %1361 = vmatprep.subr.mxu0 0.0
  %1362 = vmatpush2.msra.mxu0 0.0
  %1363 = vmatprep.mubr.f32.mxu0 0.0
  %1364 = vmatmul.mubr.f32.gmra.mxu0 %v1274
  %v1365 = vpop.f32.mrf.mxu0
  %v1366 = vadd.f32 0.0, %v1365
  %v1367 = vpop.f32.mrf.mxu0
  %1368 = vmatprep.mubr.f32.mxu0 0.0
  %1369 = vmatmul.mubr.f32.gmra.mxu0 %v1277
  %v1370 = vpop.f32.mrf.mxu0
  %v1371 = vadd.f32 0.0, %v1370
  %v1372 = vpop.f32.mrf.mxu0
  %1373 = vmatprep.mubr.f32.mxu0 0.0
  %1374 = vmatmul.mubr.f32.gmra.mxu0 %v1280
  %v1375 = vpop.f32.mrf.mxu0
  %v1376 = vadd.f32 0.0, %v1375
  %v1377 = vpop.f32.mrf.mxu0
  %1378 = vmatprep.mubr.f32.mxu0 0.0
  %1379 = vmatmul.mubr.f32.gmra.mxu0 %v1283
  %v1380 = vpop.f32.mrf.mxu0
  %v1381 = vadd.f32 0.0, %v1380
  %v1382 = vpop.f32.mrf.mxu0
  %1383 = vmatprep.mubr.f32.mxu0 0.0
  %1384 = vmatmul.mubr.f32.gmra.mxu0 %v1286
  %v1385 = vpop.f32.mrf.mxu0
  %v1386 = vadd.f32 0.0, %v1385
  %v1387 = vpop.f32.mrf.mxu0
  %1388 = vmatprep.mubr.f32.mxu0 0.0
  %1389 = vmatmul.mubr.f32.gmra.mxu0 %v1289
  %v1390 = vpop.f32.mrf.mxu0
  %v1391 = vadd.f32 0.0, %v1390
  %v1392 = vpop.f32.mrf.mxu0
  %1393 = vmatprep.mubr.f32.mxu0 0.0
  %1394 = vmatmul.mubr.f32.gmra.mxu0 %v1292
  %v1395 = vpop.f32.mrf.mxu0
  %v1396 = vadd.f32 0.0, %v1395
  %v1397 = vpop.f32.mrf.mxu0
  %1398 = vmatprep.mubr.f32.mxu0 0.0
  %1399 = vmatmul.mubr.f32.gmra.mxu0 %v1295
  %v1400 = vpop.f32.mrf.mxu0
  %v1401 = vadd.f32 0.0, %v1400
  %v1402 = vpop.f32.mrf.mxu0
  %1403 = vdwg.mxu0
  %v1405 = vsel %vm616, %v568, 0
  %v1408 = vsel %vm616, %v569, 0
  %v1411 = vsel %vm616, %v570, 0
  %v1414 = vsel %vm616, %v571, 0
  %v1417 = vsel %vm616, %v572, 0
  %v1420 = vsel %vm616, %v573, 0
  %v1423 = vsel %vm616, %v574, 0
  %v1426 = vsel %vm616, %v575, 0
  %v1428 = vsel %vm641, %v309, 0
  %1430 = vmatprep.subr.mxu0 0.0
  %1431 = vmatpush1.msra.mxu0 0.0
  %1432 = vmatprep.subr.mxu0 0.0
  %1433 = vmatpush1.msra.mxu0 0.0
  %1434 = vmatprep.subr.mxu0 0.0
  %1435 = vmatpush1.msra.mxu0 0.0
  %1436 = vmatprep.subr.mxu0 0.0
  %1437 = vmatpush1.msra.mxu0 0.0
  %1438 = vmatprep.subr.mxu0 0.0
  %1439 = vmatpush1.msra.mxu0 0.0
  %1440 = vmatprep.subr.mxu0 0.0
  %1441 = vmatpush1.msra.mxu0 0.0
  %1442 = vmatprep.subr.mxu0 0.0
  %1443 = vmatpush1.msra.mxu0 0.0
  %1444 = vmatprep.subr.mxu0 0.0
  %1445 = vmatpush1.msra.mxu0 0.0
  %1446 = vmatprep.subr.mxu0 0.0
  %1447 = vmatpush1.msra.mxu0 0.0
  %1448 = vmatprep.subr.mxu0 0.0
  %1449 = vmatpush1.msra.mxu0 0.0
  %1450 = vmatprep.subr.mxu0 0.0
  %1451 = vmatpush1.msra.mxu0 0.0
  %1452 = vmatprep.subr.mxu0 0.0
  %1453 = vmatpush1.msra.mxu0 0.0
  %1454 = vmatprep.subr.mxu0 0.0
  %1455 = vmatpush1.msra.mxu0 0.0
  %1456 = vmatprep.subr.mxu0 0.0
  %1457 = vmatpush1.msra.mxu0 0.0
  %1458 = vmatprep.subr.mxu0 0.0
  %1459 = vmatpush1.msra.mxu0 0.0
  %1460 = vmatprep.subr.mxu0 0.0
  %1461 = vmatpush1.msra.mxu0 %v1428
  %1462 = vmatprep.subr.mxu0 0.0
  %1463 = vmatpush2.msra.mxu0 0.0
  %1464 = vmatprep.subr.mxu0 0.0
  %1465 = vmatpush2.msra.mxu0 0.0
  %1466 = vmatprep.subr.mxu0 0.0
  %1467 = vmatpush2.msra.mxu0 0.0
  %1468 = vmatprep.subr.mxu0 0.0
  %1469 = vmatpush2.msra.mxu0 0.0
  %1470 = vmatprep.subr.mxu0 0.0
  %1471 = vmatpush2.msra.mxu0 0.0
  %1472 = vmatprep.subr.mxu0 0.0
  %1473 = vmatpush2.msra.mxu0 0.0
  %1474 = vmatprep.subr.mxu0 0.0
  %1475 = vmatpush2.msra.mxu0 0.0
  %1476 = vmatprep.subr.mxu0 0.0
  %1477 = vmatpush2.msra.mxu0 0.0
  %1478 = vmatprep.subr.mxu0 0.0
  %1479 = vmatpush2.msra.mxu0 0.0
  %1480 = vmatprep.subr.mxu0 0.0
  %1481 = vmatpush2.msra.mxu0 0.0
  %1482 = vmatprep.subr.mxu0 0.0
  %1483 = vmatpush2.msra.mxu0 0.0
  %1484 = vmatprep.subr.mxu0 0.0
  %1485 = vmatpush2.msra.mxu0 0.0
  %1486 = vmatprep.subr.mxu0 0.0
  %1487 = vmatpush2.msra.mxu0 0.0
  %1488 = vmatprep.subr.mxu0 0.0
  %1489 = vmatpush2.msra.mxu0 0.0
  %1490 = vmatprep.subr.mxu0 0.0
  %1491 = vmatpush2.msra.mxu0 0.0
  %1492 = vmatprep.subr.mxu0 0.0
  %1493 = vmatpush2.msra.mxu0 0.0
  %1494 = vmatprep.mubr.f32.mxu0 0.0
  %1495 = vmatmul.mubr.f32.gmra.mxu0 %v1405
  %v1496 = vpop.f32.mrf.mxu0
  %v1497 = vadd.f32 0.0, %v1496
  %v1498 = vpop.f32.mrf.mxu0
  %1499 = vmatprep.mubr.f32.mxu0 0.0
  %1500 = vmatmul.mubr.f32.gmra.mxu0 %v1408
  %v1501 = vpop.f32.mrf.mxu0
  %v1502 = vadd.f32 0.0, %v1501
  %v1503 = vpop.f32.mrf.mxu0
  %1504 = vmatprep.mubr.f32.mxu0 0.0
  %1505 = vmatmul.mubr.f32.gmra.mxu0 %v1411
  %v1506 = vpop.f32.mrf.mxu0
  %v1507 = vadd.f32 0.0, %v1506
  %v1508 = vpop.f32.mrf.mxu0
  %1509 = vmatprep.mubr.f32.mxu0 0.0
  %1510 = vmatmul.mubr.f32.gmra.mxu0 %v1414
  %v1511 = vpop.f32.mrf.mxu0
  %v1512 = vadd.f32 0.0, %v1511
  %v1513 = vpop.f32.mrf.mxu0
  %1514 = vmatprep.mubr.f32.mxu0 0.0
  %1515 = vmatmul.mubr.f32.gmra.mxu0 %v1417
  %v1516 = vpop.f32.mrf.mxu0
  %v1517 = vadd.f32 0.0, %v1516
  %v1518 = vpop.f32.mrf.mxu0
  %1519 = vmatprep.mubr.f32.mxu0 0.0
  %1520 = vmatmul.mubr.f32.gmra.mxu0 %v1420
  %v1521 = vpop.f32.mrf.mxu0
  %v1522 = vadd.f32 0.0, %v1521
  %v1523 = vpop.f32.mrf.mxu0
  %1524 = vmatprep.mubr.f32.mxu0 0.0
  %1525 = vmatmul.mubr.f32.gmra.mxu0 %v1423
  %v1526 = vpop.f32.mrf.mxu0
  %v1527 = vadd.f32 0.0, %v1526
  %v1528 = vpop.f32.mrf.mxu0
  %1529 = vmatprep.mubr.f32.mxu0 0.0
  %1530 = vmatmul.mubr.f32.gmra.mxu0 %v1426
  %v1531 = vpop.f32.mrf.mxu0
  %v1532 = vadd.f32 0.0, %v1531
  %v1533 = vpop.f32.mrf.mxu0
  %1534 = vdwg.mxu0
  %v1536 = vsel %vm616, %v600, 0
  %v1539 = vsel %vm616, %v601, 0
  %v1542 = vsel %vm616, %v602, 0
  %v1545 = vsel %vm616, %v603, 0
  %v1548 = vsel %vm616, %v604, 0
  %v1551 = vsel %vm616, %v605, 0
  %v1554 = vsel %vm616, %v606, 0
  %v1557 = vsel %vm616, %v607, 0
  %v1559 = vsel %vm641, %v351, 0
  %1561 = vmatprep.subr.mxu0 0.0
  %1562 = vmatpush1.msra.mxu0 0.0
  %1563 = vmatprep.subr.mxu0 0.0
  %1564 = vmatpush1.msra.mxu0 0.0
  %1565 = vmatprep.subr.mxu0 0.0
  %1566 = vmatpush1.msra.mxu0 0.0
  %1567 = vmatprep.subr.mxu0 0.0
  %1568 = vmatpush1.msra.mxu0 0.0
  %1569 = vmatprep.subr.mxu0 0.0
  %1570 = vmatpush1.msra.mxu0 0.0
  %1571 = vmatprep.subr.mxu0 0.0
  %1572 = vmatpush1.msra.mxu0 0.0
  %1573 = vmatprep.subr.mxu0 0.0
  %1574 = vmatpush1.msra.mxu0 0.0
  %1575 = vmatprep.subr.mxu0 0.0
  %1576 = vmatpush1.msra.mxu0 0.0
  %1577 = vmatprep.subr.mxu0 0.0
  %1578 = vmatpush1.msra.mxu0 0.0
  %1579 = vmatprep.subr.mxu0 0.0
  %1580 = vmatpush1.msra.mxu0 0.0
  %1581 = vmatprep.subr.mxu0 0.0
  %1582 = vmatpush1.msra.mxu0 0.0
  %1583 = vmatprep.subr.mxu0 0.0
  %1584 = vmatpush1.msra.mxu0 0.0
  %1585 = vmatprep.subr.mxu0 0.0
  %1586 = vmatpush1.msra.mxu0 0.0
  %1587 = vmatprep.subr.mxu0 0.0
  %1588 = vmatpush1.msra.mxu0 0.0
  %1589 = vmatprep.subr.mxu0 0.0
  %1590 = vmatpush1.msra.mxu0 0.0
  %1591 = vmatprep.subr.mxu0 0.0
  %1592 = vmatpush1.msra.mxu0 %v1559
  %1593 = vmatprep.subr.mxu0 0.0
  %1594 = vmatpush2.msra.mxu0 0.0
  %1595 = vmatprep.subr.mxu0 0.0
  %1596 = vmatpush2.msra.mxu0 0.0
  %1597 = vmatprep.subr.mxu0 0.0
  %1598 = vmatpush2.msra.mxu0 0.0
  %1599 = vmatprep.subr.mxu0 0.0
  %1600 = vmatpush2.msra.mxu0 0.0
  %1601 = vmatprep.subr.mxu0 0.0
  %1602 = vmatpush2.msra.mxu0 0.0
  %1603 = vmatprep.subr.mxu0 0.0
  %1604 = vmatpush2.msra.mxu0 0.0
  %1605 = vmatprep.subr.mxu0 0.0
  %1606 = vmatpush2.msra.mxu0 0.0
  %1607 = vmatprep.subr.mxu0 0.0
  %1608 = vmatpush2.msra.mxu0 0.0
  %1609 = vmatprep.subr.mxu0 0.0
  %1610 = vmatpush2.msra.mxu0 0.0
  %1611 = vmatprep.subr.mxu0 0.0
  %1612 = vmatpush2.msra.mxu0 0.0
  %1613 = vmatprep.subr.mxu0 0.0
  %1614 = vmatpush2.msra.mxu0 0.0
  %1615 = vmatprep.subr.mxu0 0.0
  %1616 = vmatpush2.msra.mxu0 0.0
  %1617 = vmatprep.subr.mxu0 0.0
  %1618 = vmatpush2.msra.mxu0 0.0
  %1619 = vmatprep.subr.mxu0 0.0
  %1620 = vmatpush2.msra.mxu0 0.0
  %1621 = vmatprep.subr.mxu0 0.0
  %1622 = vmatpush2.msra.mxu0 0.0
  %1623 = vmatprep.subr.mxu0 0.0
  %1624 = vmatpush2.msra.mxu0 0.0
  %1625 = vmatprep.mubr.f32.mxu0 0.0
  %1626 = vmatmul.mubr.f32.gmra.mxu0 %v1536
  %v1627 = vpop.f32.mrf.mxu0
  %v1628 = vadd.f32 0.0, %v1627
  %v1629 = vpop.f32.mrf.mxu0
  %1630 = vmatprep.mubr.f32.mxu0 0.0
  %1631 = vmatmul.mubr.f32.gmra.mxu0 %v1539
  %v1632 = vpop.f32.mrf.mxu0
  %v1633 = vadd.f32 0.0, %v1632
  %v1634 = vpop.f32.mrf.mxu0
  %1635 = vmatprep.mubr.f32.mxu0 0.0
  %1636 = vmatmul.mubr.f32.gmra.mxu0 %v1542
  %v1637 = vpop.f32.mrf.mxu0
  %v1638 = vadd.f32 0.0, %v1637
  %v1639 = vpop.f32.mrf.mxu0
  %1640 = vmatprep.mubr.f32.mxu0 0.0
  %1641 = vmatmul.mubr.f32.gmra.mxu0 %v1545
  %v1642 = vpop.f32.mrf.mxu0
  %v1643 = vadd.f32 0.0, %v1642
  %v1644 = vpop.f32.mrf.mxu0
  %1645 = vmatprep.mubr.f32.mxu0 0.0
  %1646 = vmatmul.mubr.f32.gmra.mxu0 %v1548
  %v1647 = vpop.f32.mrf.mxu0
  %v1648 = vadd.f32 0.0, %v1647
  %v1649 = vpop.f32.mrf.mxu0
  %1650 = vmatprep.mubr.f32.mxu0 0.0
  %1651 = vmatmul.mubr.f32.gmra.mxu0 %v1551
  %v1652 = vpop.f32.mrf.mxu0
  %v1653 = vadd.f32 0.0, %v1652
  %v1654 = vpop.f32.mrf.mxu0
  %1655 = vmatprep.mubr.f32.mxu0 0.0
  %1656 = vmatmul.mubr.f32.gmra.mxu0 %v1554
  %v1657 = vpop.f32.mrf.mxu0
  %v1658 = vadd.f32 0.0, %v1657
  %v1659 = vpop.f32.mrf.mxu0
  %1660 = vmatprep.mubr.f32.mxu0 0.0
  %1661 = vmatmul.mubr.f32.gmra.mxu0 %v1557
  %v1662 = vpop.f32.mrf.mxu0
  %v1663 = vadd.f32 0.0, %v1662
  %v1664 = vpop.f32.mrf.mxu0
  %1665 = vdwg.mxu0
  %vm1666 = vcmask 523264
  %v1667 = vsel %vm1666, %v711, -inf
  %1668 = vmax.xlane.f32.xlu0 %v1667
  %v1669 = vpop.xlane.xlu0 %1668
  %v1670 = vsel %vm1666, %v716, -inf
  %1671 = vmax.xlane.f32.xlu0 %v1670
  %v1672 = vpop.xlane.xlu0 %1671
  %v1673 = vsel %vm1666, %v721, -inf
  %1674 = vmax.xlane.f32.xlu0 %v1673
  %v1675 = vpop.xlane.xlu0 %1674
  %v1676 = vsel %vm1666, %v726, -inf
  %1677 = vmax.xlane.f32.xlu0 %v1676
  %v1678 = vpop.xlane.xlu0 %1677
  %v1679 = vsel %vm1666, %v731, -inf
  %1680 = vmax.xlane.f32.xlu0 %v1679
  %v1681 = vpop.xlane.xlu0 %1680
  %v1682 = vsel %vm1666, %v736, -inf
  %1683 = vmax.xlane.f32.xlu0 %v1682
  %v1684 = vpop.xlane.xlu0 %1683
  %v1685 = vsel %vm1666, %v741, -inf
  %1686 = vmax.xlane.f32.xlu0 %v1685
  %v1687 = vpop.xlane.xlu0 %1686
  %v1688 = vsel %vm1666, %v746, -inf
  %1689 = vmax.xlane.f32.xlu0 %v1688
  %v1690 = vpop.xlane.xlu0 %1689
  %v1691 = vsel %vm1666, %v842, -inf
  %1692 = vmax.xlane.f32.xlu0 %v1691
  %v1693 = vpop.xlane.xlu0 %1692
  %v1694 = vsel %vm1666, %v847, -inf
  %1695 = vmax.xlane.f32.xlu0 %v1694
  %v1696 = vpop.xlane.xlu0 %1695
  %v1697 = vsel %vm1666, %v852, -inf
  %1698 = vmax.xlane.f32.xlu0 %v1697
  %v1699 = vpop.xlane.xlu0 %1698
  %v1700 = vsel %vm1666, %v857, -inf
  %1701 = vmax.xlane.f32.xlu0 %v1700
  %v1702 = vpop.xlane.xlu0 %1701
  %v1703 = vsel %vm1666, %v862, -inf
  %1704 = vmax.xlane.f32.xlu0 %v1703
  %v1705 = vpop.xlane.xlu0 %1704
  %v1706 = vsel %vm1666, %v867, -inf
  %1707 = vmax.xlane.f32.xlu0 %v1706
  %v1708 = vpop.xlane.xlu0 %1707
  %v1709 = vsel %vm1666, %v872, -inf
  %1710 = vmax.xlane.f32.xlu0 %v1709
  %v1711 = vpop.xlane.xlu0 %1710
  %v1712 = vsel %vm1666, %v877, -inf
  %1713 = vmax.xlane.f32.xlu0 %v1712
  %v1714 = vpop.xlane.xlu0 %1713
  %v1715 = vsel %vm1666, %v973, -inf
  %1716 = vmax.xlane.f32.xlu0 %v1715
  %v1717 = vpop.xlane.xlu0 %1716
  %v1718 = vsel %vm1666, %v978, -inf
  %1719 = vmax.xlane.f32.xlu0 %v1718
  %v1720 = vpop.xlane.xlu0 %1719
  %v1721 = vsel %vm1666, %v983, -inf
  %1722 = vmax.xlane.f32.xlu0 %v1721
  %v1723 = vpop.xlane.xlu0 %1722
  %v1724 = vsel %vm1666, %v988, -inf
  %1725 = vmax.xlane.f32.xlu0 %v1724
  %v1726 = vpop.xlane.xlu0 %1725
  %v1727 = vsel %vm1666, %v993, -inf
  %1728 = vmax.xlane.f32.xlu0 %v1727
  %v1729 = vpop.xlane.xlu0 %1728
  %v1730 = vsel %vm1666, %v998, -inf
  %1731 = vmax.xlane.f32.xlu0 %v1730
  %v1732 = vpop.xlane.xlu0 %1731
  %v1733 = vsel %vm1666, %v1003, -inf
  %1734 = vmax.xlane.f32.xlu0 %v1733
  %v1735 = vpop.xlane.xlu0 %1734
  %v1736 = vsel %vm1666, %v1008, -inf
  %1737 = vmax.xlane.f32.xlu0 %v1736
  %v1738 = vpop.xlane.xlu0 %1737
  %v1739 = vsel %vm1666, %v1104, -inf
  %1740 = vmax.xlane.f32.xlu0 %v1739
  %v1741 = vpop.xlane.xlu0 %1740
  %v1742 = vsel %vm1666, %v1109, -inf
  %1743 = vmax.xlane.f32.xlu0 %v1742
  %v1744 = vpop.xlane.xlu0 %1743
  %v1745 = vsel %vm1666, %v1114, -inf
  %1746 = vmax.xlane.f32.xlu0 %v1745
  %v1747 = vpop.xlane.xlu0 %1746
  %v1748 = vsel %vm1666, %v1119, -inf
  %1749 = vmax.xlane.f32.xlu0 %v1748
  %v1750 = vpop.xlane.xlu0 %1749
  %v1751 = vsel %vm1666, %v1124, -inf
  %1752 = vmax.xlane.f32.xlu0 %v1751
  %v1753 = vpop.xlane.xlu0 %1752
  %v1754 = vsel %vm1666, %v1129, -inf
  %1755 = vmax.xlane.f32.xlu0 %v1754
  %v1756 = vpop.xlane.xlu0 %1755
  %v1757 = vsel %vm1666, %v1134, -inf
  %1758 = vmax.xlane.f32.xlu0 %v1757
  %v1759 = vpop.xlane.xlu0 %1758
  %v1760 = vsel %vm1666, %v1139, -inf
  %1761 = vmax.xlane.f32.xlu0 %v1760
  %v1762 = vpop.xlane.xlu0 %1761
  %v1763 = vsel %vm1666, %v1235, -inf
  %1764 = vmax.xlane.f32.xlu0 %v1763
  %v1765 = vpop.xlane.xlu0 %1764
  %v1766 = vsel %vm1666, %v1240, -inf
  %1767 = vmax.xlane.f32.xlu0 %v1766
  %v1768 = vpop.xlane.xlu0 %1767
  %v1769 = vsel %vm1666, %v1245, -inf
  %1770 = vmax.xlane.f32.xlu0 %v1769
  %v1771 = vpop.xlane.xlu0 %1770
  %v1772 = vsel %vm1666, %v1250, -inf
  %1773 = vmax.xlane.f32.xlu0 %v1772
  %v1774 = vpop.xlane.xlu0 %1773
  %v1775 = vsel %vm1666, %v1255, -inf
  %1776 = vmax.xlane.f32.xlu0 %v1775
  %v1777 = vpop.xlane.xlu0 %1776
  %v1778 = vsel %vm1666, %v1260, -inf
  %1779 = vmax.xlane.f32.xlu0 %v1778
  %v1780 = vpop.xlane.xlu0 %1779
  %v1781 = vsel %vm1666, %v1265, -inf
  %1782 = vmax.xlane.f32.xlu0 %v1781
  %v1783 = vpop.xlane.xlu0 %1782
  %v1784 = vsel %vm1666, %v1270, -inf
  %1785 = vmax.xlane.f32.xlu0 %v1784
  %v1786 = vpop.xlane.xlu0 %1785
  %v1787 = vsel %vm1666, %v1366, -inf
  %1788 = vmax.xlane.f32.xlu0 %v1787
  %v1789 = vpop.xlane.xlu0 %1788
  %v1790 = vsel %vm1666, %v1371, -inf
  %1791 = vmax.xlane.f32.xlu0 %v1790
  %v1792 = vpop.xlane.xlu0 %1791
  %v1793 = vsel %vm1666, %v1376, -inf
  %1794 = vmax.xlane.f32.xlu0 %v1793
  %v1795 = vpop.xlane.xlu0 %1794
  %v1796 = vsel %vm1666, %v1381, -inf
  %1797 = vmax.xlane.f32.xlu0 %v1796
  %v1798 = vpop.xlane.xlu0 %1797
  %v1799 = vsel %vm1666, %v1386, -inf
  %1800 = vmax.xlane.f32.xlu0 %v1799
  %v1801 = vpop.xlane.xlu0 %1800
  %v1802 = vsel %vm1666, %v1391, -inf
  %1803 = vmax.xlane.f32.xlu0 %v1802
  %v1804 = vpop.xlane.xlu0 %1803
  %v1805 = vsel %vm1666, %v1396, -inf
  %1806 = vmax.xlane.f32.xlu0 %v1805
  %v1807 = vpop.xlane.xlu0 %1806
  %v1808 = vsel %vm1666, %v1401, -inf
  %1809 = vmax.xlane.f32.xlu0 %v1808
  %v1810 = vpop.xlane.xlu0 %1809
  %v1811 = vsel %vm1666, %v1497, -inf
  %1812 = vmax.xlane.f32.xlu0 %v1811
  %v1813 = vpop.xlane.xlu0 %1812
  %v1814 = vsel %vm1666, %v1502, -inf
  %1815 = vmax.xlane.f32.xlu0 %v1814
  %v1816 = vpop.xlane.xlu0 %1815
  %v1817 = vsel %vm1666, %v1507, -inf
  %1818 = vmax.xlane.f32.xlu0 %v1817
  %v1819 = vpop.xlane.xlu0 %1818
  %v1820 = vsel %vm1666, %v1512, -inf
  %1821 = vmax.xlane.f32.xlu0 %v1820
  %v1822 = vpop.xlane.xlu0 %1821
  %v1823 = vsel %vm1666, %v1517, -inf
  %1824 = vmax.xlane.f32.xlu0 %v1823
  %v1825 = vpop.xlane.xlu0 %1824
  %v1826 = vsel %vm1666, %v1522, -inf
  %1827 = vmax.xlane.f32.xlu0 %v1826
  %v1828 = vpop.xlane.xlu0 %1827
  %v1829 = vsel %vm1666, %v1527, -inf
  %1830 = vmax.xlane.f32.xlu0 %v1829
  %v1831 = vpop.xlane.xlu0 %1830
  %v1832 = vsel %vm1666, %v1532, -inf
  %1833 = vmax.xlane.f32.xlu0 %v1832
  %v1834 = vpop.xlane.xlu0 %1833
  %v1835 = vsel %vm1666, %v1628, -inf
  %1836 = vmax.xlane.f32.xlu0 %v1835
  %v1837 = vpop.xlane.xlu0 %1836
  %v1838 = vsel %vm1666, %v1633, -inf
  %1839 = vmax.xlane.f32.xlu0 %v1838
  %v1840 = vpop.xlane.xlu0 %1839
  %v1841 = vsel %vm1666, %v1638, -inf
  %1842 = vmax.xlane.f32.xlu0 %v1841
  %v1843 = vpop.xlane.xlu0 %1842
  %v1844 = vsel %vm1666, %v1643, -inf
  %1845 = vmax.xlane.f32.xlu0 %v1844
  %v1846 = vpop.xlane.xlu0 %1845
  %v1847 = vsel %vm1666, %v1648, -inf
  %1848 = vmax.xlane.f32.xlu0 %v1847
  %v1849 = vpop.xlane.xlu0 %1848
  %v1850 = vsel %vm1666, %v1653, -inf
  %1851 = vmax.xlane.f32.xlu0 %v1850
  %v1852 = vpop.xlane.xlu0 %1851
  %v1853 = vsel %vm1666, %v1658, -inf
  %1854 = vmax.xlane.f32.xlu0 %v1853
  %v1855 = vpop.xlane.xlu0 %1854
  %v1856 = vsel %vm1666, %v1663, -inf
  %1857 = vmax.xlane.f32.xlu0 %v1856
  %v1858 = vpop.xlane.xlu0 %1857
  %v1859 = vsub.f32 %v711, %v1669
  %v1860 = vsub.f32 %v716, %v1672
  %v1861 = vsub.f32 %v721, %v1675
  %v1862 = vsub.f32 %v726, %v1678
  %v1863 = vsub.f32 %v731, %v1681
  %v1864 = vsub.f32 %v736, %v1684
  %v1865 = vsub.f32 %v741, %v1687
  %v1866 = vsub.f32 %v746, %v1690
  %v1867 = vsub.f32 %v842, %v1693
  %v1868 = vsub.f32 %v847, %v1696
  %v1869 = vsub.f32 %v852, %v1699
  %v1870 = vsub.f32 %v857, %v1702
  %v1871 = vsub.f32 %v862, %v1705
  %v1872 = vsub.f32 %v867, %v1708
  %v1873 = vsub.f32 %v872, %v1711
  %v1874 = vsub.f32 %v877, %v1714
  %v1875 = vsub.f32 %v973, %v1717
  %v1876 = vsub.f32 %v978, %v1720
  %v1877 = vsub.f32 %v983, %v1723
  %v1878 = vsub.f32 %v988, %v1726
  %v1879 = vsub.f32 %v993, %v1729
  %v1880 = vsub.f32 %v998, %v1732
  %v1881 = vsub.f32 %v1003, %v1735
  %v1882 = vsub.f32 %v1008, %v1738
  %v1883 = vsub.f32 %v1104, %v1741
  %v1884 = vsub.f32 %v1109, %v1744
  %v1885 = vsub.f32 %v1114, %v1747
  %v1886 = vsub.f32 %v1119, %v1750
  %v1887 = vsub.f32 %v1124, %v1753
  %v1888 = vsub.f32 %v1129, %v1756
  %v1889 = vsub.f32 %v1134, %v1759
  %v1890 = vsub.f32 %v1139, %v1762
  %v1891 = vsub.f32 %v1235, %v1765
  %v1892 = vsub.f32 %v1240, %v1768
  %v1893 = vsub.f32 %v1245, %v1771
  %v1894 = vsub.f32 %v1250, %v1774
  %v1895 = vsub.f32 %v1255, %v1777
  %v1896 = vsub.f32 %v1260, %v1780
  %v1897 = vsub.f32 %v1265, %v1783
  %v1898 = vsub.f32 %v1270, %v1786
  %v1899 = vsub.f32 %v1366, %v1789
  %v1900 = vsub.f32 %v1371, %v1792
  %v1901 = vsub.f32 %v1376, %v1795
  %v1902 = vsub.f32 %v1381, %v1798
  %v1903 = vsub.f32 %v1386, %v1801
  %v1904 = vsub.f32 %v1391, %v1804
  %v1905 = vsub.f32 %v1396, %v1807
  %v1906 = vsub.f32 %v1401, %v1810
  %v1907 = vsub.f32 %v1497, %v1813
  %v1908 = vsub.f32 %v1502, %v1816
  %v1909 = vsub.f32 %v1507, %v1819
  %v1910 = vsub.f32 %v1512, %v1822
  %v1911 = vsub.f32 %v1517, %v1825
  %v1912 = vsub.f32 %v1522, %v1828
  %v1913 = vsub.f32 %v1527, %v1831
  %v1914 = vsub.f32 %v1532, %v1834
  %v1915 = vsub.f32 %v1628, %v1837
  %v1916 = vsub.f32 %v1633, %v1840
  %v1917 = vsub.f32 %v1638, %v1843
  %v1918 = vsub.f32 %v1643, %v1846
  %v1919 = vsub.f32 %v1648, %v1849
  %v1920 = vsub.f32 %v1653, %v1852
  %v1921 = vsub.f32 %v1658, %v1855
  %v1922 = vsub.f32 %v1663, %v1858
  %v1923 = vmul.f32 %v1859, 1.442695
  %v1924 = vpow.pop %v1923
  %v1925 = vmul.f32 %v1860, 1.442695
  %v1926 = vpow.pop %v1925
  %v1927 = vmul.f32 %v1861, 1.442695
  %v1928 = vpow.pop %v1927
  %v1929 = vmul.f32 %v1862, 1.442695
  %v1930 = vpow.pop %v1929
  %v1931 = vmul.f32 %v1863, 1.442695
  %v1932 = vpow.pop %v1931
  %v1933 = vmul.f32 %v1864, 1.442695
  %v1934 = vpow.pop %v1933
  %v1935 = vmul.f32 %v1865, 1.442695
  %v1936 = vpow.pop %v1935
  %v1937 = vmul.f32 %v1866, 1.442695
  %v1938 = vpow.pop %v1937
  %v1939 = vmul.f32 %v1867, 1.442695
  %v1940 = vpow.pop %v1939
  %v1941 = vmul.f32 %v1868, 1.442695
  %v1942 = vpow.pop %v1941
  %v1943 = vmul.f32 %v1869, 1.442695
  %v1944 = vpow.pop %v1943
  %v1945 = vmul.f32 %v1870, 1.442695
  %v1946 = vpow.pop %v1945
  %v1947 = vmul.f32 %v1871, 1.442695
  %v1948 = vpow.pop %v1947
  %v1949 = vmul.f32 %v1872, 1.442695
  %v1950 = vpow.pop %v1949
  %v1951 = vmul.f32 %v1873, 1.442695
  %v1952 = vpow.pop %v1951
  %v1953 = vmul.f32 %v1874, 1.442695
  %v1954 = vpow.pop %v1953
  %v1955 = vmul.f32 %v1875, 1.442695
  %v1956 = vpow.pop %v1955
  %v1957 = vmul.f32 %v1876, 1.442695
  %v1958 = vpow.pop %v1957
  %v1959 = vmul.f32 %v1877, 1.442695
  %v1960 = vpow.pop %v1959
  %v1961 = vmul.f32 %v1878, 1.442695
  %v1962 = vpow.pop %v1961
  %v1963 = vmul.f32 %v1879, 1.442695
  %v1964 = vpow.pop %v1963
  %v1965 = vmul.f32 %v1880, 1.442695
  %v1966 = vpow.pop %v1965
  %v1967 = vmul.f32 %v1881, 1.442695
  %v1968 = vpow.pop %v1967
  %v1969 = vmul.f32 %v1882, 1.442695
  %v1970 = vpow.pop %v1969
  %v1971 = vmul.f32 %v1883, 1.442695
  %v1972 = vpow.pop %v1971
  %v1973 = vmul.f32 %v1884, 1.442695
  %v1974 = vpow.pop %v1973
  %v1975 = vmul.f32 %v1885, 1.442695
  %v1976 = vpow.pop %v1975
  %v1977 = vmul.f32 %v1886, 1.442695
  %v1978 = vpow.pop %v1977
  %v1979 = vmul.f32 %v1887, 1.442695
  %v1980 = vpow.pop %v1979
  %v1981 = vmul.f32 %v1888, 1.442695
  %v1982 = vpow.pop %v1981
  %v1983 = vmul.f32 %v1889, 1.442695
  %v1984 = vpow.pop %v1983
  %v1985 = vmul.f32 %v1890, 1.442695
  %v1986 = vpow.pop %v1985
  %v1987 = vmul.f32 %v1891, 1.442695
  %v1988 = vpow.pop %v1987
  %v1989 = vmul.f32 %v1892, 1.442695
  %v1990 = vpow.pop %v1989
  %v1991 = vmul.f32 %v1893, 1.442695
  %v1992 = vpow.pop %v1991
  %v1993 = vmul.f32 %v1894, 1.442695
  %v1994 = vpow.pop %v1993
  %v1995 = vmul.f32 %v1895, 1.442695
  %v1996 = vpow.pop %v1995
  %v1997 = vmul.f32 %v1896, 1.442695
  %v1998 = vpow.pop %v1997
  %v1999 = vmul.f32 %v1897, 1.442695
  %v2000 = vpow.pop %v1999
  %v2001 = vmul.f32 %v1898, 1.442695
  %v2002 = vpow.pop %v2001
  %v2003 = vmul.f32 %v1899, 1.442695
  %v2004 = vpow.pop %v2003
  %v2005 = vmul.f32 %v1900, 1.442695
  %v2006 = vpow.pop %v2005
  %v2007 = vmul.f32 %v1901, 1.442695
  %v2008 = vpow.pop %v2007
  %v2009 = vmul.f32 %v1902, 1.442695
  %v2010 = vpow.pop %v2009
  %v2011 = vmul.f32 %v1903, 1.442695
  %v2012 = vpow.pop %v2011
  %v2013 = vmul.f32 %v1904, 1.442695
  %v2014 = vpow.pop %v2013
  %v2015 = vmul.f32 %v1905, 1.442695
  %v2016 = vpow.pop %v2015
  %v2017 = vmul.f32 %v1906, 1.442695
  %v2018 = vpow.pop %v2017
  %v2019 = vmul.f32 %v1907, 1.442695
  %v2020 = vpow.pop %v2019
  %v2021 = vmul.f32 %v1908, 1.442695
  %v2022 = vpow.pop %v2021
  %v2023 = vmul.f32 %v1909, 1.442695
  %v2024 = vpow.pop %v2023
  %v2025 = vmul.f32 %v1910, 1.442695
  %v2026 = vpow.pop %v2025
  %v2027 = vmul.f32 %v1911, 1.442695
  %v2028 = vpow.pop %v2027
  %v2029 = vmul.f32 %v1912, 1.442695
  %v2030 = vpow.pop %v2029
  %v2031 = vmul.f32 %v1913, 1.442695
  %v2032 = vpow.pop %v2031
  %v2033 = vmul.f32 %v1914, 1.442695
  %v2034 = vpow.pop %v2033
  %v2035 = vmul.f32 %v1915, 1.442695
  %v2036 = vpow.pop %v2035
  %v2037 = vmul.f32 %v1916, 1.442695
  %v2038 = vpow.pop %v2037
  %v2039 = vmul.f32 %v1917, 1.442695
  %v2040 = vpow.pop %v2039
  %v2041 = vmul.f32 %v1918, 1.442695
  %v2042 = vpow.pop %v2041
  %v2043 = vmul.f32 %v1919, 1.442695
  %v2044 = vpow.pop %v2043
  %v2045 = vmul.f32 %v1920, 1.442695
  %v2046 = vpow.pop %v2045
  %v2047 = vmul.f32 %v1921, 1.442695
  %v2048 = vpow.pop %v2047
  %v2049 = vmul.f32 %v1922, 1.442695
  %v2050 = vpow.pop %v2049
  %v2051 = vsel %vm1666, %v1924, 0.0
  %2052 = vadd.xlane.f32.xlu0 %v2051
  %v2053 = vpop.xlane.xlu0 %2052
  %v2054 = vsel %vm1666, %v1926, 0.0
  %2055 = vadd.xlane.f32.xlu0 %v2054
  %v2056 = vpop.xlane.xlu0 %2055
  %v2057 = vsel %vm1666, %v1928, 0.0
  %2058 = vadd.xlane.f32.xlu0 %v2057
  %v2059 = vpop.xlane.xlu0 %2058
  %v2060 = vsel %vm1666, %v1930, 0.0
  %2061 = vadd.xlane.f32.xlu0 %v2060
  %v2062 = vpop.xlane.xlu0 %2061
  %v2063 = vsel %vm1666, %v1932, 0.0
  %2064 = vadd.xlane.f32.xlu0 %v2063
  %v2065 = vpop.xlane.xlu0 %2064
  %v2066 = vsel %vm1666, %v1934, 0.0
  %2067 = vadd.xlane.f32.xlu0 %v2066
  %v2068 = vpop.xlane.xlu0 %2067
  %v2069 = vsel %vm1666, %v1936, 0.0
  %2070 = vadd.xlane.f32.xlu0 %v2069
  %v2071 = vpop.xlane.xlu0 %2070
  %v2072 = vsel %vm1666, %v1938, 0.0
  %2073 = vadd.xlane.f32.xlu0 %v2072
  %v2074 = vpop.xlane.xlu0 %2073
  %v2075 = vsel %vm1666, %v1940, 0.0
  %2076 = vadd.xlane.f32.xlu0 %v2075
  %v2077 = vpop.xlane.xlu0 %2076
  %v2078 = vsel %vm1666, %v1942, 0.0
  %2079 = vadd.xlane.f32.xlu0 %v2078
  %v2080 = vpop.xlane.xlu0 %2079
  %v2081 = vsel %vm1666, %v1944, 0.0
  %2082 = vadd.xlane.f32.xlu0 %v2081
  %v2083 = vpop.xlane.xlu0 %2082
  %v2084 = vsel %vm1666, %v1946, 0.0
  %2085 = vadd.xlane.f32.xlu0 %v2084
  %v2086 = vpop.xlane.xlu0 %2085
  %v2087 = vsel %vm1666, %v1948, 0.0
  %2088 = vadd.xlane.f32.xlu0 %v2087
  %v2089 = vpop.xlane.xlu0 %2088
  %v2090 = vsel %vm1666, %v1950, 0.0
  %2091 = vadd.xlane.f32.xlu0 %v2090
  %v2092 = vpop.xlane.xlu0 %2091
  %v2093 = vsel %vm1666, %v1952, 0.0
  %2094 = vadd.xlane.f32.xlu0 %v2093
  %v2095 = vpop.xlane.xlu0 %2094
  %v2096 = vsel %vm1666, %v1954, 0.0
  %2097 = vadd.xlane.f32.xlu0 %v2096
  %v2098 = vpop.xlane.xlu0 %2097
  %v2099 = vsel %vm1666, %v1956, 0.0
  %2100 = vadd.xlane.f32.xlu0 %v2099
  %v2101 = vpop.xlane.xlu0 %2100
  %v2102 = vsel %vm1666, %v1958, 0.0
  %2103 = vadd.xlane.f32.xlu0 %v2102
  %v2104 = vpop.xlane.xlu0 %2103
  %v2105 = vsel %vm1666, %v1960, 0.0
  %2106 = vadd.xlane.f32.xlu0 %v2105
  %v2107 = vpop.xlane.xlu0 %2106
  %v2108 = vsel %vm1666, %v1962, 0.0
  %2109 = vadd.xlane.f32.xlu0 %v2108
  %v2110 = vpop.xlane.xlu0 %2109
  %v2111 = vsel %vm1666, %v1964, 0.0
  %2112 = vadd.xlane.f32.xlu0 %v2111
  %v2113 = vpop.xlane.xlu0 %2112
  %v2114 = vsel %vm1666, %v1966, 0.0
  %2115 = vadd.xlane.f32.xlu0 %v2114
  %v2116 = vpop.xlane.xlu0 %2115
  %v2117 = vsel %vm1666, %v1968, 0.0
  %2118 = vadd.xlane.f32.xlu0 %v2117
  %v2119 = vpop.xlane.xlu0 %2118
  %v2120 = vsel %vm1666, %v1970, 0.0
  %2121 = vadd.xlane.f32.xlu0 %v2120
  %v2122 = vpop.xlane.xlu0 %2121
  %v2123 = vsel %vm1666, %v1972, 0.0
  %2124 = vadd.xlane.f32.xlu0 %v2123
  %v2125 = vpop.xlane.xlu0 %2124
  %v2126 = vsel %vm1666, %v1974, 0.0
  %2127 = vadd.xlane.f32.xlu0 %v2126
  %v2128 = vpop.xlane.xlu0 %2127
  %v2129 = vsel %vm1666, %v1976, 0.0
  %2130 = vadd.xlane.f32.xlu0 %v2129
  %v2131 = vpop.xlane.xlu0 %2130
  %v2132 = vsel %vm1666, %v1978, 0.0
  %2133 = vadd.xlane.f32.xlu0 %v2132
  %v2134 = vpop.xlane.xlu0 %2133
  %v2135 = vsel %vm1666, %v1980, 0.0
  %2136 = vadd.xlane.f32.xlu0 %v2135
  %v2137 = vpop.xlane.xlu0 %2136
  %v2138 = vsel %vm1666, %v1982, 0.0
  %2139 = vadd.xlane.f32.xlu0 %v2138
  %v2140 = vpop.xlane.xlu0 %2139
  %v2141 = vsel %vm1666, %v1984, 0.0
  %2142 = vadd.xlane.f32.xlu0 %v2141
  %v2143 = vpop.xlane.xlu0 %2142
  %v2144 = vsel %vm1666, %v1986, 0.0
  %2145 = vadd.xlane.f32.xlu0 %v2144
  %v2146 = vpop.xlane.xlu0 %2145
  %v2147 = vsel %vm1666, %v1988, 0.0
  %2148 = vadd.xlane.f32.xlu0 %v2147
  %v2149 = vpop.xlane.xlu0 %2148
  %v2150 = vsel %vm1666, %v1990, 0.0
  %2151 = vadd.xlane.f32.xlu0 %v2150
  %v2152 = vpop.xlane.xlu0 %2151
  %v2153 = vsel %vm1666, %v1992, 0.0
  %2154 = vadd.xlane.f32.xlu0 %v2153
  %v2155 = vpop.xlane.xlu0 %2154
  %v2156 = vsel %vm1666, %v1994, 0.0
  %2157 = vadd.xlane.f32.xlu0 %v2156
  %v2158 = vpop.xlane.xlu0 %2157
  %v2159 = vsel %vm1666, %v1996, 0.0
  %2160 = vadd.xlane.f32.xlu0 %v2159
  %v2161 = vpop.xlane.xlu0 %2160
  %v2162 = vsel %vm1666, %v1998, 0.0
  %2163 = vadd.xlane.f32.xlu0 %v2162
  %v2164 = vpop.xlane.xlu0 %2163
  %v2165 = vsel %vm1666, %v2000, 0.0
  %2166 = vadd.xlane.f32.xlu0 %v2165
  %v2167 = vpop.xlane.xlu0 %2166
  %v2168 = vsel %vm1666, %v2002, 0.0
  %2169 = vadd.xlane.f32.xlu0 %v2168
  %v2170 = vpop.xlane.xlu0 %2169
  %v2171 = vsel %vm1666, %v2004, 0.0
  %2172 = vadd.xlane.f32.xlu0 %v2171
  %v2173 = vpop.xlane.xlu0 %2172
  %v2174 = vsel %vm1666, %v2006, 0.0
  %2175 = vadd.xlane.f32.xlu0 %v2174
  %v2176 = vpop.xlane.xlu0 %2175
  %v2177 = vsel %vm1666, %v2008, 0.0
  %2178 = vadd.xlane.f32.xlu0 %v2177
  %v2179 = vpop.xlane.xlu0 %2178
  %v2180 = vsel %vm1666, %v2010, 0.0
  %2181 = vadd.xlane.f32.xlu0 %v2180
  %v2182 = vpop.xlane.xlu0 %2181
  %v2183 = vsel %vm1666, %v2012, 0.0
  %2184 = vadd.xlane.f32.xlu0 %v2183
  %v2185 = vpop.xlane.xlu0 %2184
  %v2186 = vsel %vm1666, %v2014, 0.0
  %2187 = vadd.xlane.f32.xlu0 %v2186
  %v2188 = vpop.xlane.xlu0 %2187
  %v2189 = vsel %vm1666, %v2016, 0.0
  %2190 = vadd.xlane.f32.xlu0 %v2189
  %v2191 = vpop.xlane.xlu0 %2190
  %v2192 = vsel %vm1666, %v2018, 0.0
  %2193 = vadd.xlane.f32.xlu0 %v2192
  %v2194 = vpop.xlane.xlu0 %2193
  %v2195 = vsel %vm1666, %v2020, 0.0
  %2196 = vadd.xlane.f32.xlu0 %v2195
  %v2197 = vpop.xlane.xlu0 %2196
  %v2198 = vsel %vm1666, %v2022, 0.0
  %2199 = vadd.xlane.f32.xlu0 %v2198
  %v2200 = vpop.xlane.xlu0 %2199
  %v2201 = vsel %vm1666, %v2024, 0.0
  %2202 = vadd.xlane.f32.xlu0 %v2201
  %v2203 = vpop.xlane.xlu0 %2202
  %v2204 = vsel %vm1666, %v2026, 0.0
  %2205 = vadd.xlane.f32.xlu0 %v2204
  %v2206 = vpop.xlane.xlu0 %2205
  %v2207 = vsel %vm1666, %v2028, 0.0
  %2208 = vadd.xlane.f32.xlu0 %v2207
  %v2209 = vpop.xlane.xlu0 %2208
  %v2210 = vsel %vm1666, %v2030, 0.0
  %2211 = vadd.xlane.f32.xlu0 %v2210
  %v2212 = vpop.xlane.xlu0 %2211
  %v2213 = vsel %vm1666, %v2032, 0.0
  %2214 = vadd.xlane.f32.xlu0 %v2213
  %v2215 = vpop.xlane.xlu0 %2214
  %v2216 = vsel %vm1666, %v2034, 0.0
  %2217 = vadd.xlane.f32.xlu0 %v2216
  %v2218 = vpop.xlane.xlu0 %2217
  %v2219 = vsel %vm1666, %v2036, 0.0
  %2220 = vadd.xlane.f32.xlu0 %v2219
  %v2221 = vpop.xlane.xlu0 %2220
  %v2222 = vsel %vm1666, %v2038, 0.0
  %2223 = vadd.xlane.f32.xlu0 %v2222
  %v2224 = vpop.xlane.xlu0 %2223
  %v2225 = vsel %vm1666, %v2040, 0.0
  %2226 = vadd.xlane.f32.xlu0 %v2225
  %v2227 = vpop.xlane.xlu0 %2226
  %v2228 = vsel %vm1666, %v2042, 0.0
  %2229 = vadd.xlane.f32.xlu0 %v2228
  %v2230 = vpop.xlane.xlu0 %2229
  %v2231 = vsel %vm1666, %v2044, 0.0
  %2232 = vadd.xlane.f32.xlu0 %v2231
  %v2233 = vpop.xlane.xlu0 %2232
  %v2234 = vsel %vm1666, %v2046, 0.0
  %2235 = vadd.xlane.f32.xlu0 %v2234
  %v2236 = vpop.xlane.xlu0 %2235
  %v2237 = vsel %vm1666, %v2048, 0.0
  %2238 = vadd.xlane.f32.xlu0 %v2237
  %v2239 = vpop.xlane.xlu0 %2238
  %v2240 = vsel %vm1666, %v2050, 0.0
  %2241 = vadd.xlane.f32.xlu0 %v2240
  %v2242 = vpop.xlane.xlu0 %2241
  %v2243 = vrcp.pop %v2053
  %v2244 = vrcp.pop %v2056
  %v2245 = vrcp.pop %v2059
  %v2246 = vrcp.pop %v2062
  %v2247 = vrcp.pop %v2065
  %v2248 = vrcp.pop %v2068
  %v2249 = vrcp.pop %v2071
  %v2250 = vrcp.pop %v2074
  %v2251 = vrcp.pop %v2077
  %v2252 = vrcp.pop %v2080
  %v2253 = vrcp.pop %v2083
  %v2254 = vrcp.pop %v2086
  %v2255 = vrcp.pop %v2089
  %v2256 = vrcp.pop %v2092
  %v2257 = vrcp.pop %v2095
  %v2258 = vrcp.pop %v2098
  %v2259 = vrcp.pop %v2101
  %v2260 = vrcp.pop %v2104
  %v2261 = vrcp.pop %v2107
  %v2262 = vrcp.pop %v2110
  %v2263 = vrcp.pop %v2113
  %v2264 = vrcp.pop %v2116
  %v2265 = vrcp.pop %v2119
  %v2266 = vrcp.pop %v2122
  %v2267 = vrcp.pop %v2125
  %v2268 = vrcp.pop %v2128
  %v2269 = vrcp.pop %v2131
  %v2270 = vrcp.pop %v2134
  %v2271 = vrcp.pop %v2137
  %v2272 = vrcp.pop %v2140
  %v2273 = vrcp.pop %v2143
  %v2274 = vrcp.pop %v2146
  %v2275 = vrcp.pop %v2149
  %v2276 = vrcp.pop %v2152
  %v2277 = vrcp.pop %v2155
  %v2278 = vrcp.pop %v2158
  %v2279 = vrcp.pop %v2161
  %v2280 = vrcp.pop %v2164
  %v2281 = vrcp.pop %v2167
  %v2282 = vrcp.pop %v2170
  %v2283 = vrcp.pop %v2173
  %v2284 = vrcp.pop %v2176
  %v2285 = vrcp.pop %v2179
  %v2286 = vrcp.pop %v2182
  %v2287 = vrcp.pop %v2185
  %v2288 = vrcp.pop %v2188
  %v2289 = vrcp.pop %v2191
  %v2290 = vrcp.pop %v2194
  %v2291 = vrcp.pop %v2197
  %v2292 = vrcp.pop %v2200
  %v2293 = vrcp.pop %v2203
  %v2294 = vrcp.pop %v2206
  %v2295 = vrcp.pop %v2209
  %v2296 = vrcp.pop %v2212
  %v2297 = vrcp.pop %v2215
  %v2298 = vrcp.pop %v2218
  %v2299 = vrcp.pop %v2221
  %v2300 = vrcp.pop %v2224
  %v2301 = vrcp.pop %v2227
  %v2302 = vrcp.pop %v2230
  %v2303 = vrcp.pop %v2233
  %v2304 = vrcp.pop %v2236
  %v2305 = vrcp.pop %v2239
  %v2306 = vrcp.pop %v2242
  %v2307 = vmul.f32 %v2053, %v2243
  %v2308 = vmul.f32 %v2056, %v2244
  %v2309 = vmul.f32 %v2059, %v2245
  %v2310 = vmul.f32 %v2062, %v2246
  %v2311 = vmul.f32 %v2065, %v2247
  %v2312 = vmul.f32 %v2068, %v2248
  %v2313 = vmul.f32 %v2071, %v2249
  %v2314 = vmul.f32 %v2074, %v2250
  %v2315 = vmul.f32 %v2077, %v2251
  %v2316 = vmul.f32 %v2080, %v2252
  %v2317 = vmul.f32 %v2083, %v2253
  %v2318 = vmul.f32 %v2086, %v2254
  %v2319 = vmul.f32 %v2089, %v2255
  %v2320 = vmul.f32 %v2092, %v2256
  %v2321 = vmul.f32 %v2095, %v2257
  %v2322 = vmul.f32 %v2098, %v2258
  %v2323 = vmul.f32 %v2101, %v2259
  %v2324 = vmul.f32 %v2104, %v2260
  %v2325 = vmul.f32 %v2107, %v2261
  %v2326 = vmul.f32 %v2110, %v2262
  %v2327 = vmul.f32 %v2113, %v2263
  %v2328 = vmul.f32 %v2116, %v2264
  %v2329 = vmul.f32 %v2119, %v2265
  %v2330 = vmul.f32 %v2122, %v2266
  %v2331 = vmul.f32 %v2125, %v2267
  %v2332 = vmul.f32 %v2128, %v2268
  %v2333 = vmul.f32 %v2131, %v2269
  %v2334 = vmul.f32 %v2134, %v2270
  %v2335 = vmul.f32 %v2137, %v2271
  %v2336 = vmul.f32 %v2140, %v2272
  %v2337 = vmul.f32 %v2143, %v2273
  %v2338 = vmul.f32 %v2146, %v2274
  %v2339 = vmul.f32 %v2149, %v2275
  %v2340 = vmul.f32 %v2152, %v2276
  %v2341 = vmul.f32 %v2155, %v2277
  %v2342 = vmul.f32 %v2158, %v2278
  %v2343 = vmul.f32 %v2161, %v2279
  %v2344 = vmul.f32 %v2164, %v2280
  %v2345 = vmul.f32 %v2167, %v2281
  %v2346 = vmul.f32 %v2170, %v2282
  %v2347 = vmul.f32 %v2173, %v2283
  %v2348 = vmul.f32 %v2176, %v2284
  %v2349 = vmul.f32 %v2179, %v2285
  %v2350 = vmul.f32 %v2182, %v2286
  %v2351 = vmul.f32 %v2185, %v2287
  %v2352 = vmul.f32 %v2188, %v2288
  %v2353 = vmul.f32 %v2191, %v2289
  %v2354 = vmul.f32 %v2194, %v2290
  %v2355 = vmul.f32 %v2197, %v2291
  %v2356 = vmul.f32 %v2200, %v2292
  %v2357 = vmul.f32 %v2203, %v2293
  %v2358 = vmul.f32 %v2206, %v2294
  %v2359 = vmul.f32 %v2209, %v2295
  %v2360 = vmul.f32 %v2212, %v2296
  %v2361 = vmul.f32 %v2215, %v2297
  %v2362 = vmul.f32 %v2218, %v2298
  %v2363 = vmul.f32 %v2221, %v2299
  %v2364 = vmul.f32 %v2224, %v2300
  %v2365 = vmul.f32 %v2227, %v2301
  %v2366 = vmul.f32 %v2230, %v2302
  %v2367 = vmul.f32 %v2233, %v2303
  %v2368 = vmul.f32 %v2236, %v2304
  %v2369 = vmul.f32 %v2239, %v2305
  %v2370 = vmul.f32 %v2242, %v2306
  %v2371 = vsub.f32 2.0, %v2307
  %v2372 = vsub.f32 2.0, %v2308
  %v2373 = vsub.f32 2.0, %v2309
  %v2374 = vsub.f32 2.0, %v2310
  %v2375 = vsub.f32 2.0, %v2311
  %v2376 = vsub.f32 2.0, %v2312
  %v2377 = vsub.f32 2.0, %v2313
  %v2378 = vsub.f32 2.0, %v2314
  %v2379 = vsub.f32 2.0, %v2315
  %v2380 = vsub.f32 2.0, %v2316
  %v2381 = vsub.f32 2.0, %v2317
  %v2382 = vsub.f32 2.0, %v2318
  %v2383 = vsub.f32 2.0, %v2319
  %v2384 = vsub.f32 2.0, %v2320
  %v2385 = vsub.f32 2.0, %v2321
  %v2386 = vsub.f32 2.0, %v2322
  %v2387 = vsub.f32 2.0, %v2323
  %v2388 = vsub.f32 2.0, %v2324
  %v2389 = vsub.f32 2.0, %v2325
  %v2390 = vsub.f32 2.0, %v2326
  %v2391 = vsub.f32 2.0, %v2327
  %v2392 = vsub.f32 2.0, %v2328
  %v2393 = vsub.f32 2.0, %v2329
  %v2394 = vsub.f32 2.0, %v2330
  %v2395 = vsub.f32 2.0, %v2331
  %v2396 = vsub.f32 2.0, %v2332
  %v2397 = vsub.f32 2.0, %v2333
  %v2398 = vsub.f32 2.0, %v2334
  %v2399 = vsub.f32 2.0, %v2335
  %v2400 = vsub.f32 2.0, %v2336
  %v2401 = vsub.f32 2.0, %v2337
  %v2402 = vsub.f32 2.0, %v2338
  %v2403 = vsub.f32 2.0, %v2339
  %v2404 = vsub.f32 2.0, %v2340
  %v2405 = vsub.f32 2.0, %v2341
  %v2406 = vsub.f32 2.0, %v2342
  %v2407 = vsub.f32 2.0, %v2343
  %v2408 = vsub.f32 2.0, %v2344
  %v2409 = vsub.f32 2.0, %v2345
  %v2410 = vsub.f32 2.0, %v2346
  %v2411 = vsub.f32 2.0, %v2347
  %v2412 = vsub.f32 2.0, %v2348
  %v2413 = vsub.f32 2.0, %v2349
  %v2414 = vsub.f32 2.0, %v2350
  %v2415 = vsub.f32 2.0, %v2351
  %v2416 = vsub.f32 2.0, %v2352
  %v2417 = vsub.f32 2.0, %v2353
  %v2418 = vsub.f32 2.0, %v2354
  %v2419 = vsub.f32 2.0, %v2355
  %v2420 = vsub.f32 2.0, %v2356
  %v2421 = vsub.f32 2.0, %v2357
  %v2422 = vsub.f32 2.0, %v2358
  %v2423 = vsub.f32 2.0, %v2359
  %v2424 = vsub.f32 2.0, %v2360
  %v2425 = vsub.f32 2.0, %v2361
  %v2426 = vsub.f32 2.0, %v2362
  %v2427 = vsub.f32 2.0, %v2363
  %v2428 = vsub.f32 2.0, %v2364
  %v2429 = vsub.f32 2.0, %v2365
  %v2430 = vsub.f32 2.0, %v2366
  %v2431 = vsub.f32 2.0, %v2367
  %v2432 = vsub.f32 2.0, %v2368
  %v2433 = vsub.f32 2.0, %v2369
  %v2434 = vsub.f32 2.0, %v2370
  %v2435 = vmul.f32 %v2243, %v2371
  %v2436 = vmul.f32 %v2244, %v2372
  %v2437 = vmul.f32 %v2245, %v2373
  %v2438 = vmul.f32 %v2246, %v2374
  %v2439 = vmul.f32 %v2247, %v2375
  %v2440 = vmul.f32 %v2248, %v2376
  %v2441 = vmul.f32 %v2249, %v2377
  %v2442 = vmul.f32 %v2250, %v2378
  %v2443 = vmul.f32 %v2251, %v2379
  %v2444 = vmul.f32 %v2252, %v2380
  %v2445 = vmul.f32 %v2253, %v2381
  %v2446 = vmul.f32 %v2254, %v2382
  %v2447 = vmul.f32 %v2255, %v2383
  %v2448 = vmul.f32 %v2256, %v2384
  %v2449 = vmul.f32 %v2257, %v2385
  %v2450 = vmul.f32 %v2258, %v2386
  %v2451 = vmul.f32 %v2259, %v2387
  %v2452 = vmul.f32 %v2260, %v2388
  %v2453 = vmul.f32 %v2261, %v2389
  %v2454 = vmul.f32 %v2262, %v2390
  %v2455 = vmul.f32 %v2263, %v2391
  %v2456 = vmul.f32 %v2264, %v2392
  %v2457 = vmul.f32 %v2265, %v2393
  %v2458 = vmul.f32 %v2266, %v2394
  %v2459 = vmul.f32 %v2267, %v2395
  %v2460 = vmul.f32 %v2268, %v2396
  %v2461 = vmul.f32 %v2269, %v2397
  %v2462 = vmul.f32 %v2270, %v2398
  %v2463 = vmul.f32 %v2271, %v2399
  %v2464 = vmul.f32 %v2272, %v2400
  %v2465 = vmul.f32 %v2273, %v2401
  %v2466 = vmul.f32 %v2274, %v2402
  %v2467 = vmul.f32 %v2275, %v2403
  %v2468 = vmul.f32 %v2276, %v2404
  %v2469 = vmul.f32 %v2277, %v2405
  %v2470 = vmul.f32 %v2278, %v2406
  %v2471 = vmul.f32 %v2279, %v2407
  %v2472 = vmul.f32 %v2280, %v2408
  %v2473 = vmul.f32 %v2281, %v2409
  %v2474 = vmul.f32 %v2282, %v2410
  %v2475 = vmul.f32 %v2283, %v2411
  %v2476 = vmul.f32 %v2284, %v2412
  %v2477 = vmul.f32 %v2285, %v2413
  %v2478 = vmul.f32 %v2286, %v2414
  %v2479 = vmul.f32 %v2287, %v2415
  %v2480 = vmul.f32 %v2288, %v2416
  %v2481 = vmul.f32 %v2289, %v2417
  %v2482 = vmul.f32 %v2290, %v2418
  %v2483 = vmul.f32 %v2291, %v2419
  %v2484 = vmul.f32 %v2292, %v2420
  %v2485 = vmul.f32 %v2293, %v2421
  %v2486 = vmul.f32 %v2294, %v2422
  %v2487 = vmul.f32 %v2295, %v2423
  %v2488 = vmul.f32 %v2296, %v2424
  %v2489 = vmul.f32 %v2297, %v2425
  %v2490 = vmul.f32 %v2298, %v2426
  %v2491 = vmul.f32 %v2299, %v2427
  %v2492 = vmul.f32 %v2300, %v2428
  %v2493 = vmul.f32 %v2301, %v2429
  %v2494 = vmul.f32 %v2302, %v2430
  %v2495 = vmul.f32 %v2303, %v2431
  %v2496 = vmul.f32 %v2304, %v2432
  %v2497 = vmul.f32 %v2305, %v2433
  %v2498 = vmul.f32 %v2306, %v2434
  %v2499 = vmul.f32 %v1924, %v2435
  %v2500 = vmul.f32 %v1926, %v2436
  %v2501 = vmul.f32 %v1928, %v2437
  %v2502 = vmul.f32 %v1930, %v2438
  %v2503 = vmul.f32 %v1932, %v2439
  %v2504 = vmul.f32 %v1934, %v2440
  %v2505 = vmul.f32 %v1936, %v2441
  %v2506 = vmul.f32 %v1938, %v2442
  %v2507 = vmul.f32 %v1940, %v2443
  %v2508 = vmul.f32 %v1942, %v2444
  %v2509 = vmul.f32 %v1944, %v2445
  %v2510 = vmul.f32 %v1946, %v2446
  %v2511 = vmul.f32 %v1948, %v2447
  %v2512 = vmul.f32 %v1950, %v2448
  %v2513 = vmul.f32 %v1952, %v2449
  %v2514 = vmul.f32 %v1954, %v2450
  %v2515 = vmul.f32 %v1956, %v2451
  %v2516 = vmul.f32 %v1958, %v2452
  %v2517 = vmul.f32 %v1960, %v2453
  %v2518 = vmul.f32 %v1962, %v2454
  %v2519 = vmul.f32 %v1964, %v2455
  %v2520 = vmul.f32 %v1966, %v2456
  %v2521 = vmul.f32 %v1968, %v2457
  %v2522 = vmul.f32 %v1970, %v2458
  %v2523 = vmul.f32 %v1972, %v2459
  %v2524 = vmul.f32 %v1974, %v2460
  %v2525 = vmul.f32 %v1976, %v2461
  %v2526 = vmul.f32 %v1978, %v2462
  %v2527 = vmul.f32 %v1980, %v2463
  %v2528 = vmul.f32 %v1982, %v2464
  %v2529 = vmul.f32 %v1984, %v2465
  %v2530 = vmul.f32 %v1986, %v2466
  %v2531 = vmul.f32 %v1988, %v2467
  %v2532 = vmul.f32 %v1990, %v2468
  %v2533 = vmul.f32 %v1992, %v2469
  %v2534 = vmul.f32 %v1994, %v2470
  %v2535 = vmul.f32 %v1996, %v2471
  %v2536 = vmul.f32 %v1998, %v2472
  %v2537 = vmul.f32 %v2000, %v2473
  %v2538 = vmul.f32 %v2002, %v2474
  %v2539 = vmul.f32 %v2004, %v2475
  %v2540 = vmul.f32 %v2006, %v2476
  %v2541 = vmul.f32 %v2008, %v2477
  %v2542 = vmul.f32 %v2010, %v2478
  %v2543 = vmul.f32 %v2012, %v2479
  %v2544 = vmul.f32 %v2014, %v2480
  %v2545 = vmul.f32 %v2016, %v2481
  %v2546 = vmul.f32 %v2018, %v2482
  %v2547 = vmul.f32 %v2020, %v2483
  %v2548 = vmul.f32 %v2022, %v2484
  %v2549 = vmul.f32 %v2024, %v2485
  %v2550 = vmul.f32 %v2026, %v2486
  %v2551 = vmul.f32 %v2028, %v2487
  %v2552 = vmul.f32 %v2030, %v2488
  %v2553 = vmul.f32 %v2032, %v2489
  %v2554 = vmul.f32 %v2034, %v2490
  %v2555 = vmul.f32 %v2036, %v2491
  %v2556 = vmul.f32 %v2038, %v2492
  %v2557 = vmul.f32 %v2040, %v2493
  %v2558 = vmul.f32 %v2042, %v2494
  %v2559 = vmul.f32 %v2044, %v2495
  %v2560 = vmul.f32 %v2046, %v2496
  %v2561 = vmul.f32 %v2048, %v2497
  %v2562 = vmul.f32 %v2050, %v2498
  %v2563 = vsel %vm1666, %v314, 0
  %v2566 = vsel %vm1666, %v2499, 0
  %v2569 = vsel %vm1666, %v2500, 0
  %v2572 = vsel %vm1666, %v2501, 0
  %v2575 = vsel %vm1666, %v2502, 0
  %v2578 = vsel %vm1666, %v2503, 0
  %v2581 = vsel %vm1666, %v2504, 0
  %v2584 = vsel %vm1666, %v2505, 0
  %v2587 = vsel %vm1666, %v2506, 0
  %2589 = vmatprep.subr.mxu0 0.0
  %2590 = vmatpush1.xpose.msra.mxu0 0.0
  %2591 = vmatprep.subr.mxu0 0.0
  %2592 = vmatpush1.xpose.msra.mxu0 0.0
  %2593 = vmatprep.subr.mxu0 0.0
  %2594 = vmatpush1.xpose.msra.mxu0 0.0
  %2595 = vmatprep.subr.mxu0 0.0
  %2596 = vmatpush1.xpose.msra.mxu0 0.0
  %2597 = vmatprep.subr.mxu0 0.0
  %2598 = vmatpush1.xpose.msra.mxu0 0.0
  %2599 = vmatprep.subr.mxu0 0.0
  %2600 = vmatpush1.xpose.msra.mxu0 0.0
  %2601 = vmatprep.subr.mxu0 0.0
  %2602 = vmatpush1.xpose.msra.mxu0 0.0
  %2603 = vmatprep.subr.mxu0 0.0
  %2604 = vmatpush1.xpose.msra.mxu0 0.0
  %2605 = vmatprep.subr.mxu0 0.0
  %2606 = vmatpush1.xpose.msra.mxu0 %v2587
  %2607 = vmatprep.subr.mxu0 0.0
  %2608 = vmatpush1.xpose.msra.mxu0 %v2584
  %2609 = vmatprep.subr.mxu0 0.0
  %2610 = vmatpush1.xpose.msra.mxu0 %v2581
  %2611 = vmatprep.subr.mxu0 0.0
  %2612 = vmatpush1.xpose.msra.mxu0 %v2578
  %2613 = vmatprep.subr.mxu0 0.0
  %2614 = vmatpush1.xpose.msra.mxu0 %v2575
  %2615 = vmatprep.subr.mxu0 0.0
  %2616 = vmatpush1.xpose.msra.mxu0 %v2572
  %2617 = vmatprep.subr.mxu0 0.0
  %2618 = vmatpush1.xpose.msra.mxu0 %v2569
  %2619 = vmatprep.subr.mxu0 0.0
  %2620 = vmatpush1.xpose.msra.mxu0 %v2566
  %2621 = vmatprep.subr.mxu0 0.0
  %2622 = vmatpush2.xpose.msra.mxu0 0.0
  %2623 = vmatprep.subr.mxu0 0.0
  %2624 = vmatpush2.xpose.msra.mxu0 0.0
  %2625 = vmatprep.subr.mxu0 0.0
  %2626 = vmatpush2.xpose.msra.mxu0 0.0
  %2627 = vmatprep.subr.mxu0 0.0
  %2628 = vmatpush2.xpose.msra.mxu0 0.0
  %2629 = vmatprep.subr.mxu0 0.0
  %2630 = vmatpush2.xpose.msra.mxu0 0.0
  %2631 = vmatprep.subr.mxu0 0.0
  %2632 = vmatpush2.xpose.msra.mxu0 0.0
  %2633 = vmatprep.subr.mxu0 0.0
  %2634 = vmatpush2.xpose.msra.mxu0 0.0
  %2635 = vmatprep.subr.mxu0 0.0
  %2636 = vmatpush2.xpose.msra.mxu0 0.0
  %2637 = vmatprep.subr.mxu0 0.0
  %2638 = vmatpush2.xpose.msra.mxu0 0.0
  %2639 = vmatprep.subr.mxu0 0.0
  %2640 = vmatpush2.xpose.msra.mxu0 0.0
  %2641 = vmatprep.subr.mxu0 0.0
  %2642 = vmatpush2.xpose.msra.mxu0 0.0
  %2643 = vmatprep.subr.mxu0 0.0
  %2644 = vmatpush2.xpose.msra.mxu0 0.0
  %2645 = vmatprep.subr.mxu0 0.0
  %2646 = vmatpush2.xpose.msra.mxu0 0.0
  %2647 = vmatprep.subr.mxu0 0.0
  %2648 = vmatpush2.xpose.msra.mxu0 0.0
  %2649 = vmatprep.subr.mxu0 0.0
  %2650 = vmatpush2.xpose.msra.mxu0 0.0
  %2651 = vmatprep.subr.mxu0 0.0
  %2652 = vmatpush2.xpose.msra.mxu0 0.0
  %2653 = vmatprep.mubr.f32.mxu0 0.0
  %2654 = vmatmul.mubr.f32.gmra.mxu0 %v2563
  %v2655 = vpop.f32.mrf.mxu0
  %v2656 = vadd.f32 0.0, %v2655
  %v2657 = vpop.f32.mrf.mxu0
  %2658 = vdwg.mxu0
  %v2659 = vsel %vm1666, %v356, 0
  %v2662 = vsel %vm1666, %v2507, 0
  %v2665 = vsel %vm1666, %v2508, 0
  %v2668 = vsel %vm1666, %v2509, 0
  %v2671 = vsel %vm1666, %v2510, 0
  %v2674 = vsel %vm1666, %v2511, 0
  %v2677 = vsel %vm1666, %v2512, 0
  %v2680 = vsel %vm1666, %v2513, 0
  %v2683 = vsel %vm1666, %v2514, 0
  %2685 = vmatprep.subr.mxu0 0.0
  %2686 = vmatpush1.xpose.msra.mxu0 0.0
  %2687 = vmatprep.subr.mxu0 0.0
  %2688 = vmatpush1.xpose.msra.mxu0 0.0
  %2689 = vmatprep.subr.mxu0 0.0
  %2690 = vmatpush1.xpose.msra.mxu0 0.0
  %2691 = vmatprep.subr.mxu0 0.0
  %2692 = vmatpush1.xpose.msra.mxu0 0.0
  %2693 = vmatprep.subr.mxu0 0.0
  %2694 = vmatpush1.xpose.msra.mxu0 0.0
  %2695 = vmatprep.subr.mxu0 0.0
  %2696 = vmatpush1.xpose.msra.mxu0 0.0
  %2697 = vmatprep.subr.mxu0 0.0
  %2698 = vmatpush1.xpose.msra.mxu0 0.0
  %2699 = vmatprep.subr.mxu0 0.0
  %2700 = vmatpush1.xpose.msra.mxu0 0.0
  %2701 = vmatprep.subr.mxu0 0.0
  %2702 = vmatpush1.xpose.msra.mxu0 %v2683
  %2703 = vmatprep.subr.mxu0 0.0
  %2704 = vmatpush1.xpose.msra.mxu0 %v2680
  %2705 = vmatprep.subr.mxu0 0.0
  %2706 = vmatpush1.xpose.msra.mxu0 %v2677
  %2707 = vmatprep.subr.mxu0 0.0
  %2708 = vmatpush1.xpose.msra.mxu0 %v2674
  %2709 = vmatprep.subr.mxu0 0.0
  %2710 = vmatpush1.xpose.msra.mxu0 %v2671
  %2711 = vmatprep.subr.mxu0 0.0
  %2712 = vmatpush1.xpose.msra.mxu0 %v2668
  %2713 = vmatprep.subr.mxu0 0.0
  %2714 = vmatpush1.xpose.msra.mxu0 %v2665
  %2715 = vmatprep.subr.mxu0 0.0
  %2716 = vmatpush1.xpose.msra.mxu0 %v2662
  %2717 = vmatprep.subr.mxu0 0.0
  %2718 = vmatpush2.xpose.msra.mxu0 0.0
  %2719 = vmatprep.subr.mxu0 0.0
  %2720 = vmatpush2.xpose.msra.mxu0 0.0
  %2721 = vmatprep.subr.mxu0 0.0
  %2722 = vmatpush2.xpose.msra.mxu0 0.0
  %2723 = vmatprep.subr.mxu0 0.0
  %2724 = vmatpush2.xpose.msra.mxu0 0.0
  %2725 = vmatprep.subr.mxu0 0.0
  %2726 = vmatpush2.xpose.msra.mxu0 0.0
  %2727 = vmatprep.subr.mxu0 0.0
  %2728 = vmatpush2.xpose.msra.mxu0 0.0
  %2729 = vmatprep.subr.mxu0 0.0
  %2730 = vmatpush2.xpose.msra.mxu0 0.0
  %2731 = vmatprep.subr.mxu0 0.0
  %2732 = vmatpush2.xpose.msra.mxu0 0.0
  %2733 = vmatprep.subr.mxu0 0.0
  %2734 = vmatpush2.xpose.msra.mxu0 0.0
  %2735 = vmatprep.subr.mxu0 0.0
  %2736 = vmatpush2.xpose.msra.mxu0 0.0
  %2737 = vmatprep.subr.mxu0 0.0
  %2738 = vmatpush2.xpose.msra.mxu0 0.0
  %2739 = vmatprep.subr.mxu0 0.0
  %2740 = vmatpush2.xpose.msra.mxu0 0.0
  %2741 = vmatprep.subr.mxu0 0.0
  %2742 = vmatpush2.xpose.msra.mxu0 0.0
  %2743 = vmatprep.subr.mxu0 0.0
  %2744 = vmatpush2.xpose.msra.mxu0 0.0
  %2745 = vmatprep.subr.mxu0 0.0
  %2746 = vmatpush2.xpose.msra.mxu0 0.0
  %2747 = vmatprep.subr.mxu0 0.0
  %2748 = vmatpush2.xpose.msra.mxu0 0.0
  %2749 = vmatprep.mubr.f32.mxu0 0.0
  %2750 = vmatmul.mubr.f32.gmra.mxu0 %v2659
  %v2751 = vpop.f32.mrf.mxu0
  %v2752 = vadd.f32 0.0, %v2751
  %v2753 = vpop.f32.mrf.mxu0
  %2754 = vdwg.mxu0
  %v2755 = vsel %vm1666, %v319, 0
  %v2758 = vsel %vm1666, %v2515, 0
  %v2761 = vsel %vm1666, %v2516, 0
  %v2764 = vsel %vm1666, %v2517, 0
  %v2767 = vsel %vm1666, %v2518, 0
  %v2770 = vsel %vm1666, %v2519, 0
  %v2773 = vsel %vm1666, %v2520, 0
  %v2776 = vsel %vm1666, %v2521, 0
  %v2779 = vsel %vm1666, %v2522, 0
  %2781 = vmatprep.subr.mxu0 0.0
  %2782 = vmatpush1.xpose.msra.mxu0 0.0
  %2783 = vmatprep.subr.mxu0 0.0
  %2784 = vmatpush1.xpose.msra.mxu0 0.0
  %2785 = vmatprep.subr.mxu0 0.0
  %2786 = vmatpush1.xpose.msra.mxu0 0.0
  %2787 = vmatprep.subr.mxu0 0.0
  %2788 = vmatpush1.xpose.msra.mxu0 0.0
  %2789 = vmatprep.subr.mxu0 0.0
  %2790 = vmatpush1.xpose.msra.mxu0 0.0
  %2791 = vmatprep.subr.mxu0 0.0
  %2792 = vmatpush1.xpose.msra.mxu0 0.0
  %2793 = vmatprep.subr.mxu0 0.0
  %2794 = vmatpush1.xpose.msra.mxu0 0.0
  %2795 = vmatprep.subr.mxu0 0.0
  %2796 = vmatpush1.xpose.msra.mxu0 0.0
  %2797 = vmatprep.subr.mxu0 0.0
  %2798 = vmatpush1.xpose.msra.mxu0 %v2779
  %2799 = vmatprep.subr.mxu0 0.0
  %2800 = vmatpush1.xpose.msra.mxu0 %v2776
  %2801 = vmatprep.subr.mxu0 0.0
  %2802 = vmatpush1.xpose.msra.mxu0 %v2773
  %2803 = vmatprep.subr.mxu0 0.0
  %2804 = vmatpush1.xpose.msra.mxu0 %v2770
  %2805 = vmatprep.subr.mxu0 0.0
  %2806 = vmatpush1.xpose.msra.mxu0 %v2767
  %2807 = vmatprep.subr.mxu0 0.0
  %2808 = vmatpush1.xpose.msra.mxu0 %v2764
  %2809 = vmatprep.subr.mxu0 0.0
  %2810 = vmatpush1.xpose.msra.mxu0 %v2761
  %2811 = vmatprep.subr.mxu0 0.0
  %2812 = vmatpush1.xpose.msra.mxu0 %v2758
  %2813 = vmatprep.subr.mxu0 0.0
  %2814 = vmatpush2.xpose.msra.mxu0 0.0
  %2815 = vmatprep.subr.mxu0 0.0
  %2816 = vmatpush2.xpose.msra.mxu0 0.0
  %2817 = vmatprep.subr.mxu0 0.0
  %2818 = vmatpush2.xpose.msra.mxu0 0.0
  %2819 = vmatprep.subr.mxu0 0.0
  %2820 = vmatpush2.xpose.msra.mxu0 0.0
  %2821 = vmatprep.subr.mxu0 0.0
  %2822 = vmatpush2.xpose.msra.mxu0 0.0
  %2823 = vmatprep.subr.mxu0 0.0
  %2824 = vmatpush2.xpose.msra.mxu0 0.0
  %2825 = vmatprep.subr.mxu0 0.0
  %2826 = vmatpush2.xpose.msra.mxu0 0.0
  %2827 = vmatprep.subr.mxu0 0.0
  %2828 = vmatpush2.xpose.msra.mxu0 0.0
  %2829 = vmatprep.subr.mxu0 0.0
  %2830 = vmatpush2.xpose.msra.mxu0 0.0
  %2831 = vmatprep.subr.mxu0 0.0
  %2832 = vmatpush2.xpose.msra.mxu0 0.0
  %2833 = vmatprep.subr.mxu0 0.0
  %2834 = vmatpush2.xpose.msra.mxu0 0.0
  %2835 = vmatprep.subr.mxu0 0.0
  %2836 = vmatpush2.xpose.msra.mxu0 0.0
  %2837 = vmatprep.subr.mxu0 0.0
  %2838 = vmatpush2.xpose.msra.mxu0 0.0
  %2839 = vmatprep.subr.mxu0 0.0
  %2840 = vmatpush2.xpose.msra.mxu0 0.0
  %2841 = vmatprep.subr.mxu0 0.0
  %2842 = vmatpush2.xpose.msra.mxu0 0.0
  %2843 = vmatprep.subr.mxu0 0.0
  %2844 = vmatpush2.xpose.msra.mxu0 0.0
  %2845 = vmatprep.mubr.f32.mxu0 0.0
  %2846 = vmatmul.mubr.f32.gmra.mxu0 %v2755
  %v2847 = vpop.f32.mrf.mxu0
  %v2848 = vadd.f32 0.0, %v2847
  %v2849 = vpop.f32.mrf.mxu0
  %2850 = vdwg.mxu0
  %v2851 = vsel %vm1666, %v357, 0
  %v2854 = vsel %vm1666, %v2523, 0
  %v2857 = vsel %vm1666, %v2524, 0
  %v2860 = vsel %vm1666, %v2525, 0
  %v2863 = vsel %vm1666, %v2526, 0
  %v2866 = vsel %vm1666, %v2527, 0
  %v2869 = vsel %vm1666, %v2528, 0
  %v2872 = vsel %vm1666, %v2529, 0
  %v2875 = vsel %vm1666, %v2530, 0
  %2877 = vmatprep.subr.mxu0 0.0
  %2878 = vmatpush1.xpose.msra.mxu0 0.0
  %2879 = vmatprep.subr.mxu0 0.0
  %2880 = vmatpush1.xpose.msra.mxu0 0.0
  %2881 = vmatprep.subr.mxu0 0.0
  %2882 = vmatpush1.xpose.msra.mxu0 0.0
  %2883 = vmatprep.subr.mxu0 0.0
  %2884 = vmatpush1.xpose.msra.mxu0 0.0
  %2885 = vmatprep.subr.mxu0 0.0
  %2886 = vmatpush1.xpose.msra.mxu0 0.0
  %2887 = vmatprep.subr.mxu0 0.0
  %2888 = vmatpush1.xpose.msra.mxu0 0.0
  %2889 = vmatprep.subr.mxu0 0.0
  %2890 = vmatpush1.xpose.msra.mxu0 0.0
  %2891 = vmatprep.subr.mxu0 0.0
  %2892 = vmatpush1.xpose.msra.mxu0 0.0
  %2893 = vmatprep.subr.mxu0 0.0
  %2894 = vmatpush1.xpose.msra.mxu0 %v2875
  %2895 = vmatprep.subr.mxu0 0.0
  %2896 = vmatpush1.xpose.msra.mxu0 %v2872
  %2897 = vmatprep.subr.mxu0 0.0
  %2898 = vmatpush1.xpose.msra.mxu0 %v2869
  %2899 = vmatprep.subr.mxu0 0.0
  %2900 = vmatpush1.xpose.msra.mxu0 %v2866
  %2901 = vmatprep.subr.mxu0 0.0
  %2902 = vmatpush1.xpose.msra.mxu0 %v2863
  %2903 = vmatprep.subr.mxu0 0.0
  %2904 = vmatpush1.xpose.msra.mxu0 %v2860
  %2905 = vmatprep.subr.mxu0 0.0
  %2906 = vmatpush1.xpose.msra.mxu0 %v2857
  %2907 = vmatprep.subr.mxu0 0.0
  %2908 = vmatpush1.xpose.msra.mxu0 %v2854
  %2909 = vmatprep.subr.mxu0 0.0
  %2910 = vmatpush2.xpose.msra.mxu0 0.0
  %2911 = vmatprep.subr.mxu0 0.0
  %2912 = vmatpush2.xpose.msra.mxu0 0.0
  %2913 = vmatprep.subr.mxu0 0.0
  %2914 = vmatpush2.xpose.msra.mxu0 0.0
  %2915 = vmatprep.subr.mxu0 0.0
  %2916 = vmatpush2.xpose.msra.mxu0 0.0
  %2917 = vmatprep.subr.mxu0 0.0
  %2918 = vmatpush2.xpose.msra.mxu0 0.0
  %2919 = vmatprep.subr.mxu0 0.0
  %2920 = vmatpush2.xpose.msra.mxu0 0.0
  %2921 = vmatprep.subr.mxu0 0.0
  %2922 = vmatpush2.xpose.msra.mxu0 0.0
  %2923 = vmatprep.subr.mxu0 0.0
  %2924 = vmatpush2.xpose.msra.mxu0 0.0
  %2925 = vmatprep.subr.mxu0 0.0
  %2926 = vmatpush2.xpose.msra.mxu0 0.0
  %2927 = vmatprep.subr.mxu0 0.0
  %2928 = vmatpush2.xpose.msra.mxu0 0.0
  %2929 = vmatprep.subr.mxu0 0.0
  %2930 = vmatpush2.xpose.msra.mxu0 0.0
  %2931 = vmatprep.subr.mxu0 0.0
  %2932 = vmatpush2.xpose.msra.mxu0 0.0
  %2933 = vmatprep.subr.mxu0 0.0
  %2934 = vmatpush2.xpose.msra.mxu0 0.0
  %2935 = vmatprep.subr.mxu0 0.0
  %2936 = vmatpush2.xpose.msra.mxu0 0.0
  %2937 = vmatprep.subr.mxu0 0.0
  %2938 = vmatpush2.xpose.msra.mxu0 0.0
  %2939 = vmatprep.subr.mxu0 0.0
  %2940 = vmatpush2.xpose.msra.mxu0 0.0
  %2941 = vmatprep.mubr.f32.mxu0 0.0
  %2942 = vmatmul.mubr.f32.gmra.mxu0 %v2851
  %v2943 = vpop.f32.mrf.mxu0
  %v2944 = vadd.f32 0.0, %v2943
  %v2945 = vpop.f32.mrf.mxu0
  %2946 = vdwg.mxu0
  %v2947 = vsel %vm1666, %v324, 0
  %v2950 = vsel %vm1666, %v2531, 0
  %v2953 = vsel %vm1666, %v2532, 0
  %v2956 = vsel %vm1666, %v2533, 0
  %v2959 = vsel %vm1666, %v2534, 0
  %v2962 = vsel %vm1666, %v2535, 0
  %v2965 = vsel %vm1666, %v2536, 0
  %v2968 = vsel %vm1666, %v2537, 0
  %v2971 = vsel %vm1666, %v2538, 0
  %2973 = vmatprep.subr.mxu0 0.0
  %2974 = vmatpush1.xpose.msra.mxu0 0.0
  %2975 = vmatprep.subr.mxu0 0.0
  %2976 = vmatpush1.xpose.msra.mxu0 0.0
  %2977 = vmatprep.subr.mxu0 0.0
  %2978 = vmatpush1.xpose.msra.mxu0 0.0
  %2979 = vmatprep.subr.mxu0 0.0
  %2980 = vmatpush1.xpose.msra.mxu0 0.0
  %2981 = vmatprep.subr.mxu0 0.0
  %2982 = vmatpush1.xpose.msra.mxu0 0.0
  %2983 = vmatprep.subr.mxu0 0.0
  %2984 = vmatpush1.xpose.msra.mxu0 0.0
  %2985 = vmatprep.subr.mxu0 0.0
  %2986 = vmatpush1.xpose.msra.mxu0 0.0
  %2987 = vmatprep.subr.mxu0 0.0
  %2988 = vmatpush1.xpose.msra.mxu0 0.0
  %2989 = vmatprep.subr.mxu0 0.0
  %2990 = vmatpush1.xpose.msra.mxu0 %v2971
  %2991 = vmatprep.subr.mxu0 0.0
  %2992 = vmatpush1.xpose.msra.mxu0 %v2968
  %2993 = vmatprep.subr.mxu0 0.0
  %2994 = vmatpush1.xpose.msra.mxu0 %v2965
  %2995 = vmatprep.subr.mxu0 0.0
  %2996 = vmatpush1.xpose.msra.mxu0 %v2962
  %2997 = vmatprep.subr.mxu0 0.0
  %2998 = vmatpush1.xpose.msra.mxu0 %v2959
  %2999 = vmatprep.subr.mxu0 0.0
  %3000 = vmatpush1.xpose.msra.mxu0 %v2956
  %3001 = vmatprep.subr.mxu0 0.0
  %3002 = vmatpush1.xpose.msra.mxu0 %v2953
  %3003 = vmatprep.subr.mxu0 0.0
  %3004 = vmatpush1.xpose.msra.mxu0 %v2950
  %3005 = vmatprep.subr.mxu0 0.0
  %3006 = vmatpush2.xpose.msra.mxu0 0.0
  %3007 = vmatprep.subr.mxu0 0.0
  %3008 = vmatpush2.xpose.msra.mxu0 0.0
  %3009 = vmatprep.subr.mxu0 0.0
  %3010 = vmatpush2.xpose.msra.mxu0 0.0
  %3011 = vmatprep.subr.mxu0 0.0
  %3012 = vmatpush2.xpose.msra.mxu0 0.0
  %3013 = vmatprep.subr.mxu0 0.0
  %3014 = vmatpush2.xpose.msra.mxu0 0.0
  %3015 = vmatprep.subr.mxu0 0.0
  %3016 = vmatpush2.xpose.msra.mxu0 0.0
  %3017 = vmatprep.subr.mxu0 0.0
  %3018 = vmatpush2.xpose.msra.mxu0 0.0
  %3019 = vmatprep.subr.mxu0 0.0
  %3020 = vmatpush2.xpose.msra.mxu0 0.0
  %3021 = vmatprep.subr.mxu0 0.0
  %3022 = vmatpush2.xpose.msra.mxu0 0.0
  %3023 = vmatprep.subr.mxu0 0.0
  %3024 = vmatpush2.xpose.msra.mxu0 0.0
  %3025 = vmatprep.subr.mxu0 0.0
  %3026 = vmatpush2.xpose.msra.mxu0 0.0
  %3027 = vmatprep.subr.mxu0 0.0
  %3028 = vmatpush2.xpose.msra.mxu0 0.0
  %3029 = vmatprep.subr.mxu0 0.0
  %3030 = vmatpush2.xpose.msra.mxu0 0.0
  %3031 = vmatprep.subr.mxu0 0.0
  %3032 = vmatpush2.xpose.msra.mxu0 0.0
  %3033 = vmatprep.subr.mxu0 0.0
  %3034 = vmatpush2.xpose.msra.mxu0 0.0
  %3035 = vmatprep.subr.mxu0 0.0
  %3036 = vmatpush2.xpose.msra.mxu0 0.0
  %3037 = vmatprep.mubr.f32.mxu0 0.0
  %3038 = vmatmul.mubr.f32.gmra.mxu0 %v2947
  %v3039 = vpop.f32.mrf.mxu0
  %v3040 = vadd.f32 0.0, %v3039
  %v3041 = vpop.f32.mrf.mxu0
  %3042 = vdwg.mxu0
  %v3043 = vsel %vm1666, %v358, 0
  %v3046 = vsel %vm1666, %v2539, 0
  %v3049 = vsel %vm1666, %v2540, 0
  %v3052 = vsel %vm1666, %v2541, 0
  %v3055 = vsel %vm1666, %v2542, 0
  %v3058 = vsel %vm1666, %v2543, 0
  %v3061 = vsel %vm1666, %v2544, 0
  %v3064 = vsel %vm1666, %v2545, 0
  %v3067 = vsel %vm1666, %v2546, 0
  %3069 = vmatprep.subr.mxu0 0.0
  %3070 = vmatpush1.xpose.msra.mxu0 0.0
  %3071 = vmatprep.subr.mxu0 0.0
  %3072 = vmatpush1.xpose.msra.mxu0 0.0
  %3073 = vmatprep.subr.mxu0 0.0
  %3074 = vmatpush1.xpose.msra.mxu0 0.0
  %3075 = vmatprep.subr.mxu0 0.0
  %3076 = vmatpush1.xpose.msra.mxu0 0.0
  %3077 = vmatprep.subr.mxu0 0.0
  %3078 = vmatpush1.xpose.msra.mxu0 0.0
  %3079 = vmatprep.subr.mxu0 0.0
  %3080 = vmatpush1.xpose.msra.mxu0 0.0
  %3081 = vmatprep.subr.mxu0 0.0
  %3082 = vmatpush1.xpose.msra.mxu0 0.0
  %3083 = vmatprep.subr.mxu0 0.0
  %3084 = vmatpush1.xpose.msra.mxu0 0.0
  %3085 = vmatprep.subr.mxu0 0.0
  %3086 = vmatpush1.xpose.msra.mxu0 %v3067
  %3087 = vmatprep.subr.mxu0 0.0
  %3088 = vmatpush1.xpose.msra.mxu0 %v3064
  %3089 = vmatprep.subr.mxu0 0.0
  %3090 = vmatpush1.xpose.msra.mxu0 %v3061
  %3091 = vmatprep.subr.mxu0 0.0
  %3092 = vmatpush1.xpose.msra.mxu0 %v3058
  %3093 = vmatprep.subr.mxu0 0.0
  %3094 = vmatpush1.xpose.msra.mxu0 %v3055
  %3095 = vmatprep.subr.mxu0 0.0
  %3096 = vmatpush1.xpose.msra.mxu0 %v3052
  %3097 = vmatprep.subr.mxu0 0.0
  %3098 = vmatpush1.xpose.msra.mxu0 %v3049
  %3099 = vmatprep.subr.mxu0 0.0
  %3100 = vmatpush1.xpose.msra.mxu0 %v3046
  %3101 = vmatprep.subr.mxu0 0.0
  %3102 = vmatpush2.xpose.msra.mxu0 0.0
  %3103 = vmatprep.subr.mxu0 0.0
  %3104 = vmatpush2.xpose.msra.mxu0 0.0
  %3105 = vmatprep.subr.mxu0 0.0
  %3106 = vmatpush2.xpose.msra.mxu0 0.0
  %3107 = vmatprep.subr.mxu0 0.0
  %3108 = vmatpush2.xpose.msra.mxu0 0.0
  %3109 = vmatprep.subr.mxu0 0.0
  %3110 = vmatpush2.xpose.msra.mxu0 0.0
  %3111 = vmatprep.subr.mxu0 0.0
  %3112 = vmatpush2.xpose.msra.mxu0 0.0
  %3113 = vmatprep.subr.mxu0 0.0
  %3114 = vmatpush2.xpose.msra.mxu0 0.0
  %3115 = vmatprep.subr.mxu0 0.0
  %3116 = vmatpush2.xpose.msra.mxu0 0.0
  %3117 = vmatprep.subr.mxu0 0.0
  %3118 = vmatpush2.xpose.msra.mxu0 0.0
  %3119 = vmatprep.subr.mxu0 0.0
  %3120 = vmatpush2.xpose.msra.mxu0 0.0
  %3121 = vmatprep.subr.mxu0 0.0
  %3122 = vmatpush2.xpose.msra.mxu0 0.0
  %3123 = vmatprep.subr.mxu0 0.0
  %3124 = vmatpush2.xpose.msra.mxu0 0.0
  %3125 = vmatprep.subr.mxu0 0.0
  %3126 = vmatpush2.xpose.msra.mxu0 0.0
  %3127 = vmatprep.subr.mxu0 0.0
  %3128 = vmatpush2.xpose.msra.mxu0 0.0
  %3129 = vmatprep.subr.mxu0 0.0
  %3130 = vmatpush2.xpose.msra.mxu0 0.0
  %3131 = vmatprep.subr.mxu0 0.0
  %3132 = vmatpush2.xpose.msra.mxu0 0.0
  %3133 = vmatprep.mubr.f32.mxu0 0.0
  %3134 = vmatmul.mubr.f32.gmra.mxu0 %v3043
  %v3135 = vpop.f32.mrf.mxu0
  %v3136 = vadd.f32 0.0, %v3135
  %v3137 = vpop.f32.mrf.mxu0
  %3138 = vdwg.mxu0
  %v3139 = vsel %vm1666, %v329, 0
  %v3142 = vsel %vm1666, %v2547, 0
  %v3145 = vsel %vm1666, %v2548, 0
  %v3148 = vsel %vm1666, %v2549, 0
  %v3151 = vsel %vm1666, %v2550, 0
  %v3154 = vsel %vm1666, %v2551, 0
  %v3157 = vsel %vm1666, %v2552, 0
  %v3160 = vsel %vm1666, %v2553, 0
  %v3163 = vsel %vm1666, %v2554, 0
  %3165 = vmatprep.subr.mxu0 0.0
  %3166 = vmatpush1.xpose.msra.mxu0 0.0
  %3167 = vmatprep.subr.mxu0 0.0
  %3168 = vmatpush1.xpose.msra.mxu0 0.0
  %3169 = vmatprep.subr.mxu0 0.0
  %3170 = vmatpush1.xpose.msra.mxu0 0.0
  %3171 = vmatprep.subr.mxu0 0.0
  %3172 = vmatpush1.xpose.msra.mxu0 0.0
  %3173 = vmatprep.subr.mxu0 0.0
  %3174 = vmatpush1.xpose.msra.mxu0 0.0
  %3175 = vmatprep.subr.mxu0 0.0
  %3176 = vmatpush1.xpose.msra.mxu0 0.0
  %3177 = vmatprep.subr.mxu0 0.0
  %3178 = vmatpush1.xpose.msra.mxu0 0.0
  %3179 = vmatprep.subr.mxu0 0.0
  %3180 = vmatpush1.xpose.msra.mxu0 0.0
  %3181 = vmatprep.subr.mxu0 0.0
  %3182 = vmatpush1.xpose.msra.mxu0 %v3163
  %3183 = vmatprep.subr.mxu0 0.0
  %3184 = vmatpush1.xpose.msra.mxu0 %v3160
  %3185 = vmatprep.subr.mxu0 0.0
  %3186 = vmatpush1.xpose.msra.mxu0 %v3157
  %3187 = vmatprep.subr.mxu0 0.0
  %3188 = vmatpush1.xpose.msra.mxu0 %v3154
  %3189 = vmatprep.subr.mxu0 0.0
  %3190 = vmatpush1.xpose.msra.mxu0 %v3151
  %3191 = vmatprep.subr.mxu0 0.0
  %3192 = vmatpush1.xpose.msra.mxu0 %v3148
  %3193 = vmatprep.subr.mxu0 0.0
  %3194 = vmatpush1.xpose.msra.mxu0 %v3145
  %3195 = vmatprep.subr.mxu0 0.0
  %3196 = vmatpush1.xpose.msra.mxu0 %v3142
  %3197 = vmatprep.subr.mxu0 0.0
  %3198 = vmatpush2.xpose.msra.mxu0 0.0
  %3199 = vmatprep.subr.mxu0 0.0
  %3200 = vmatpush2.xpose.msra.mxu0 0.0
  %3201 = vmatprep.subr.mxu0 0.0
  %3202 = vmatpush2.xpose.msra.mxu0 0.0
  %3203 = vmatprep.subr.mxu0 0.0
  %3204 = vmatpush2.xpose.msra.mxu0 0.0
  %3205 = vmatprep.subr.mxu0 0.0
  %3206 = vmatpush2.xpose.msra.mxu0 0.0
  %3207 = vmatprep.subr.mxu0 0.0
  %3208 = vmatpush2.xpose.msra.mxu0 0.0
  %3209 = vmatprep.subr.mxu0 0.0
  %3210 = vmatpush2.xpose.msra.mxu0 0.0
  %3211 = vmatprep.subr.mxu0 0.0
  %3212 = vmatpush2.xpose.msra.mxu0 0.0
  %3213 = vmatprep.subr.mxu0 0.0
  %3214 = vmatpush2.xpose.msra.mxu0 0.0
  %3215 = vmatprep.subr.mxu0 0.0
  %3216 = vmatpush2.xpose.msra.mxu0 0.0
  %3217 = vmatprep.subr.mxu0 0.0
  %3218 = vmatpush2.xpose.msra.mxu0 0.0
  %3219 = vmatprep.subr.mxu0 0.0
  %3220 = vmatpush2.xpose.msra.mxu0 0.0
  %3221 = vmatprep.subr.mxu0 0.0
  %3222 = vmatpush2.xpose.msra.mxu0 0.0
  %3223 = vmatprep.subr.mxu0 0.0
  %3224 = vmatpush2.xpose.msra.mxu0 0.0
  %3225 = vmatprep.subr.mxu0 0.0
  %3226 = vmatpush2.xpose.msra.mxu0 0.0
  %3227 = vmatprep.subr.mxu0 0.0
  %3228 = vmatpush2.xpose.msra.mxu0 0.0
  %3229 = vmatprep.mubr.f32.mxu0 0.0
  %3230 = vmatmul.mubr.f32.gmra.mxu0 %v3139
  %v3231 = vpop.f32.mrf.mxu0
  %v3232 = vadd.f32 0.0, %v3231
  %v3233 = vpop.f32.mrf.mxu0
  %3234 = vdwg.mxu0
  %v3235 = vsel %vm1666, %v359, 0
  %v3238 = vsel %vm1666, %v2555, 0
  %v3241 = vsel %vm1666, %v2556, 0
  %v3244 = vsel %vm1666, %v2557, 0
  %v3247 = vsel %vm1666, %v2558, 0
  %v3250 = vsel %vm1666, %v2559, 0
  %v3253 = vsel %vm1666, %v2560, 0
  %v3256 = vsel %vm1666, %v2561, 0
  %v3259 = vsel %vm1666, %v2562, 0
  %3261 = vmatprep.subr.mxu0 0.0
  %3262 = vmatpush1.xpose.msra.mxu0 0.0
  %3263 = vmatprep.subr.mxu0 0.0
  %3264 = vmatpush1.xpose.msra.mxu0 0.0
  %3265 = vmatprep.subr.mxu0 0.0
  %3266 = vmatpush1.xpose.msra.mxu0 0.0
  %3267 = vmatprep.subr.mxu0 0.0
  %3268 = vmatpush1.xpose.msra.mxu0 0.0
  %3269 = vmatprep.subr.mxu0 0.0
  %3270 = vmatpush1.xpose.msra.mxu0 0.0
  %3271 = vmatprep.subr.mxu0 0.0
  %3272 = vmatpush1.xpose.msra.mxu0 0.0
  %3273 = vmatprep.subr.mxu0 0.0
  %3274 = vmatpush1.xpose.msra.mxu0 0.0
  %3275 = vmatprep.subr.mxu0 0.0
  %3276 = vmatpush1.xpose.msra.mxu0 0.0
  %3277 = vmatprep.subr.mxu0 0.0
  %3278 = vmatpush1.xpose.msra.mxu0 %v3259
  %3279 = vmatprep.subr.mxu0 0.0
  %3280 = vmatpush1.xpose.msra.mxu0 %v3256
  %3281 = vmatprep.subr.mxu0 0.0
  %3282 = vmatpush1.xpose.msra.mxu0 %v3253
  %3283 = vmatprep.subr.mxu0 0.0
  %3284 = vmatpush1.xpose.msra.mxu0 %v3250
  %3285 = vmatprep.subr.mxu0 0.0
  %3286 = vmatpush1.xpose.msra.mxu0 %v3247
  %3287 = vmatprep.subr.mxu0 0.0
  %3288 = vmatpush1.xpose.msra.mxu0 %v3244
  %3289 = vmatprep.subr.mxu0 0.0
  %3290 = vmatpush1.xpose.msra.mxu0 %v3241
  %3291 = vmatprep.subr.mxu0 0.0
  %3292 = vmatpush1.xpose.msra.mxu0 %v3238
  %3293 = vmatprep.subr.mxu0 0.0
  %3294 = vmatpush2.xpose.msra.mxu0 0.0
  %3295 = vmatprep.subr.mxu0 0.0
  %3296 = vmatpush2.xpose.msra.mxu0 0.0
  %3297 = vmatprep.subr.mxu0 0.0
  %3298 = vmatpush2.xpose.msra.mxu0 0.0
  %3299 = vmatprep.subr.mxu0 0.0
  %3300 = vmatpush2.xpose.msra.mxu0 0.0
  %3301 = vmatprep.subr.mxu0 0.0
  %3302 = vmatpush2.xpose.msra.mxu0 0.0
  %3303 = vmatprep.subr.mxu0 0.0
  %3304 = vmatpush2.xpose.msra.mxu0 0.0
  %3305 = vmatprep.subr.mxu0 0.0
  %3306 = vmatpush2.xpose.msra.mxu0 0.0
  %3307 = vmatprep.subr.mxu0 0.0
  %3308 = vmatpush2.xpose.msra.mxu0 0.0
  %3309 = vmatprep.subr.mxu0 0.0
  %3310 = vmatpush2.xpose.msra.mxu0 0.0
  %3311 = vmatprep.subr.mxu0 0.0
  %3312 = vmatpush2.xpose.msra.mxu0 0.0
  %3313 = vmatprep.subr.mxu0 0.0
  %3314 = vmatpush2.xpose.msra.mxu0 0.0
  %3315 = vmatprep.subr.mxu0 0.0
  %3316 = vmatpush2.xpose.msra.mxu0 0.0
  %3317 = vmatprep.subr.mxu0 0.0
  %3318 = vmatpush2.xpose.msra.mxu0 0.0
  %3319 = vmatprep.subr.mxu0 0.0
  %3320 = vmatpush2.xpose.msra.mxu0 0.0
  %3321 = vmatprep.subr.mxu0 0.0
  %3322 = vmatpush2.xpose.msra.mxu0 0.0
  %3323 = vmatprep.subr.mxu0 0.0
  %3324 = vmatpush2.xpose.msra.mxu0 0.0
  %3325 = vmatprep.mubr.f32.mxu0 0.0
  %3326 = vmatmul.mubr.f32.gmra.mxu0 %v3235
  %v3327 = vpop.f32.mrf.mxu0
  %v3328 = vadd.f32 0.0, %v3327
  %v3329 = vpop.f32.mrf.mxu0
  %3330 = vdwg.mxu0
  %v3339 = vcombine.low %v2656, %v2752
  %v3340 = vcombine.low %v2848, %v2944
  %v3341 = vcombine.low %v3040, %v3136
  %v3342 = vcombine.low %v3232, %v3328
  %v3343 = vsel %vm1666, %v3339, 0
  %v3345 = vsel %vm1666, %v3340, 0
  %v3347 = vsel %vm1666, %v3341, 0
  %v3349 = vsel %vm1666, %v3342, 0
  %3351 = vmatprep.subr.mxu0 0.0
  %3352 = vmatpush1.msra.mxu0 0.0
  %3353 = vmatprep.subr.mxu0 0.0
  %3354 = vmatpush1.msra.mxu0 0.0
  %3355 = vmatprep.subr.mxu0 0.0
  %3356 = vmatpush1.msra.mxu0 0.0
  %3357 = vmatprep.subr.mxu0 0.0
  %3358 = vmatpush1.msra.mxu0 0.0
  %3359 = vmatprep.subr.mxu0 0.0
  %3360 = vmatpush1.msra.mxu0 0.0
  %3361 = vmatprep.subr.mxu0 0.0
  %3362 = vmatpush1.msra.mxu0 0.0
  %3363 = vmatprep.subr.mxu0 0.0
  %3364 = vmatpush1.msra.mxu0 0.0
  %3365 = vmatprep.subr.mxu0 0.0
  %3366 = vmatpush1.msra.mxu0 0.0
  %3367 = vmatprep.subr.mxu0 %v76
  %3368 = vmatpush1.msra.mxu0 %v75
  %3369 = vmatprep.subr.mxu0 %v74
  %3370 = vmatpush1.msra.mxu0 %v73
  %3371 = vmatprep.subr.mxu0 %v72
  %3372 = vmatpush1.msra.mxu0 %v71
  %3373 = vmatprep.subr.mxu0 %v70
  %3374 = vmatpush1.msra.mxu0 %v69
  %3375 = vmatprep.subr.mxu0 %v68
  %3376 = vmatpush1.msra.mxu0 %v67
  %3377 = vmatprep.subr.mxu0 %v66
  %3378 = vmatpush1.msra.mxu0 %v65
  %3379 = vmatprep.subr.mxu0 %v64
  %3380 = vmatpush1.msra.mxu0 %v63
  %3381 = vmatprep.subr.mxu0 %v62
  %3382 = vmatpush1.msra.mxu0 %v61
  %3383 = vmatprep.subr.mxu0 0.0
  %3384 = vmatpush2.msra.mxu0 0.0
  %3385 = vmatprep.subr.mxu0 0.0
  %3386 = vmatpush2.msra.mxu0 0.0
  %3387 = vmatprep.subr.mxu0 0.0
  %3388 = vmatpush2.msra.mxu0 0.0
  %3389 = vmatprep.subr.mxu0 0.0
  %3390 = vmatpush2.msra.mxu0 0.0
  %3391 = vmatprep.subr.mxu0 0.0
  %3392 = vmatpush2.msra.mxu0 0.0
  %3393 = vmatprep.subr.mxu0 0.0
  %3394 = vmatpush2.msra.mxu0 0.0
  %3395 = vmatprep.subr.mxu0 0.0
  %3396 = vmatpush2.msra.mxu0 0.0
  %3397 = vmatprep.subr.mxu0 0.0
  %3398 = vmatpush2.msra.mxu0 0.0
  %3399 = vmatprep.subr.mxu0 0.0
  %3400 = vmatpush2.msra.mxu0 0.0
  %3401 = vmatprep.subr.mxu0 0.0
  %3402 = vmatpush2.msra.mxu0 0.0
  %3403 = vmatprep.subr.mxu0 0.0
  %3404 = vmatpush2.msra.mxu0 0.0
  %3405 = vmatprep.subr.mxu0 0.0
  %3406 = vmatpush2.msra.mxu0 0.0
  %3407 = vmatprep.subr.mxu0 0.0
  %3408 = vmatpush2.msra.mxu0 0.0
  %3409 = vmatprep.subr.mxu0 0.0
  %3410 = vmatpush2.msra.mxu0 0.0
  %3411 = vmatprep.subr.mxu0 0.0
  %3412 = vmatpush2.msra.mxu0 0.0
  %3413 = vmatprep.subr.mxu0 0.0
  %3414 = vmatpush2.msra.mxu0 0.0
  %3415 = vmatprep.mubr.f32.mxu0 0.0
  %3416 = vmatmul.mubr.f32.gmra.mxu0 %v3343
  %v3417 = vpop.f32.mrf.mxu0
  %v3418 = vadd.f32 0.0, %v3417
  %v3419 = vpop.f32.mrf.mxu0
  %v3420 = vadd.f32 0.0, %v3419
  %3421 = vmatprep.mubr.f32.mxu0 0.0
  %3422 = vmatmul.mubr.f32.gmra.mxu0 %v3345
  %v3423 = vpop.f32.mrf.mxu0
  %v3424 = vadd.f32 0.0, %v3423
  %v3425 = vpop.f32.mrf.mxu0
  %v3426 = vadd.f32 0.0, %v3425
  %3427 = vmatprep.mubr.f32.mxu0 0.0
  %3428 = vmatmul.mubr.f32.gmra.mxu0 %v3347
  %v3429 = vpop.f32.mrf.mxu0
  %v3430 = vadd.f32 0.0, %v3429
  %v3431 = vpop.f32.mrf.mxu0
  %v3432 = vadd.f32 0.0, %v3431
  %3433 = vmatprep.mubr.f32.mxu0 0.0
  %3434 = vmatmul.mubr.f32.gmra.mxu0 %v3349
  %v3435 = vpop.f32.mrf.mxu0
  %v3436 = vadd.f32 0.0, %v3435
  %v3437 = vpop.f32.mrf.mxu0
  %v3438 = vadd.f32 0.0, %v3437
  %3439 = vdwg.mxu0
  %3440 = vst [vmem:[%s4] sm:$0xff] %v3418
  %3441 = vst [vmem:[%s4 + $0x8] sm:$0xff] %v3420
  %3442 = vst [vmem:[%s4 + $0x10] sm:$0xff] %v3424
  %3443 = vst [vmem:[%s4 + $0x18] sm:$0xff] %v3426
  %3444 = vst [vmem:[%s4 + $0x20] sm:$0xff] %v3430
  %3445 = vst [vmem:[%s4 + $0x28] sm:$0xff] %v3432
  %3446 = vst [vmem:[%s4 + $0x30] sm:$0xff] %v3436
  %3447 = vst [vmem:[%s4 + $0x38] sm:$0xff] %v3438
  %s3448 = scalar_lea.vmem %s0, 64
  %v3449 = vld [vmem:[%s3448] sm:$0xff]
  %v3450 = vld [vmem:[%s3448 + $0x8] sm:$0xff]
  %v3451 = vld [vmem:[%s3448 + $0x10] sm:$0xff]
  %v3452 = vld [vmem:[%s3448 + $0x18] sm:$0xff]
  %v3453 = vld [vmem:[%s3448 + $0x20] sm:$0xff]
  %v3454 = vld [vmem:[%s3448 + $0x28] sm:$0xff]
  %v3455 = vld [vmem:[%s3448 + $0x30] sm:$0xff]
  %v3456 = vld [vmem:[%s3448 + $0x38] sm:$0xff]
  %3457 = vmatprep.subr.mxu0 0.0
  %3458 = vmatpush1.msra.mxu0 %v44
  %3459 = vmatprep.subr.mxu0 0.0
  %3460 = vmatpush1.msra.mxu0 %v43
  %3461 = vmatprep.subr.mxu0 0.0
  %3462 = vmatpush1.msra.mxu0 %v42
  %3463 = vmatprep.subr.mxu0 0.0
  %3464 = vmatpush1.msra.mxu0 %v41
  %3465 = vmatprep.subr.mxu0 0.0
  %3466 = vmatpush1.msra.mxu0 %v40
  %3467 = vmatprep.subr.mxu0 0.0
  %3468 = vmatpush1.msra.mxu0 %v39
  %3469 = vmatprep.subr.mxu0 0.0
  %3470 = vmatpush1.msra.mxu0 %v38
  %3471 = vmatprep.subr.mxu0 0.0
  %3472 = vmatpush1.msra.mxu0 %v37
  %3473 = vmatprep.subr.mxu0 0.0
  %3474 = vmatpush1.msra.mxu0 %v36
  %3475 = vmatprep.subr.mxu0 0.0
  %3476 = vmatpush1.msra.mxu0 %v35
  %3477 = vmatprep.subr.mxu0 0.0
  %3478 = vmatpush1.msra.mxu0 %v34
  %3479 = vmatprep.subr.mxu0 0.0
  %3480 = vmatpush1.msra.mxu0 %v33
  %3481 = vmatprep.subr.mxu0 0.0
  %3482 = vmatpush1.msra.mxu0 %v32
  %3483 = vmatprep.subr.mxu0 0.0
  %3484 = vmatpush1.msra.mxu0 %v31
  %3485 = vmatprep.subr.mxu0 0.0
  %3486 = vmatpush1.msra.mxu0 %v30
  %3487 = vmatprep.subr.mxu0 0.0
  %3488 = vmatpush1.msra.mxu0 %v29
  %3489 = vmatprep.subr.mxu0 0.0
  %3490 = vmatpush2.msra.mxu0 %v60
  %3491 = vmatprep.subr.mxu0 0.0
  %3492 = vmatpush2.msra.mxu0 %v59
  %3493 = vmatprep.subr.mxu0 0.0
  %3494 = vmatpush2.msra.mxu0 %v58
  %3495 = vmatprep.subr.mxu0 0.0
  %3496 = vmatpush2.msra.mxu0 %v57
  %3497 = vmatprep.subr.mxu0 0.0
  %3498 = vmatpush2.msra.mxu0 %v56
  %3499 = vmatprep.subr.mxu0 0.0
  %3500 = vmatpush2.msra.mxu0 %v55
  %3501 = vmatprep.subr.mxu0 0.0
  %3502 = vmatpush2.msra.mxu0 %v54
  %3503 = vmatprep.subr.mxu0 0.0
  %3504 = vmatpush2.msra.mxu0 %v53
  %3505 = vmatprep.subr.mxu0 0.0
  %3506 = vmatpush2.msra.mxu0 %v52
  %3507 = vmatprep.subr.mxu0 0.0
  %3508 = vmatpush2.msra.mxu0 %v51
  %3509 = vmatprep.subr.mxu0 0.0
  %3510 = vmatpush2.msra.mxu0 %v50
  %3511 = vmatprep.subr.mxu0 0.0
  %3512 = vmatpush2.msra.mxu0 %v49
  %3513 = vmatprep.subr.mxu0 0.0
  %3514 = vmatpush2.msra.mxu0 %v48
  %3515 = vmatprep.subr.mxu0 0.0
  %3516 = vmatpush2.msra.mxu0 %v47
  %3517 = vmatprep.subr.mxu0 0.0
  %3518 = vmatpush2.msra.mxu0 %v46
  %3519 = vmatprep.subr.mxu0 0.0
  %3520 = vmatpush2.msra.mxu0 %v45
  %3521 = vmatprep.mubr.f32.mxu0 %v3450
  %3522 = vmatmul.mubr.f32.gmra.mxu0 %v3449
  %v3523 = vpop.f32.mrf.mxu0
  %v3524 = vadd.f32 0.0, %v3523
  %v3525 = vpop.f32.mrf.mxu0
  %3526 = vmatprep.mubr.f32.mxu0 %v3452
  %3527 = vmatmul.mubr.f32.gmra.mxu0 %v3451
  %v3528 = vpop.f32.mrf.mxu0
  %v3529 = vadd.f32 0.0, %v3528
  %v3530 = vpop.f32.mrf.mxu0
  %3531 = vmatprep.mubr.f32.mxu0 %v3454
  %3532 = vmatmul.mubr.f32.gmra.mxu0 %v3453
  %v3533 = vpop.f32.mrf.mxu0
  %v3534 = vadd.f32 0.0, %v3533
  %v3535 = vpop.f32.mrf.mxu0
  %3536 = vmatprep.mubr.f32.mxu0 %v3456
  %3537 = vmatmul.mubr.f32.gmra.mxu0 %v3455
  %v3538 = vpop.f32.mrf.mxu0
  %v3539 = vadd.f32 0.0, %v3538
  %v3540 = vpop.f32.mrf.mxu0
  %3541 = vdwg.mxu0
  %3542 = vmatprep.subr.mxu0 0.0
  %3543 = vmatpush1.msra.mxu0 0.0
  %3544 = vmatprep.subr.mxu0 0.0
  %3545 = vmatpush1.msra.mxu0 0.0
  %3546 = vmatprep.subr.mxu0 0.0
  %3547 = vmatpush1.msra.mxu0 0.0
  %3548 = vmatprep.subr.mxu0 0.0
  %3549 = vmatpush1.msra.mxu0 0.0
  %3550 = vmatprep.subr.mxu0 0.0
  %3551 = vmatpush1.msra.mxu0 0.0
  %3552 = vmatprep.subr.mxu0 0.0
  %3553 = vmatpush1.msra.mxu0 0.0
  %3554 = vmatprep.subr.mxu0 0.0
  %3555 = vmatpush1.msra.mxu0 0.0
  %3556 = vmatprep.subr.mxu0 0.0
  %3557 = vmatpush1.msra.mxu0 0.0
  %3558 = vmatprep.subr.mxu0 0.0
  %3559 = vmatpush1.msra.mxu0 0.0
  %3560 = vmatprep.subr.mxu0 0.0
  %3561 = vmatpush1.msra.mxu0 0.0
  %3562 = vmatprep.subr.mxu0 0.0
  %3563 = vmatpush1.msra.mxu0 0.0
  %3564 = vmatprep.subr.mxu0 0.0
  %3565 = vmatpush1.msra.mxu0 0.0
  %3566 = vmatprep.subr.mxu0 0.0
  %3567 = vmatpush1.msra.mxu0 %v3539
  %3568 = vmatprep.subr.mxu0 0.0
  %3569 = vmatpush1.msra.mxu0 %v3534
  %3570 = vmatprep.subr.mxu0 0.0
  %3571 = vmatpush1.msra.mxu0 %v3529
  %3572 = vmatprep.subr.mxu0 0.0
  %3573 = vmatpush1.msra.mxu0 %v3524
  %3574 = vmatprep.subr.mxu0 0.0
  %3575 = vmatpush2.msra.mxu0 0.0
  %3576 = vmatprep.subr.mxu0 0.0
  %3577 = vmatpush2.msra.mxu0 0.0
  %3578 = vmatprep.subr.mxu0 0.0
  %3579 = vmatpush2.msra.mxu0 0.0
  %3580 = vmatprep.subr.mxu0 0.0
  %3581 = vmatpush2.msra.mxu0 0.0
  %3582 = vmatprep.subr.mxu0 0.0
  %3583 = vmatpush2.msra.mxu0 0.0
  %3584 = vmatprep.subr.mxu0 0.0
  %3585 = vmatpush2.msra.mxu0 0.0
  %3586 = vmatprep.subr.mxu0 0.0
  %3587 = vmatpush2.msra.mxu0 0.0
  %3588 = vmatprep.subr.mxu0 0.0
  %3589 = vmatpush2.msra.mxu0 0.0
  %3590 = vmatprep.subr.mxu0 0.0
  %3591 = vmatpush2.msra.mxu0 0.0
  %3592 = vmatprep.subr.mxu0 0.0
  %3593 = vmatpush2.msra.mxu0 0.0
  %3594 = vmatprep.subr.mxu0 0.0
  %3595 = vmatpush2.msra.mxu0 0.0
  %3596 = vmatprep.subr.mxu0 0.0
  %3597 = vmatpush2.msra.mxu0 0.0
  %3598 = vmatprep.subr.mxu0 0.0
  %3599 = vmatpush2.msra.mxu0 0.0
  %3600 = vmatprep.subr.mxu0 0.0
  %3601 = vmatpush2.msra.mxu0 0.0
  %3602 = vmatprep.subr.mxu0 0.0
  %3603 = vmatpush2.msra.mxu0 0.0
  %3604 = vmatprep.subr.mxu0 0.0
  %3605 = vmatpush2.msra.mxu0 0.0
  %3606 = vmatprep.mubr.f32.mxu0 0.0
  %3607 = vmatmul.mubr.f32.gmra.mxu0 %v172
  %v3608 = vpop.f32.mrf.mxu0
  %v3609 = vadd.f32 0.0, %v3608
  %v3610 = vpop.f32.mrf.mxu0
  %3611 = vmatprep.mubr.f32.mxu0 0.0
  %3612 = vmatmul.mubr.f32.gmra.mxu0 %v175
  %v3613 = vpop.f32.mrf.mxu0
  %v3614 = vadd.f32 0.0, %v3613
  %v3615 = vpop.f32.mrf.mxu0
  %3616 = vmatprep.mubr.f32.mxu0 0.0
  %3617 = vmatmul.mubr.f32.gmra.mxu0 %v178
  %v3618 = vpop.f32.mrf.mxu0
  %v3619 = vadd.f32 0.0, %v3618
  %v3620 = vpop.f32.mrf.mxu0
  %3621 = vmatprep.mubr.f32.mxu0 0.0
  %3622 = vmatmul.mubr.f32.gmra.mxu0 %v181
  %v3623 = vpop.f32.mrf.mxu0
  %v3624 = vadd.f32 0.0, %v3623
  %v3625 = vpop.f32.mrf.mxu0
  %3626 = vmatprep.mubr.f32.mxu0 0.0
  %3627 = vmatmul.mubr.f32.gmra.mxu0 %v184
  %v3628 = vpop.f32.mrf.mxu0
  %v3629 = vadd.f32 0.0, %v3628
  %v3630 = vpop.f32.mrf.mxu0
  %3631 = vmatprep.mubr.f32.mxu0 0.0
  %3632 = vmatmul.mubr.f32.gmra.mxu0 %v187
  %v3633 = vpop.f32.mrf.mxu0
  %v3634 = vadd.f32 0.0, %v3633
  %v3635 = vpop.f32.mrf.mxu0
  %3636 = vmatprep.mubr.f32.mxu0 0.0
  %3637 = vmatmul.mubr.f32.gmra.mxu0 %v190
  %v3638 = vpop.f32.mrf.mxu0
  %v3639 = vadd.f32 0.0, %v3638
  %v3640 = vpop.f32.mrf.mxu0
  %3641 = vmatprep.mubr.f32.mxu0 0.0
  %3642 = vmatmul.mubr.f32.gmra.mxu0 %v193
  %v3643 = vpop.f32.mrf.mxu0
  %v3644 = vadd.f32 0.0, %v3643
  %v3645 = vpop.f32.mrf.mxu0
  %3646 = vmatprep.mubr.f32.mxu0 0.0
  %3647 = vmatmul.mubr.f32.gmra.mxu0 %v196
  %v3648 = vpop.f32.mrf.mxu0
  %v3649 = vadd.f32 0.0, %v3648
  %v3650 = vpop.f32.mrf.mxu0
  %3651 = vmatprep.mubr.f32.mxu0 0.0
  %3652 = vmatmul.mubr.f32.gmra.mxu0 %v199
  %v3653 = vpop.f32.mrf.mxu0
  %v3654 = vadd.f32 0.0, %v3653
  %v3655 = vpop.f32.mrf.mxu0
  %3656 = vmatprep.mubr.f32.mxu0 0.0
  %3657 = vmatmul.mubr.f32.gmra.mxu0 %v202
  %v3658 = vpop.f32.mrf.mxu0
  %v3659 = vadd.f32 0.0, %v3658
  %v3660 = vpop.f32.mrf.mxu0
  %3661 = vmatprep.mubr.f32.mxu0 0.0
  %3662 = vmatmul.mubr.f32.gmra.mxu0 %v205
  %v3663 = vpop.f32.mrf.mxu0
  %v3664 = vadd.f32 0.0, %v3663
  %v3665 = vpop.f32.mrf.mxu0
  %3666 = vdwg.mxu0
  %v3671 = vcombine.high %v3609, %v3609
  %v3672 = vcombine.high %v3614, %v3614
  %v3673 = vcombine.high %v3619, %v3619
  %v3674 = vcombine.high %v3624, %v3624
  %v3683 = vcombine.high %v3629, %v3629
  %v3684 = vcombine.high %v3634, %v3634
  %v3685 = vcombine.high %v3639, %v3639
  %v3686 = vcombine.high %v3644, %v3644
  %v3691 = vcombine.high %v3649, %v3649
  %v3692 = vcombine.high %v3654, %v3654
  %v3693 = vcombine.high %v3659, %v3659
  %v3694 = vcombine.high %v3664, %v3664
  %3695 = vxpose.xlu0.b32.start [1/16] %v3609, 128
  %3696 = vxpose.xlu0.b32.cont [2/16] 0.0, 128
  %3697 = vxpose.xlu0.b32.cont [3/16] 0.0, 128
  %3698 = vxpose.xlu0.b32.cont [4/16] 0.0, 128
  %3699 = vxpose.xlu0.b32.cont [5/16] 0.0, 128
  %3700 = vxpose.xlu0.b32.cont [6/16] 0.0, 128
  %3701 = vxpose.xlu0.b32.cont [7/16] 0.0, 128
  %3702 = vxpose.xlu0.b32.cont [8/16] 0.0, 128
  %3703 = vxpose.xlu0.b32.cont [9/16] 0.0, 128
  %3704 = vxpose.xlu0.b32.cont [10/16] 0.0, 128
  %3705 = vxpose.xlu0.b32.cont [11/16] 0.0, 128
  %3706 = vxpose.xlu0.b32.cont [12/16] 0.0, 128
  %3707 = vxpose.xlu0.b32.cont [13/16] 0.0, 128
  %3708 = vxpose.xlu0.b32.cont [14/16] 0.0, 128
  %3709 = vxpose.xlu0.b32.cont [15/16] 0.0, 128
  %3710 = vxpose.xlu0.b32.end [16/16] 0.0, 128
  %v3711 = vpop.trf.xlu0
  %v3712 = vpop.trf.xlu0
  %v3713 = vpop.trf.xlu0
  %v3714 = vpop.trf.xlu0
  %v3715 = vpop.trf.xlu0
  %v3716 = vpop.trf.xlu0
  %v3717 = vpop.trf.xlu0
  %v3718 = vpop.trf.xlu0
  %v3719 = vpop.trf.xlu0
  %v3720 = vpop.trf.xlu0
  %v3721 = vpop.trf.xlu0
  %v3722 = vpop.trf.xlu0
  %v3723 = vpop.trf.xlu0
  %v3724 = vpop.trf.xlu0
  %v3725 = vpop.trf.xlu0
  %v3726 = vpop.trf.xlu0
  %3727 = vxpose.xlu0.b32.start [1/16] %v3671, 128
  %3728 = vxpose.xlu0.b32.cont [2/16] 0.0, 128
  %3729 = vxpose.xlu0.b32.cont [3/16] 0.0, 128
  %3730 = vxpose.xlu0.b32.cont [4/16] 0.0, 128
  %3731 = vxpose.xlu0.b32.cont [5/16] 0.0, 128
  %3732 = vxpose.xlu0.b32.cont [6/16] 0.0, 128
  %3733 = vxpose.xlu0.b32.cont [7/16] 0.0, 128
  %3734 = vxpose.xlu0.b32.cont [8/16] 0.0, 128
  %3735 = vxpose.xlu0.b32.cont [9/16] 0.0, 128
  %3736 = vxpose.xlu0.b32.cont [10/16] 0.0, 128
  %3737 = vxpose.xlu0.b32.cont [11/16] 0.0, 128
  %3738 = vxpose.xlu0.b32.cont [12/16] 0.0, 128
  %3739 = vxpose.xlu0.b32.cont [13/16] 0.0, 128
  %3740 = vxpose.xlu0.b32.cont [14/16] 0.0, 128
  %3741 = vxpose.xlu0.b32.cont [15/16] 0.0, 128
  %3742 = vxpose.xlu0.b32.end [16/16] 0.0, 128
  %v3743 = vpop.trf.xlu0
  %v3744 = vpop.trf.xlu0
  %v3745 = vpop.trf.xlu0
  %v3746 = vpop.trf.xlu0
  %v3747 = vpop.trf.xlu0
  %v3748 = vpop.trf.xlu0
  %v3749 = vpop.trf.xlu0
  %v3750 = vpop.trf.xlu0
  %v3751 = vpop.trf.xlu0
  %v3752 = vpop.trf.xlu0
  %v3753 = vpop.trf.xlu0
  %v3754 = vpop.trf.xlu0
  %v3755 = vpop.trf.xlu0
  %v3756 = vpop.trf.xlu0
  %v3757 = vpop.trf.xlu0
  %v3758 = vpop.trf.xlu0
  %3759 = vxpose.xlu0.b32.start [1/16] %v3614, 128
  %3760 = vxpose.xlu0.b32.cont [2/16] 0.0, 128
  %3761 = vxpose.xlu0.b32.cont [3/16] 0.0, 128
  %3762 = vxpose.xlu0.b32.cont [4/16] 0.0, 128
  %3763 = vxpose.xlu0.b32.cont [5/16] 0.0, 128
  %3764 = vxpose.xlu0.b32.cont [6/16] 0.0, 128
  %3765 = vxpose.xlu0.b32.cont [7/16] 0.0, 128
  %3766 = vxpose.xlu0.b32.cont [8/16] 0.0, 128
  %3767 = vxpose.xlu0.b32.cont [9/16] 0.0, 128
  %3768 = vxpose.xlu0.b32.cont [10/16] 0.0, 128
  %3769 = vxpose.xlu0.b32.cont [11/16] 0.0, 128
  %3770 = vxpose.xlu0.b32.cont [12/16] 0.0, 128
  %3771 = vxpose.xlu0.b32.cont [13/16] 0.0, 128
  %3772 = vxpose.xlu0.b32.cont [14/16] 0.0, 128
  %3773 = vxpose.xlu0.b32.cont [15/16] 0.0, 128
  %3774 = vxpose.xlu0.b32.end [16/16] 0.0, 128
  %v3775 = vpop.trf.xlu0
  %v3776 = vpop.trf.xlu0
  %v3777 = vpop.trf.xlu0
  %v3778 = vpop.trf.xlu0
  %v3779 = vpop.trf.xlu0
  %v3780 = vpop.trf.xlu0
  %v3781 = vpop.trf.xlu0
  %v3782 = vpop.trf.xlu0
  %v3783 = vpop.trf.xlu0
  %v3784 = vpop.trf.xlu0
  %v3785 = vpop.trf.xlu0
  %v3786 = vpop.trf.xlu0
  %v3787 = vpop.trf.xlu0
  %v3788 = vpop.trf.xlu0
  %v3789 = vpop.trf.xlu0
  %v3790 = vpop.trf.xlu0
  %3791 = vxpose.xlu0.b32.start [1/16] %v3672, 128
  %3792 = vxpose.xlu0.b32.cont [2/16] 0.0, 128
  %3793 = vxpose.xlu0.b32.cont [3/16] 0.0, 128
  %3794 = vxpose.xlu0.b32.cont [4/16] 0.0, 128
  %3795 = vxpose.xlu0.b32.cont [5/16] 0.0, 128
  %3796 = vxpose.xlu0.b32.cont [6/16] 0.0, 128
  %3797 = vxpose.xlu0.b32.cont [7/16] 0.0, 128
  %3798 = vxpose.xlu0.b32.cont [8/16] 0.0, 128
  %3799 = vxpose.xlu0.b32.cont [9/16] 0.0, 128
  %3800 = vxpose.xlu0.b32.cont [10/16] 0.0, 128
  %3801 = vxpose.xlu0.b32.cont [11/16] 0.0, 128
  %3802 = vxpose.xlu0.b32.cont [12/16] 0.0, 128
  %3803 = vxpose.xlu0.b32.cont [13/16] 0.0, 128
  %3804 = vxpose.xlu0.b32.cont [14/16] 0.0, 128
  %3805 = vxpose.xlu0.b32.cont [15/16] 0.0, 128
  %3806 = vxpose.xlu0.b32.end [16/16] 0.0, 128
  %v3807 = vpop.trf.xlu0
  %v3808 = vpop.trf.xlu0
  %v3809 = vpop.trf.xlu0
  %v3810 = vpop.trf.xlu0
  %v3811 = vpop.trf.xlu0
  %v3812 = vpop.trf.xlu0
  %v3813 = vpop.trf.xlu0
  %v3814 = vpop.trf.xlu0
  %v3815 = vpop.trf.xlu0
  %v3816 = vpop.trf.xlu0
  %v3817 = vpop.trf.xlu0
  %v3818 = vpop.trf.xlu0
  %v3819 = vpop.trf.xlu0
  %v3820 = vpop.trf.xlu0
  %v3821 = vpop.trf.xlu0
  %v3822 = vpop.trf.xlu0
  %3823 = vxpose.xlu0.b32.start [1/16] %v3619, 128
  %3824 = vxpose.xlu0.b32.cont [2/16] 0.0, 128
  %3825 = vxpose.xlu0.b32.cont [3/16] 0.0, 128
  %3826 = vxpose.xlu0.b32.cont [4/16] 0.0, 128
  %3827 = vxpose.xlu0.b32.cont [5/16] 0.0, 128
  %3828 = vxpose.xlu0.b32.cont [6/16] 0.0, 128
  %3829 = vxpose.xlu0.b32.cont [7/16] 0.0, 128
  %3830 = vxpose.xlu0.b32.cont [8/16] 0.0, 128
  %3831 = vxpose.xlu0.b32.cont [9/16] 0.0, 128
  %3832 = vxpose.xlu0.b32.cont [10/16] 0.0, 128
  %3833 = vxpose.xlu0.b32.cont [11/16] 0.0, 128
  %3834 = vxpose.xlu0.b32.cont [12/16] 0.0, 128
  %3835 = vxpose.xlu0.b32.cont [13/16] 0.0, 128
  %3836 = vxpose.xlu0.b32.cont [14/16] 0.0, 128
  %3837 = vxpose.xlu0.b32.cont [15/16] 0.0, 128
  %3838 = vxpose.xlu0.b32.end [16/16] 0.0, 128
  %v3839 = vpop.trf.xlu0
  %v3840 = vpop.trf.xlu0
  %v3841 = vpop.trf.xlu0
  %v3842 = vpop.trf.xlu0
  %v3843 = vpop.trf.xlu0
  %v3844 = vpop.trf.xlu0
  %v3845 = vpop.trf.xlu0
  %v3846 = vpop.trf.xlu0
  %v3847 = vpop.trf.xlu0
  %v3848 = vpop.trf.xlu0
  %v3849 = vpop.trf.xlu0
  %v3850 = vpop.trf.xlu0
  %v3851 = vpop.trf.xlu0
  %v3852 = vpop.trf.xlu0
  %v3853 = vpop.trf.xlu0
  %v3854 = vpop.trf.xlu0
  %3855 = vxpose.xlu0.b32.start [1/16] %v3673, 128
  %3856 = vxpose.xlu0.b32.cont [2/16] 0.0, 128
  %3857 = vxpose.xlu0.b32.cont [3/16] 0.0, 128
  %3858 = vxpose.xlu0.b32.cont [4/16] 0.0, 128
  %3859 = vxpose.xlu0.b32.cont [5/16] 0.0, 128
  %3860 = vxpose.xlu0.b32.cont [6/16] 0.0, 128
  %3861 = vxpose.xlu0.b32.cont [7/16] 0.0, 128
  %3862 = vxpose.xlu0.b32.cont [8/16] 0.0, 128
  %3863 = vxpose.xlu0.b32.cont [9/16] 0.0, 128
  %3864 = vxpose.xlu0.b32.cont [10/16] 0.0, 128
  %3865 = vxpose.xlu0.b32.cont [11/16] 0.0, 128
  %3866 = vxpose.xlu0.b32.cont [12/16] 0.0, 128
  %3867 = vxpose.xlu0.b32.cont [13/16] 0.0, 128
  %3868 = vxpose.xlu0.b32.cont [14/16] 0.0, 128
  %3869 = vxpose.xlu0.b32.cont [15/16] 0.0, 128
  %3870 = vxpose.xlu0.b32.end [16/16] 0.0, 128
  %v3871 = vpop.trf.xlu0
  %v3872 = vpop.trf.xlu0
  %v3873 = vpop.trf.xlu0
  %v3874 = vpop.trf.xlu0
  %v3875 = vpop.trf.xlu0
  %v3876 = vpop.trf.xlu0
  %v3877 = vpop.trf.xlu0
  %v3878 = vpop.trf.xlu0
  %v3879 = vpop.trf.xlu0
  %v3880 = vpop.trf.xlu0
  %v3881 = vpop.trf.xlu0
  %v3882 = vpop.trf.xlu0
  %v3883 = vpop.trf.xlu0
  %v3884 = vpop.trf.xlu0
  %v3885 = vpop.trf.xlu0
  %v3886 = vpop.trf.xlu0
  %3887 = vxpose.xlu0.b32.start [1/16] %v3624, 128
  %3888 = vxpose.xlu0.b32.cont [2/16] 0.0, 128
  %3889 = vxpose.xlu0.b32.cont [3/16] 0.0, 128
  %3890 = vxpose.xlu0.b32.cont [4/16] 0.0, 128
  %3891 = vxpose.xlu0.b32.cont [5/16] 0.0, 128
  %3892 = vxpose.xlu0.b32.cont [6/16] 0.0, 128
  %3893 = vxpose.xlu0.b32.cont [7/16] 0.0, 128
  %3894 = vxpose.xlu0.b32.cont [8/16] 0.0, 128
  %3895 = vxpose.xlu0.b32.cont [9/16] 0.0, 128
  %3896 = vxpose.xlu0.b32.cont [10/16] 0.0, 128
  %3897 = vxpose.xlu0.b32.cont [11/16] 0.0, 128
  %3898 = vxpose.xlu0.b32.cont [12/16] 0.0, 128
  %3899 = vxpose.xlu0.b32.cont [13/16] 0.0, 128
  %3900 = vxpose.xlu0.b32.cont [14/16] 0.0, 128
  %3901 = vxpose.xlu0.b32.cont [15/16] 0.0, 128
  %3902 = vxpose.xlu0.b32.end [16/16] 0.0, 128
  %v3903 = vpop.trf.xlu0
  %v3904 = vpop.trf.xlu0
  %v3905 = vpop.trf.xlu0
  %v3906 = vpop.trf.xlu0
  %v3907 = vpop.trf.xlu0
  %v3908 = vpop.trf.xlu0
  %v3909 = vpop.trf.xlu0
  %v3910 = vpop.trf.xlu0
  %v3911 = vpop.trf.xlu0
  %v3912 = vpop.trf.xlu0
  %v3913 = vpop.trf.xlu0
  %v3914 = vpop.trf.xlu0
  %v3915 = vpop.trf.xlu0
  %v3916 = vpop.trf.xlu0
  %v3917 = vpop.trf.xlu0
  %v3918 = vpop.trf.xlu0
  %3919 = vxpose.xlu0.b32.start [1/16] %v3674, 128
  %3920 = vxpose.xlu0.b32.cont [2/16] 0.0, 128
  %3921 = vxpose.xlu0.b32.cont [3/16] 0.0, 128
  %3922 = vxpose.xlu0.b32.cont [4/16] 0.0, 128
  %3923 = vxpose.xlu0.b32.cont [5/16] 0.0, 128
  %3924 = vxpose.xlu0.b32.cont [6/16] 0.0, 128
  %3925 = vxpose.xlu0.b32.cont [7/16] 0.0, 128
  %3926 = vxpose.xlu0.b32.cont [8/16] 0.0, 128
  %3927 = vxpose.xlu0.b32.cont [9/16] 0.0, 128
  %3928 = vxpose.xlu0.b32.cont [10/16] 0.0, 128
  %3929 = vxpose.xlu0.b32.cont [11/16] 0.0, 128
  %3930 = vxpose.xlu0.b32.cont [12/16] 0.0, 128
  %3931 = vxpose.xlu0.b32.cont [13/16] 0.0, 128
  %3932 = vxpose.xlu0.b32.cont [14/16] 0.0, 128
  %3933 = vxpose.xlu0.b32.cont [15/16] 0.0, 128
  %3934 = vxpose.xlu0.b32.end [16/16] 0.0, 128
  %v3935 = vpop.trf.xlu0
  %v3936 = vpop.trf.xlu0
  %v3937 = vpop.trf.xlu0
  %v3938 = vpop.trf.xlu0
  %v3939 = vpop.trf.xlu0
  %v3940 = vpop.trf.xlu0
  %v3941 = vpop.trf.xlu0
  %v3942 = vpop.trf.xlu0
  %v3943 = vpop.trf.xlu0
  %v3944 = vpop.trf.xlu0
  %v3945 = vpop.trf.xlu0
  %v3946 = vpop.trf.xlu0
  %v3947 = vpop.trf.xlu0
  %v3948 = vpop.trf.xlu0
  %v3949 = vpop.trf.xlu0
  %v3950 = vpop.trf.xlu0
  %v3952 = vsel %vm616, %v3711, 0
  %v3955 = vsel %vm616, %v3712, 0
  %v3958 = vsel %vm616, %v3713, 0
  %v3961 = vsel %vm616, %v3714, 0
  %v3964 = vsel %vm616, %v3715, 0
  %v3967 = vsel %vm616, %v3716, 0
  %v3970 = vsel %vm616, %v3717, 0
  %v3973 = vsel %vm616, %v3718, 0
  %v3975 = vsel %vm641, %v3629, 0
  %3977 = vmatprep.subr.mxu0 0.0
  %3978 = vmatpush1.msra.mxu0 0.0
  %3979 = vmatprep.subr.mxu0 0.0
  %3980 = vmatpush1.msra.mxu0 0.0
  %3981 = vmatprep.subr.mxu0 0.0
  %3982 = vmatpush1.msra.mxu0 0.0
  %3983 = vmatprep.subr.mxu0 0.0
  %3984 = vmatpush1.msra.mxu0 0.0
  %3985 = vmatprep.subr.mxu0 0.0
  %3986 = vmatpush1.msra.mxu0 0.0
  %3987 = vmatprep.subr.mxu0 0.0
  %3988 = vmatpush1.msra.mxu0 0.0
  %3989 = vmatprep.subr.mxu0 0.0
  %3990 = vmatpush1.msra.mxu0 0.0
  %3991 = vmatprep.subr.mxu0 0.0
  %3992 = vmatpush1.msra.mxu0 0.0
  %3993 = vmatprep.subr.mxu0 0.0
  %3994 = vmatpush1.msra.mxu0 0.0
  %3995 = vmatprep.subr.mxu0 0.0
  %3996 = vmatpush1.msra.mxu0 0.0
  %3997 = vmatprep.subr.mxu0 0.0
  %3998 = vmatpush1.msra.mxu0 0.0
  %3999 = vmatprep.subr.mxu0 0.0
  %4000 = vmatpush1.msra.mxu0 0.0
  %4001 = vmatprep.subr.mxu0 0.0
  %4002 = vmatpush1.msra.mxu0 0.0
  %4003 = vmatprep.subr.mxu0 0.0
  %4004 = vmatpush1.msra.mxu0 0.0
  %4005 = vmatprep.subr.mxu0 0.0
  %4006 = vmatpush1.msra.mxu0 0.0
  %4007 = vmatprep.subr.mxu0 0.0
  %4008 = vmatpush1.msra.mxu0 %v3975
  %4009 = vmatprep.subr.mxu0 0.0
  %4010 = vmatpush2.msra.mxu0 0.0
  %4011 = vmatprep.subr.mxu0 0.0
  %4012 = vmatpush2.msra.mxu0 0.0
  %4013 = vmatprep.subr.mxu0 0.0
  %4014 = vmatpush2.msra.mxu0 0.0
  %4015 = vmatprep.subr.mxu0 0.0
  %4016 = vmatpush2.msra.mxu0 0.0
  %4017 = vmatprep.subr.mxu0 0.0
  %4018 = vmatpush2.msra.mxu0 0.0
  %4019 = vmatprep.subr.mxu0 0.0
  %4020 = vmatpush2.msra.mxu0 0.0
  %4021 = vmatprep.subr.mxu0 0.0
  %4022 = vmatpush2.msra.mxu0 0.0
  %4023 = vmatprep.subr.mxu0 0.0
  %4024 = vmatpush2.msra.mxu0 0.0
  %4025 = vmatprep.subr.mxu0 0.0
  %4026 = vmatpush2.msra.mxu0 0.0
  %4027 = vmatprep.subr.mxu0 0.0
  %4028 = vmatpush2.msra.mxu0 0.0
  %4029 = vmatprep.subr.mxu0 0.0
  %4030 = vmatpush2.msra.mxu0 0.0
  %4031 = vmatprep.subr.mxu0 0.0
  %4032 = vmatpush2.msra.mxu0 0.0
  %4033 = vmatprep.subr.mxu0 0.0
  %4034 = vmatpush2.msra.mxu0 0.0
  %4035 = vmatprep.subr.mxu0 0.0
  %4036 = vmatpush2.msra.mxu0 0.0
  %4037 = vmatprep.subr.mxu0 0.0
  %4038 = vmatpush2.msra.mxu0 0.0
  %4039 = vmatprep.subr.mxu0 0.0
  %4040 = vmatpush2.msra.mxu0 0.0
  %4041 = vmatprep.mubr.f32.mxu0 0.0
  %4042 = vmatmul.mubr.f32.gmra.mxu0 %v3952
  %v4043 = vpop.f32.mrf.mxu0
  %v4044 = vadd.f32 0.0, %v4043
  %v4045 = vpop.f32.mrf.mxu0
  %4046 = vmatprep.mubr.f32.mxu0 0.0
  %4047 = vmatmul.mubr.f32.gmra.mxu0 %v3955
  %v4048 = vpop.f32.mrf.mxu0
  %v4049 = vadd.f32 0.0, %v4048
  %v4050 = vpop.f32.mrf.mxu0
  %4051 = vmatprep.mubr.f32.mxu0 0.0
  %4052 = vmatmul.mubr.f32.gmra.mxu0 %v3958
  %v4053 = vpop.f32.mrf.mxu0
  %v4054 = vadd.f32 0.0, %v4053
  %v4055 = vpop.f32.mrf.mxu0
  %4056 = vmatprep.mubr.f32.mxu0 0.0
  %4057 = vmatmul.mubr.f32.gmra.mxu0 %v3961
  %v4058 = vpop.f32.mrf.mxu0
  %v4059 = vadd.f32 0.0, %v4058
  %v4060 = vpop.f32.mrf.mxu0
  %4061 = vmatprep.mubr.f32.mxu0 0.0
  %4062 = vmatmul.mubr.f32.gmra.mxu0 %v3964
  %v4063 = vpop.f32.mrf.mxu0
  %v4064 = vadd.f32 0.0, %v4063
  %v4065 = vpop.f32.mrf.mxu0
  %4066 = vmatprep.mubr.f32.mxu0 0.0
  %4067 = vmatmul.mubr.f32.gmra.mxu0 %v3967
  %v4068 = vpop.f32.mrf.mxu0
  %v4069 = vadd.f32 0.0, %v4068
  %v4070 = vpop.f32.mrf.mxu0
  %4071 = vmatprep.mubr.f32.mxu0 0.0
  %4072 = vmatmul.mubr.f32.gmra.mxu0 %v3970
  %v4073 = vpop.f32.mrf.mxu0
  %v4074 = vadd.f32 0.0, %v4073
  %v4075 = vpop.f32.mrf.mxu0
  %4076 = vmatprep.mubr.f32.mxu0 0.0
  %4077 = vmatmul.mubr.f32.gmra.mxu0 %v3973
  %v4078 = vpop.f32.mrf.mxu0
  %v4079 = vadd.f32 0.0, %v4078
  %v4080 = vpop.f32.mrf.mxu0
  %4081 = vdwg.mxu0
  %v4083 = vsel %vm616, %v3743, 0
  %v4086 = vsel %vm616, %v3744, 0
  %v4089 = vsel %vm616, %v3745, 0
  %v4092 = vsel %vm616, %v3746, 0
  %v4095 = vsel %vm616, %v3747, 0
  %v4098 = vsel %vm616, %v3748, 0
  %v4101 = vsel %vm616, %v3749, 0
  %v4104 = vsel %vm616, %v3750, 0
  %v4106 = vsel %vm641, %v3683, 0
  %4108 = vmatprep.subr.mxu0 0.0
  %4109 = vmatpush1.msra.mxu0 0.0
  %4110 = vmatprep.subr.mxu0 0.0
  %4111 = vmatpush1.msra.mxu0 0.0
  %4112 = vmatprep.subr.mxu0 0.0
  %4113 = vmatpush1.msra.mxu0 0.0
  %4114 = vmatprep.subr.mxu0 0.0
  %4115 = vmatpush1.msra.mxu0 0.0
  %4116 = vmatprep.subr.mxu0 0.0
  %4117 = vmatpush1.msra.mxu0 0.0
  %4118 = vmatprep.subr.mxu0 0.0
  %4119 = vmatpush1.msra.mxu0 0.0
  %4120 = vmatprep.subr.mxu0 0.0
  %4121 = vmatpush1.msra.mxu0 0.0
  %4122 = vmatprep.subr.mxu0 0.0
  %4123 = vmatpush1.msra.mxu0 0.0
  %4124 = vmatprep.subr.mxu0 0.0
  %4125 = vmatpush1.msra.mxu0 0.0
  %4126 = vmatprep.subr.mxu0 0.0
  %4127 = vmatpush1.msra.mxu0 0.0
  %4128 = vmatprep.subr.mxu0 0.0
  %4129 = vmatpush1.msra.mxu0 0.0
  %4130 = vmatprep.subr.mxu0 0.0
  %4131 = vmatpush1.msra.mxu0 0.0
  %4132 = vmatprep.subr.mxu0 0.0
  %4133 = vmatpush1.msra.mxu0 0.0
  %4134 = vmatprep.subr.mxu0 0.0
  %4135 = vmatpush1.msra.mxu0 0.0
  %4136 = vmatprep.subr.mxu0 0.0
  %4137 = vmatpush1.msra.mxu0 0.0
  %4138 = vmatprep.subr.mxu0 0.0
  %4139 = vmatpush1.msra.mxu0 %v4106
  %4140 = vmatprep.subr.mxu0 0.0
  %4141 = vmatpush2.msra.mxu0 0.0
  %4142 = vmatprep.subr.mxu0 0.0
  %4143 = vmatpush2.msra.mxu0 0.0
  %4144 = vmatprep.subr.mxu0 0.0
  %4145 = vmatpush2.msra.mxu0 0.0
  %4146 = vmatprep.subr.mxu0 0.0
  %4147 = vmatpush2.msra.mxu0 0.0
  %4148 = vmatprep.subr.mxu0 0.0
  %4149 = vmatpush2.msra.mxu0 0.0
  %4150 = vmatprep.subr.mxu0 0.0
  %4151 = vmatpush2.msra.mxu0 0.0
  %4152 = vmatprep.subr.mxu0 0.0
  %4153 = vmatpush2.msra.mxu0 0.0
  %4154 = vmatprep.subr.mxu0 0.0
  %4155 = vmatpush2.msra.mxu0 0.0
  %4156 = vmatprep.subr.mxu0 0.0
  %4157 = vmatpush2.msra.mxu0 0.0
  %4158 = vmatprep.subr.mxu0 0.0
  %4159 = vmatpush2.msra.mxu0 0.0
  %4160 = vmatprep.subr.mxu0 0.0
  %4161 = vmatpush2.msra.mxu0 0.0
  %4162 = vmatprep.subr.mxu0 0.0
  %4163 = vmatpush2.msra.mxu0 0.0
  %4164 = vmatprep.subr.mxu0 0.0
  %4165 = vmatpush2.msra.mxu0 0.0
  %4166 = vmatprep.subr.mxu0 0.0
  %4167 = vmatpush2.msra.mxu0 0.0
  %4168 = vmatprep.subr.mxu0 0.0
  %4169 = vmatpush2.msra.mxu0 0.0
  %4170 = vmatprep.subr.mxu0 0.0
  %4171 = vmatpush2.msra.mxu0 0.0
  %4172 = vmatprep.mubr.f32.mxu0 0.0
  %4173 = vmatmul.mubr.f32.gmra.mxu0 %v4083
  %v4174 = vpop.f32.mrf.mxu0
  %v4175 = vadd.f32 0.0, %v4174
  %v4176 = vpop.f32.mrf.mxu0
  %4177 = vmatprep.mubr.f32.mxu0 0.0
  %4178 = vmatmul.mubr.f32.gmra.mxu0 %v4086
  %v4179 = vpop.f32.mrf.mxu0
  %v4180 = vadd.f32 0.0, %v4179
  %v4181 = vpop.f32.mrf.mxu0
  %4182 = vmatprep.mubr.f32.mxu0 0.0
  %4183 = vmatmul.mubr.f32.gmra.mxu0 %v4089
  %v4184 = vpop.f32.mrf.mxu0
  %v4185 = vadd.f32 0.0, %v4184
  %v4186 = vpop.f32.mrf.mxu0
  %4187 = vmatprep.mubr.f32.mxu0 0.0
  %4188 = vmatmul.mubr.f32.gmra.mxu0 %v4092
  %v4189 = vpop.f32.mrf.mxu0
  %v4190 = vadd.f32 0.0, %v4189
  %v4191 = vpop.f32.mrf.mxu0
  %4192 = vmatprep.mubr.f32.mxu0 0.0
  %4193 = vmatmul.mubr.f32.gmra.mxu0 %v4095
  %v4194 = vpop.f32.mrf.mxu0
  %v4195 = vadd.f32 0.0, %v4194
  %v4196 = vpop.f32.mrf.mxu0
  %4197 = vmatprep.mubr.f32.mxu0 0.0
  %4198 = vmatmul.mubr.f32.gmra.mxu0 %v4098
  %v4199 = vpop.f32.mrf.mxu0
  %v4200 = vadd.f32 0.0, %v4199
  %v4201 = vpop.f32.mrf.mxu0
  %4202 = vmatprep.mubr.f32.mxu0 0.0
  %4203 = vmatmul.mubr.f32.gmra.mxu0 %v4101
  %v4204 = vpop.f32.mrf.mxu0
  %v4205 = vadd.f32 0.0, %v4204
  %v4206 = vpop.f32.mrf.mxu0
  %4207 = vmatprep.mubr.f32.mxu0 0.0
  %4208 = vmatmul.mubr.f32.gmra.mxu0 %v4104
  %v4209 = vpop.f32.mrf.mxu0
  %v4210 = vadd.f32 0.0, %v4209
  %v4211 = vpop.f32.mrf.mxu0
  %4212 = vdwg.mxu0
  %v4214 = vsel %vm616, %v3775, 0
  %v4217 = vsel %vm616, %v3776, 0
  %v4220 = vsel %vm616, %v3777, 0
  %v4223 = vsel %vm616, %v3778, 0
  %v4226 = vsel %vm616, %v3779, 0
  %v4229 = vsel %vm616, %v3780, 0
  %v4232 = vsel %vm616, %v3781, 0
  %v4235 = vsel %vm616, %v3782, 0
  %v4237 = vsel %vm641, %v3634, 0
  %4239 = vmatprep.subr.mxu0 0.0
  %4240 = vmatpush1.msra.mxu0 0.0
  %4241 = vmatprep.subr.mxu0 0.0
  %4242 = vmatpush1.msra.mxu0 0.0
  %4243 = vmatprep.subr.mxu0 0.0
  %4244 = vmatpush1.msra.mxu0 0.0
  %4245 = vmatprep.subr.mxu0 0.0
  %4246 = vmatpush1.msra.mxu0 0.0
  %4247 = vmatprep.subr.mxu0 0.0
  %4248 = vmatpush1.msra.mxu0 0.0
  %4249 = vmatprep.subr.mxu0 0.0
  %4250 = vmatpush1.msra.mxu0 0.0
  %4251 = vmatprep.subr.mxu0 0.0
  %4252 = vmatpush1.msra.mxu0 0.0
  %4253 = vmatprep.subr.mxu0 0.0
  %4254 = vmatpush1.msra.mxu0 0.0
  %4255 = vmatprep.subr.mxu0 0.0
  %4256 = vmatpush1.msra.mxu0 0.0
  %4257 = vmatprep.subr.mxu0 0.0
  %4258 = vmatpush1.msra.mxu0 0.0
  %4259 = vmatprep.subr.mxu0 0.0
  %4260 = vmatpush1.msra.mxu0 0.0
  %4261 = vmatprep.subr.mxu0 0.0
  %4262 = vmatpush1.msra.mxu0 0.0
  %4263 = vmatprep.subr.mxu0 0.0
  %4264 = vmatpush1.msra.mxu0 0.0
  %4265 = vmatprep.subr.mxu0 0.0
  %4266 = vmatpush1.msra.mxu0 0.0
  %4267 = vmatprep.subr.mxu0 0.0
  %4268 = vmatpush1.msra.mxu0 0.0
  %4269 = vmatprep.subr.mxu0 0.0
  %4270 = vmatpush1.msra.mxu0 %v4237
  %4271 = vmatprep.subr.mxu0 0.0
  %4272 = vmatpush2.msra.mxu0 0.0
  %4273 = vmatprep.subr.mxu0 0.0
  %4274 = vmatpush2.msra.mxu0 0.0
  %4275 = vmatprep.subr.mxu0 0.0
  %4276 = vmatpush2.msra.mxu0 0.0
  %4277 = vmatprep.subr.mxu0 0.0
  %4278 = vmatpush2.msra.mxu0 0.0
  %4279 = vmatprep.subr.mxu0 0.0
  %4280 = vmatpush2.msra.mxu0 0.0
  %4281 = vmatprep.subr.mxu0 0.0
  %4282 = vmatpush2.msra.mxu0 0.0
  %4283 = vmatprep.subr.mxu0 0.0
  %4284 = vmatpush2.msra.mxu0 0.0
  %4285 = vmatprep.subr.mxu0 0.0
  %4286 = vmatpush2.msra.mxu0 0.0
  %4287 = vmatprep.subr.mxu0 0.0
  %4288 = vmatpush2.msra.mxu0 0.0
  %4289 = vmatprep.subr.mxu0 0.0
  %4290 = vmatpush2.msra.mxu0 0.0
  %4291 = vmatprep.subr.mxu0 0.0
  %4292 = vmatpush2.msra.mxu0 0.0
  %4293 = vmatprep.subr.mxu0 0.0
  %4294 = vmatpush2.msra.mxu0 0.0
  %4295 = vmatprep.subr.mxu0 0.0
  %4296 = vmatpush2.msra.mxu0 0.0
  %4297 = vmatprep.subr.mxu0 0.0
  %4298 = vmatpush2.msra.mxu0 0.0
  %4299 = vmatprep.subr.mxu0 0.0
  %4300 = vmatpush2.msra.mxu0 0.0
  %4301 = vmatprep.subr.mxu0 0.0
  %4302 = vmatpush2.msra.mxu0 0.0
  %4303 = vmatprep.mubr.f32.mxu0 0.0
  %4304 = vmatmul.mubr.f32.gmra.mxu0 %v4214
  %v4305 = vpop.f32.mrf.mxu0
  %v4306 = vadd.f32 0.0, %v4305
  %v4307 = vpop.f32.mrf.mxu0
  %4308 = vmatprep.mubr.f32.mxu0 0.0
  %4309 = vmatmul.mubr.f32.gmra.mxu0 %v4217
  %v4310 = vpop.f32.mrf.mxu0
  %v4311 = vadd.f32 0.0, %v4310
  %v4312 = vpop.f32.mrf.mxu0
  %4313 = vmatprep.mubr.f32.mxu0 0.0
  %4314 = vmatmul.mubr.f32.gmra.mxu0 %v4220
  %v4315 = vpop.f32.mrf.mxu0
  %v4316 = vadd.f32 0.0, %v4315
  %v4317 = vpop.f32.mrf.mxu0
  %4318 = vmatprep.mubr.f32.mxu0 0.0
  %4319 = vmatmul.mubr.f32.gmra.mxu0 %v4223
  %v4320 = vpop.f32.mrf.mxu0
  %v4321 = vadd.f32 0.0, %v4320
  %v4322 = vpop.f32.mrf.mxu0
  %4323 = vmatprep.mubr.f32.mxu0 0.0
  %4324 = vmatmul.mubr.f32.gmra.mxu0 %v4226
  %v4325 = vpop.f32.mrf.mxu0
  %v4326 = vadd.f32 0.0, %v4325
  %v4327 = vpop.f32.mrf.mxu0
  %4328 = vmatprep.mubr.f32.mxu0 0.0
  %4329 = vmatmul.mubr.f32.gmra.mxu0 %v4229
  %v4330 = vpop.f32.mrf.mxu0
  %v4331 = vadd.f32 0.0, %v4330
  %v4332 = vpop.f32.mrf.mxu0
  %4333 = vmatprep.mubr.f32.mxu0 0.0
  %4334 = vmatmul.mubr.f32.gmra.mxu0 %v4232
  %v4335 = vpop.f32.mrf.mxu0
  %v4336 = vadd.f32 0.0, %v4335
  %v4337 = vpop.f32.mrf.mxu0
  %4338 = vmatprep.mubr.f32.mxu0 0.0
  %4339 = vmatmul.mubr.f32.gmra.mxu0 %v4235
  %v4340 = vpop.f32.mrf.mxu0
  %v4341 = vadd.f32 0.0, %v4340
  %v4342 = vpop.f32.mrf.mxu0
  %4343 = vdwg.mxu0
  %v4345 = vsel %vm616, %v3807, 0
  %v4348 = vsel %vm616, %v3808, 0
  %v4351 = vsel %vm616, %v3809, 0
  %v4354 = vsel %vm616, %v3810, 0
  %v4357 = vsel %vm616, %v3811, 0
  %v4360 = vsel %vm616, %v3812, 0
  %v4363 = vsel %vm616, %v3813, 0
  %v4366 = vsel %vm616, %v3814, 0
  %v4368 = vsel %vm641, %v3684, 0
  %4370 = vmatprep.subr.mxu0 0.0
  %4371 = vmatpush1.msra.mxu0 0.0
  %4372 = vmatprep.subr.mxu0 0.0
  %4373 = vmatpush1.msra.mxu0 0.0
  %4374 = vmatprep.subr.mxu0 0.0
  %4375 = vmatpush1.msra.mxu0 0.0
  %4376 = vmatprep.subr.mxu0 0.0
  %4377 = vmatpush1.msra.mxu0 0.0
  %4378 = vmatprep.subr.mxu0 0.0
  %4379 = vmatpush1.msra.mxu0 0.0
  %4380 = vmatprep.subr.mxu0 0.0
  %4381 = vmatpush1.msra.mxu0 0.0
  %4382 = vmatprep.subr.mxu0 0.0
  %4383 = vmatpush1.msra.mxu0 0.0
  %4384 = vmatprep.subr.mxu0 0.0
  %4385 = vmatpush1.msra.mxu0 0.0
  %4386 = vmatprep.subr.mxu0 0.0
  %4387 = vmatpush1.msra.mxu0 0.0
  %4388 = vmatprep.subr.mxu0 0.0
  %4389 = vmatpush1.msra.mxu0 0.0
  %4390 = vmatprep.subr.mxu0 0.0
  %4391 = vmatpush1.msra.mxu0 0.0
  %4392 = vmatprep.subr.mxu0 0.0
  %4393 = vmatpush1.msra.mxu0 0.0
  %4394 = vmatprep.subr.mxu0 0.0
  %4395 = vmatpush1.msra.mxu0 0.0
  %4396 = vmatprep.subr.mxu0 0.0
  %4397 = vmatpush1.msra.mxu0 0.0
  %4398 = vmatprep.subr.mxu0 0.0
  %4399 = vmatpush1.msra.mxu0 0.0
  %4400 = vmatprep.subr.mxu0 0.0
  %4401 = vmatpush1.msra.mxu0 %v4368
  %4402 = vmatprep.subr.mxu0 0.0
  %4403 = vmatpush2.msra.mxu0 0.0
  %4404 = vmatprep.subr.mxu0 0.0
  %4405 = vmatpush2.msra.mxu0 0.0
  %4406 = vmatprep.subr.mxu0 0.0
  %4407 = vmatpush2.msra.mxu0 0.0
  %4408 = vmatprep.subr.mxu0 0.0
  %4409 = vmatpush2.msra.mxu0 0.0
  %4410 = vmatprep.subr.mxu0 0.0
  %4411 = vmatpush2.msra.mxu0 0.0
  %4412 = vmatprep.subr.mxu0 0.0
  %4413 = vmatpush2.msra.mxu0 0.0
  %4414 = vmatprep.subr.mxu0 0.0
  %4415 = vmatpush2.msra.mxu0 0.0
  %4416 = vmatprep.subr.mxu0 0.0
  %4417 = vmatpush2.msra.mxu0 0.0
  %4418 = vmatprep.subr.mxu0 0.0
  %4419 = vmatpush2.msra.mxu0 0.0
  %4420 = vmatprep.subr.mxu0 0.0
  %4421 = vmatpush2.msra.mxu0 0.0
  %4422 = vmatprep.subr.mxu0 0.0
  %4423 = vmatpush2.msra.mxu0 0.0
  %4424 = vmatprep.subr.mxu0 0.0
  %4425 = vmatpush2.msra.mxu0 0.0
  %4426 = vmatprep.subr.mxu0 0.0
  %4427 = vmatpush2.msra.mxu0 0.0
  %4428 = vmatprep.subr.mxu0 0.0
  %4429 = vmatpush2.msra.mxu0 0.0
  %4430 = vmatprep.subr.mxu0 0.0
  %4431 = vmatpush2.msra.mxu0 0.0
  %4432 = vmatprep.subr.mxu0 0.0
  %4433 = vmatpush2.msra.mxu0 0.0
  %4434 = vmatprep.mubr.f32.mxu0 0.0
  %4435 = vmatmul.mubr.f32.gmra.mxu0 %v4345
  %v4436 = vpop.f32.mrf.mxu0
  %v4437 = vadd.f32 0.0, %v4436
  %v4438 = vpop.f32.mrf.mxu0
  %4439 = vmatprep.mubr.f32.mxu0 0.0
  %4440 = vmatmul.mubr.f32.gmra.mxu0 %v4348
  %v4441 = vpop.f32.mrf.mxu0
  %v4442 = vadd.f32 0.0, %v4441
  %v4443 = vpop.f32.mrf.mxu0
  %4444 = vmatprep.mubr.f32.mxu0 0.0
  %4445 = vmatmul.mubr.f32.gmra.mxu0 %v4351
  %v4446 = vpop.f32.mrf.mxu0
  %v4447 = vadd.f32 0.0, %v4446
  %v4448 = vpop.f32.mrf.mxu0
  %4449 = vmatprep.mubr.f32.mxu0 0.0
  %4450 = vmatmul.mubr.f32.gmra.mxu0 %v4354
  %v4451 = vpop.f32.mrf.mxu0
  %v4452 = vadd.f32 0.0, %v4451
  %v4453 = vpop.f32.mrf.mxu0
  %4454 = vmatprep.mubr.f32.mxu0 0.0
  %4455 = vmatmul.mubr.f32.gmra.mxu0 %v4357
  %v4456 = vpop.f32.mrf.mxu0
  %v4457 = vadd.f32 0.0, %v4456
  %v4458 = vpop.f32.mrf.mxu0
  %4459 = vmatprep.mubr.f32.mxu0 0.0
  %4460 = vmatmul.mubr.f32.gmra.mxu0 %v4360
  %v4461 = vpop.f32.mrf.mxu0
  %v4462 = vadd.f32 0.0, %v4461
  %v4463 = vpop.f32.mrf.mxu0
  %4464 = vmatprep.mubr.f32.mxu0 0.0
  %4465 = vmatmul.mubr.f32.gmra.mxu0 %v4363
  %v4466 = vpop.f32.mrf.mxu0
  %v4467 = vadd.f32 0.0, %v4466
  %v4468 = vpop.f32.mrf.mxu0
  %4469 = vmatprep.mubr.f32.mxu0 0.0
  %4470 = vmatmul.mubr.f32.gmra.mxu0 %v4366
  %v4471 = vpop.f32.mrf.mxu0
  %v4472 = vadd.f32 0.0, %v4471
  %v4473 = vpop.f32.mrf.mxu0
  %4474 = vdwg.mxu0
  %v4476 = vsel %vm616, %v3839, 0
  %v4479 = vsel %vm616, %v3840, 0
  %v4482 = vsel %vm616, %v3841, 0
  %v4485 = vsel %vm616, %v3842, 0
  %v4488 = vsel %vm616, %v3843, 0
  %v4491 = vsel %vm616, %v3844, 0
  %v4494 = vsel %vm616, %v3845, 0
  %v4497 = vsel %vm616, %v3846, 0
  %v4499 = vsel %vm641, %v3639, 0
  %4501 = vmatprep.subr.mxu0 0.0
  %4502 = vmatpush1.msra.mxu0 0.0
  %4503 = vmatprep.subr.mxu0 0.0
  %4504 = vmatpush1.msra.mxu0 0.0
  %4505 = vmatprep.subr.mxu0 0.0
  %4506 = vmatpush1.msra.mxu0 0.0
  %4507 = vmatprep.subr.mxu0 0.0
  %4508 = vmatpush1.msra.mxu0 0.0
  %4509 = vmatprep.subr.mxu0 0.0
  %4510 = vmatpush1.msra.mxu0 0.0
  %4511 = vmatprep.subr.mxu0 0.0
  %4512 = vmatpush1.msra.mxu0 0.0
  %4513 = vmatprep.subr.mxu0 0.0
  %4514 = vmatpush1.msra.mxu0 0.0
  %4515 = vmatprep.subr.mxu0 0.0
  %4516 = vmatpush1.msra.mxu0 0.0
  %4517 = vmatprep.subr.mxu0 0.0
  %4518 = vmatpush1.msra.mxu0 0.0
  %4519 = vmatprep.subr.mxu0 0.0
  %4520 = vmatpush1.msra.mxu0 0.0
  %4521 = vmatprep.subr.mxu0 0.0
  %4522 = vmatpush1.msra.mxu0 0.0
  %4523 = vmatprep.subr.mxu0 0.0
  %4524 = vmatpush1.msra.mxu0 0.0
  %4525 = vmatprep.subr.mxu0 0.0
  %4526 = vmatpush1.msra.mxu0 0.0
  %4527 = vmatprep.subr.mxu0 0.0
  %4528 = vmatpush1.msra.mxu0 0.0
  %4529 = vmatprep.subr.mxu0 0.0
  %4530 = vmatpush1.msra.mxu0 0.0
  %4531 = vmatprep.subr.mxu0 0.0
  %4532 = vmatpush1.msra.mxu0 %v4499
  %4533 = vmatprep.subr.mxu0 0.0
  %4534 = vmatpush2.msra.mxu0 0.0
  %4535 = vmatprep.subr.mxu0 0.0
  %4536 = vmatpush2.msra.mxu0 0.0
  %4537 = vmatprep.subr.mxu0 0.0
  %4538 = vmatpush2.msra.mxu0 0.0
  %4539 = vmatprep.subr.mxu0 0.0
  %4540 = vmatpush2.msra.mxu0 0.0
  %4541 = vmatprep.subr.mxu0 0.0
  %4542 = vmatpush2.msra.mxu0 0.0
  %4543 = vmatprep.subr.mxu0 0.0
  %4544 = vmatpush2.msra.mxu0 0.0
  %4545 = vmatprep.subr.mxu0 0.0
  %4546 = vmatpush2.msra.mxu0 0.0
  %4547 = vmatprep.subr.mxu0 0.0
  %4548 = vmatpush2.msra.mxu0 0.0
  %4549 = vmatprep.subr.mxu0 0.0
  %4550 = vmatpush2.msra.mxu0 0.0
  %4551 = vmatprep.subr.mxu0 0.0
  %4552 = vmatpush2.msra.mxu0 0.0
  %4553 = vmatprep.subr.mxu0 0.0
  %4554 = vmatpush2.msra.mxu0 0.0
  %4555 = vmatprep.subr.mxu0 0.0
  %4556 = vmatpush2.msra.mxu0 0.0
  %4557 = vmatprep.subr.mxu0 0.0
  %4558 = vmatpush2.msra.mxu0 0.0
  %4559 = vmatprep.subr.mxu0 0.0
  %4560 = vmatpush2.msra.mxu0 0.0
  %4561 = vmatprep.subr.mxu0 0.0
  %4562 = vmatpush2.msra.mxu0 0.0
  %4563 = vmatprep.subr.mxu0 0.0
  %4564 = vmatpush2.msra.mxu0 0.0
  %4565 = vmatprep.mubr.f32.mxu0 0.0
  %4566 = vmatmul.mubr.f32.gmra.mxu0 %v4476
  %v4567 = vpop.f32.mrf.mxu0
  %v4568 = vadd.f32 0.0, %v4567
  %v4569 = vpop.f32.mrf.mxu0
  %4570 = vmatprep.mubr.f32.mxu0 0.0
  %4571 = vmatmul.mubr.f32.gmra.mxu0 %v4479
  %v4572 = vpop.f32.mrf.mxu0
  %v4573 = vadd.f32 0.0, %v4572
  %v4574 = vpop.f32.mrf.mxu0
  %4575 = vmatprep.mubr.f32.mxu0 0.0
  %4576 = vmatmul.mubr.f32.gmra.mxu0 %v4482
  %v4577 = vpop.f32.mrf.mxu0
  %v4578 = vadd.f32 0.0, %v4577
  %v4579 = vpop.f32.mrf.mxu0
  %4580 = vmatprep.mubr.f32.mxu0 0.0
  %4581 = vmatmul.mubr.f32.gmra.mxu0 %v4485
  %v4582 = vpop.f32.mrf.mxu0
  %v4583 = vadd.f32 0.0, %v4582
  %v4584 = vpop.f32.mrf.mxu0
  %4585 = vmatprep.mubr.f32.mxu0 0.0
  %4586 = vmatmul.mubr.f32.gmra.mxu0 %v4488
  %v4587 = vpop.f32.mrf.mxu0
  %v4588 = vadd.f32 0.0, %v4587
  %v4589 = vpop.f32.mrf.mxu0
  %4590 = vmatprep.mubr.f32.mxu0 0.0
  %4591 = vmatmul.mubr.f32.gmra.mxu0 %v4491
  %v4592 = vpop.f32.mrf.mxu0
  %v4593 = vadd.f32 0.0, %v4592
  %v4594 = vpop.f32.mrf.mxu0
  %4595 = vmatprep.mubr.f32.mxu0 0.0
  %4596 = vmatmul.mubr.f32.gmra.mxu0 %v4494
  %v4597 = vpop.f32.mrf.mxu0
  %v4598 = vadd.f32 0.0, %v4597
  %v4599 = vpop.f32.mrf.mxu0
  %4600 = vmatprep.mubr.f32.mxu0 0.0
  %4601 = vmatmul.mubr.f32.gmra.mxu0 %v4497
  %v4602 = vpop.f32.mrf.mxu0
  %v4603 = vadd.f32 0.0, %v4602
  %v4604 = vpop.f32.mrf.mxu0
  %4605 = vdwg.mxu0
  %v4607 = vsel %vm616, %v3871, 0
  %v4610 = vsel %vm616, %v3872, 0
  %v4613 = vsel %vm616, %v3873, 0
  %v4616 = vsel %vm616, %v3874, 0
  %v4619 = vsel %vm616, %v3875, 0
  %v4622 = vsel %vm616, %v3876, 0
  %v4625 = vsel %vm616, %v3877, 0
  %v4628 = vsel %vm616, %v3878, 0
  %v4630 = vsel %vm641, %v3685, 0
  %4632 = vmatprep.subr.mxu0 0.0
  %4633 = vmatpush1.msra.mxu0 0.0
  %4634 = vmatprep.subr.mxu0 0.0
  %4635 = vmatpush1.msra.mxu0 0.0
  %4636 = vmatprep.subr.mxu0 0.0
  %4637 = vmatpush1.msra.mxu0 0.0
  %4638 = vmatprep.subr.mxu0 0.0
  %4639 = vmatpush1.msra.mxu0 0.0
  %4640 = vmatprep.subr.mxu0 0.0
  %4641 = vmatpush1.msra.mxu0 0.0
  %4642 = vmatprep.subr.mxu0 0.0
  %4643 = vmatpush1.msra.mxu0 0.0
  %4644 = vmatprep.subr.mxu0 0.0
  %4645 = vmatpush1.msra.mxu0 0.0
  %4646 = vmatprep.subr.mxu0 0.0
  %4647 = vmatpush1.msra.mxu0 0.0
  %4648 = vmatprep.subr.mxu0 0.0
  %4649 = vmatpush1.msra.mxu0 0.0
  %4650 = vmatprep.subr.mxu0 0.0
  %4651 = vmatpush1.msra.mxu0 0.0
  %4652 = vmatprep.subr.mxu0 0.0
  %4653 = vmatpush1.msra.mxu0 0.0
  %4654 = vmatprep.subr.mxu0 0.0
  %4655 = vmatpush1.msra.mxu0 0.0
  %4656 = vmatprep.subr.mxu0 0.0
  %4657 = vmatpush1.msra.mxu0 0.0
  %4658 = vmatprep.subr.mxu0 0.0
  %4659 = vmatpush1.msra.mxu0 0.0
  %4660 = vmatprep.subr.mxu0 0.0
  %4661 = vmatpush1.msra.mxu0 0.0
  %4662 = vmatprep.subr.mxu0 0.0
  %4663 = vmatpush1.msra.mxu0 %v4630
  %4664 = vmatprep.subr.mxu0 0.0
  %4665 = vmatpush2.msra.mxu0 0.0
  %4666 = vmatprep.subr.mxu0 0.0
  %4667 = vmatpush2.msra.mxu0 0.0
  %4668 = vmatprep.subr.mxu0 0.0
  %4669 = vmatpush2.msra.mxu0 0.0
  %4670 = vmatprep.subr.mxu0 0.0
  %4671 = vmatpush2.msra.mxu0 0.0
  %4672 = vmatprep.subr.mxu0 0.0
  %4673 = vmatpush2.msra.mxu0 0.0
  %4674 = vmatprep.subr.mxu0 0.0
  %4675 = vmatpush2.msra.mxu0 0.0
  %4676 = vmatprep.subr.mxu0 0.0
  %4677 = vmatpush2.msra.mxu0 0.0
  %4678 = vmatprep.subr.mxu0 0.0
  %4679 = vmatpush2.msra.mxu0 0.0
  %4680 = vmatprep.subr.mxu0 0.0
  %4681 = vmatpush2.msra.mxu0 0.0
  %4682 = vmatprep.subr.mxu0 0.0
  %4683 = vmatpush2.msra.mxu0 0.0
  %4684 = vmatprep.subr.mxu0 0.0
  %4685 = vmatpush2.msra.mxu0 0.0
  %4686 = vmatprep.subr.mxu0 0.0
  %4687 = vmatpush2.msra.mxu0 0.0
  %4688 = vmatprep.subr.mxu0 0.0
  %4689 = vmatpush2.msra.mxu0 0.0
  %4690 = vmatprep.subr.mxu0 0.0
  %4691 = vmatpush2.msra.mxu0 0.0
  %4692 = vmatprep.subr.mxu0 0.0
  %4693 = vmatpush2.msra.mxu0 0.0
  %4694 = vmatprep.subr.mxu0 0.0
  %4695 = vmatpush2.msra.mxu0 0.0
  %4696 = vmatprep.mubr.f32.mxu0 0.0
  %4697 = vmatmul.mubr.f32.gmra.mxu0 %v4607
  %v4698 = vpop.f32.mrf.mxu0
  %v4699 = vadd.f32 0.0, %v4698
  %v4700 = vpop.f32.mrf.mxu0
  %4701 = vmatprep.mubr.f32.mxu0 0.0
  %4702 = vmatmul.mubr.f32.gmra.mxu0 %v4610
  %v4703 = vpop.f32.mrf.mxu0
  %v4704 = vadd.f32 0.0, %v4703
  %v4705 = vpop.f32.mrf.mxu0
  %4706 = vmatprep.mubr.f32.mxu0 0.0
  %4707 = vmatmul.mubr.f32.gmra.mxu0 %v4613
  %v4708 = vpop.f32.mrf.mxu0
  %v4709 = vadd.f32 0.0, %v4708
  %v4710 = vpop.f32.mrf.mxu0
  %4711 = vmatprep.mubr.f32.mxu0 0.0
  %4712 = vmatmul.mubr.f32.gmra.mxu0 %v4616
  %v4713 = vpop.f32.mrf.mxu0
  %v4714 = vadd.f32 0.0, %v4713
  %v4715 = vpop.f32.mrf.mxu0
  %4716 = vmatprep.mubr.f32.mxu0 0.0
  %4717 = vmatmul.mubr.f32.gmra.mxu0 %v4619
  %v4718 = vpop.f32.mrf.mxu0
  %v4719 = vadd.f32 0.0, %v4718
  %v4720 = vpop.f32.mrf.mxu0
  %4721 = vmatprep.mubr.f32.mxu0 0.0
  %4722 = vmatmul.mubr.f32.gmra.mxu0 %v4622
  %v4723 = vpop.f32.mrf.mxu0
  %v4724 = vadd.f32 0.0, %v4723
  %v4725 = vpop.f32.mrf.mxu0
  %4726 = vmatprep.mubr.f32.mxu0 0.0
  %4727 = vmatmul.mubr.f32.gmra.mxu0 %v4625
  %v4728 = vpop.f32.mrf.mxu0
  %v4729 = vadd.f32 0.0, %v4728
  %v4730 = vpop.f32.mrf.mxu0
  %4731 = vmatprep.mubr.f32.mxu0 0.0
  %4732 = vmatmul.mubr.f32.gmra.mxu0 %v4628
  %v4733 = vpop.f32.mrf.mxu0
  %v4734 = vadd.f32 0.0, %v4733
  %v4735 = vpop.f32.mrf.mxu0
  %4736 = vdwg.mxu0
  %v4738 = vsel %vm616, %v3903, 0
  %v4741 = vsel %vm616, %v3904, 0
  %v4744 = vsel %vm616, %v3905, 0
  %v4747 = vsel %vm616, %v3906, 0
  %v4750 = vsel %vm616, %v3907, 0
  %v4753 = vsel %vm616, %v3908, 0
  %v4756 = vsel %vm616, %v3909, 0
  %v4759 = vsel %vm616, %v3910, 0
  %v4761 = vsel %vm641, %v3644, 0
  %4763 = vmatprep.subr.mxu0 0.0
  %4764 = vmatpush1.msra.mxu0 0.0
  %4765 = vmatprep.subr.mxu0 0.0
  %4766 = vmatpush1.msra.mxu0 0.0
  %4767 = vmatprep.subr.mxu0 0.0
  %4768 = vmatpush1.msra.mxu0 0.0
  %4769 = vmatprep.subr.mxu0 0.0
  %4770 = vmatpush1.msra.mxu0 0.0
  %4771 = vmatprep.subr.mxu0 0.0
  %4772 = vmatpush1.msra.mxu0 0.0
  %4773 = vmatprep.subr.mxu0 0.0
  %4774 = vmatpush1.msra.mxu0 0.0
  %4775 = vmatprep.subr.mxu0 0.0
  %4776 = vmatpush1.msra.mxu0 0.0
  %4777 = vmatprep.subr.mxu0 0.0
  %4778 = vmatpush1.msra.mxu0 0.0
  %4779 = vmatprep.subr.mxu0 0.0
  %4780 = vmatpush1.msra.mxu0 0.0
  %4781 = vmatprep.subr.mxu0 0.0
  %4782 = vmatpush1.msra.mxu0 0.0
  %4783 = vmatprep.subr.mxu0 0.0
  %4784 = vmatpush1.msra.mxu0 0.0
  %4785 = vmatprep.subr.mxu0 0.0
  %4786 = vmatpush1.msra.mxu0 0.0
  %4787 = vmatprep.subr.mxu0 0.0
  %4788 = vmatpush1.msra.mxu0 0.0
  %4789 = vmatprep.subr.mxu0 0.0
  %4790 = vmatpush1.msra.mxu0 0.0
  %4791 = vmatprep.subr.mxu0 0.0
  %4792 = vmatpush1.msra.mxu0 0.0
  %4793 = vmatprep.subr.mxu0 0.0
  %4794 = vmatpush1.msra.mxu0 %v4761
  %4795 = vmatprep.subr.mxu0 0.0
  %4796 = vmatpush2.msra.mxu0 0.0
  %4797 = vmatprep.subr.mxu0 0.0
  %4798 = vmatpush2.msra.mxu0 0.0
  %4799 = vmatprep.subr.mxu0 0.0
  %4800 = vmatpush2.msra.mxu0 0.0
  %4801 = vmatprep.subr.mxu0 0.0
  %4802 = vmatpush2.msra.mxu0 0.0
  %4803 = vmatprep.subr.mxu0 0.0
  %4804 = vmatpush2.msra.mxu0 0.0
  %4805 = vmatprep.subr.mxu0 0.0
  %4806 = vmatpush2.msra.mxu0 0.0
  %4807 = vmatprep.subr.mxu0 0.0
  %4808 = vmatpush2.msra.mxu0 0.0
  %4809 = vmatprep.subr.mxu0 0.0
  %4810 = vmatpush2.msra.mxu0 0.0
  %4811 = vmatprep.subr.mxu0 0.0
  %4812 = vmatpush2.msra.mxu0 0.0
  %4813 = vmatprep.subr.mxu0 0.0
  %4814 = vmatpush2.msra.mxu0 0.0
  %4815 = vmatprep.subr.mxu0 0.0
  %4816 = vmatpush2.msra.mxu0 0.0
  %4817 = vmatprep.subr.mxu0 0.0
  %4818 = vmatpush2.msra.mxu0 0.0
  %4819 = vmatprep.subr.mxu0 0.0
  %4820 = vmatpush2.msra.mxu0 0.0
  %4821 = vmatprep.subr.mxu0 0.0
  %4822 = vmatpush2.msra.mxu0 0.0
  %4823 = vmatprep.subr.mxu0 0.0
  %4824 = vmatpush2.msra.mxu0 0.0
  %4825 = vmatprep.subr.mxu0 0.0
  %4826 = vmatpush2.msra.mxu0 0.0
  %4827 = vmatprep.mubr.f32.mxu0 0.0
  %4828 = vmatmul.mubr.f32.gmra.mxu0 %v4738
  %v4829 = vpop.f32.mrf.mxu0
  %v4830 = vadd.f32 0.0, %v4829
  %v4831 = vpop.f32.mrf.mxu0
  %4832 = vmatprep.mubr.f32.mxu0 0.0
  %4833 = vmatmul.mubr.f32.gmra.mxu0 %v4741
  %v4834 = vpop.f32.mrf.mxu0
  %v4835 = vadd.f32 0.0, %v4834
  %v4836 = vpop.f32.mrf.mxu0
  %4837 = vmatprep.mubr.f32.mxu0 0.0
  %4838 = vmatmul.mubr.f32.gmra.mxu0 %v4744
  %v4839 = vpop.f32.mrf.mxu0
  %v4840 = vadd.f32 0.0, %v4839
  %v4841 = vpop.f32.mrf.mxu0
  %4842 = vmatprep.mubr.f32.mxu0 0.0
  %4843 = vmatmul.mubr.f32.gmra.mxu0 %v4747
  %v4844 = vpop.f32.mrf.mxu0
  %v4845 = vadd.f32 0.0, %v4844
  %v4846 = vpop.f32.mrf.mxu0
  %4847 = vmatprep.mubr.f32.mxu0 0.0
  %4848 = vmatmul.mubr.f32.gmra.mxu0 %v4750
  %v4849 = vpop.f32.mrf.mxu0
  %v4850 = vadd.f32 0.0, %v4849
  %v4851 = vpop.f32.mrf.mxu0
  %4852 = vmatprep.mubr.f32.mxu0 0.0
  %4853 = vmatmul.mubr.f32.gmra.mxu0 %v4753
  %v4854 = vpop.f32.mrf.mxu0
  %v4855 = vadd.f32 0.0, %v4854
  %v4856 = vpop.f32.mrf.mxu0
  %4857 = vmatprep.mubr.f32.mxu0 0.0
  %4858 = vmatmul.mubr.f32.gmra.mxu0 %v4756
  %v4859 = vpop.f32.mrf.mxu0
  %v4860 = vadd.f32 0.0, %v4859
  %v4861 = vpop.f32.mrf.mxu0
  %4862 = vmatprep.mubr.f32.mxu0 0.0
  %4863 = vmatmul.mubr.f32.gmra.mxu0 %v4759
  %v4864 = vpop.f32.mrf.mxu0
  %v4865 = vadd.f32 0.0, %v4864
  %v4866 = vpop.f32.mrf.mxu0
  %4867 = vdwg.mxu0
  %v4869 = vsel %vm616, %v3935, 0
  %v4872 = vsel %vm616, %v3936, 0
  %v4875 = vsel %vm616, %v3937, 0
  %v4878 = vsel %vm616, %v3938, 0
  %v4881 = vsel %vm616, %v3939, 0
  %v4884 = vsel %vm616, %v3940, 0
  %v4887 = vsel %vm616, %v3941, 0
  %v4890 = vsel %vm616, %v3942, 0
  %v4892 = vsel %vm641, %v3686, 0
  %4894 = vmatprep.subr.mxu0 0.0
  %4895 = vmatpush1.msra.mxu0 0.0
  %4896 = vmatprep.subr.mxu0 0.0
  %4897 = vmatpush1.msra.mxu0 0.0
  %4898 = vmatprep.subr.mxu0 0.0
  %4899 = vmatpush1.msra.mxu0 0.0
  %4900 = vmatprep.subr.mxu0 0.0
  %4901 = vmatpush1.msra.mxu0 0.0
  %4902 = vmatprep.subr.mxu0 0.0
  %4903 = vmatpush1.msra.mxu0 0.0
  %4904 = vmatprep.subr.mxu0 0.0
  %4905 = vmatpush1.msra.mxu0 0.0
  %4906 = vmatprep.subr.mxu0 0.0
  %4907 = vmatpush1.msra.mxu0 0.0
  %4908 = vmatprep.subr.mxu0 0.0
  %4909 = vmatpush1.msra.mxu0 0.0
  %4910 = vmatprep.subr.mxu0 0.0
  %4911 = vmatpush1.msra.mxu0 0.0
  %4912 = vmatprep.subr.mxu0 0.0
  %4913 = vmatpush1.msra.mxu0 0.0
  %4914 = vmatprep.subr.mxu0 0.0
  %4915 = vmatpush1.msra.mxu0 0.0
  %4916 = vmatprep.subr.mxu0 0.0
  %4917 = vmatpush1.msra.mxu0 0.0
  %4918 = vmatprep.subr.mxu0 0.0
  %4919 = vmatpush1.msra.mxu0 0.0
  %4920 = vmatprep.subr.mxu0 0.0
  %4921 = vmatpush1.msra.mxu0 0.0
  %4922 = vmatprep.subr.mxu0 0.0
  %4923 = vmatpush1.msra.mxu0 0.0
  %4924 = vmatprep.subr.mxu0 0.0
  %4925 = vmatpush1.msra.mxu0 %v4892
  %4926 = vmatprep.subr.mxu0 0.0
  %4927 = vmatpush2.msra.mxu0 0.0
  %4928 = vmatprep.subr.mxu0 0.0
  %4929 = vmatpush2.msra.mxu0 0.0
  %4930 = vmatprep.subr.mxu0 0.0
  %4931 = vmatpush2.msra.mxu0 0.0
  %4932 = vmatprep.subr.mxu0 0.0
  %4933 = vmatpush2.msra.mxu0 0.0
  %4934 = vmatprep.subr.mxu0 0.0
  %4935 = vmatpush2.msra.mxu0 0.0
  %4936 = vmatprep.subr.mxu0 0.0
  %4937 = vmatpush2.msra.mxu0 0.0
  %4938 = vmatprep.subr.mxu0 0.0
  %4939 = vmatpush2.msra.mxu0 0.0
  %4940 = vmatprep.subr.mxu0 0.0
  %4941 = vmatpush2.msra.mxu0 0.0
  %4942 = vmatprep.subr.mxu0 0.0
  %4943 = vmatpush2.msra.mxu0 0.0
  %4944 = vmatprep.subr.mxu0 0.0
  %4945 = vmatpush2.msra.mxu0 0.0
  %4946 = vmatprep.subr.mxu0 0.0
  %4947 = vmatpush2.msra.mxu0 0.0
  %4948 = vmatprep.subr.mxu0 0.0
  %4949 = vmatpush2.msra.mxu0 0.0
  %4950 = vmatprep.subr.mxu0 0.0
  %4951 = vmatpush2.msra.mxu0 0.0
  %4952 = vmatprep.subr.mxu0 0.0
  %4953 = vmatpush2.msra.mxu0 0.0
  %4954 = vmatprep.subr.mxu0 0.0
  %4955 = vmatpush2.msra.mxu0 0.0
  %4956 = vmatprep.subr.mxu0 0.0
  %4957 = vmatpush2.msra.mxu0 0.0
  %4958 = vmatprep.mubr.f32.mxu0 0.0
  %4959 = vmatmul.mubr.f32.gmra.mxu0 %v4869
  %v4960 = vpop.f32.mrf.mxu0
  %v4961 = vadd.f32 0.0, %v4960
  %v4962 = vpop.f32.mrf.mxu0
  %4963 = vmatprep.mubr.f32.mxu0 0.0
  %4964 = vmatmul.mubr.f32.gmra.mxu0 %v4872
  %v4965 = vpop.f32.mrf.mxu0
  %v4966 = vadd.f32 0.0, %v4965
  %v4967 = vpop.f32.mrf.mxu0
  %4968 = vmatprep.mubr.f32.mxu0 0.0
  %4969 = vmatmul.mubr.f32.gmra.mxu0 %v4875
  %v4970 = vpop.f32.mrf.mxu0
  %v4971 = vadd.f32 0.0, %v4970
  %v4972 = vpop.f32.mrf.mxu0
  %4973 = vmatprep.mubr.f32.mxu0 0.0
  %4974 = vmatmul.mubr.f32.gmra.mxu0 %v4878
  %v4975 = vpop.f32.mrf.mxu0
  %v4976 = vadd.f32 0.0, %v4975
  %v4977 = vpop.f32.mrf.mxu0
  %4978 = vmatprep.mubr.f32.mxu0 0.0
  %4979 = vmatmul.mubr.f32.gmra.mxu0 %v4881
  %v4980 = vpop.f32.mrf.mxu0
  %v4981 = vadd.f32 0.0, %v4980
  %v4982 = vpop.f32.mrf.mxu0
  %4983 = vmatprep.mubr.f32.mxu0 0.0
  %4984 = vmatmul.mubr.f32.gmra.mxu0 %v4884
  %v4985 = vpop.f32.mrf.mxu0
  %v4986 = vadd.f32 0.0, %v4985
  %v4987 = vpop.f32.mrf.mxu0
  %4988 = vmatprep.mubr.f32.mxu0 0.0
  %4989 = vmatmul.mubr.f32.gmra.mxu0 %v4887
  %v4990 = vpop.f32.mrf.mxu0
  %v4991 = vadd.f32 0.0, %v4990
  %v4992 = vpop.f32.mrf.mxu0
  %4993 = vmatprep.mubr.f32.mxu0 0.0
  %4994 = vmatmul.mubr.f32.gmra.mxu0 %v4890
  %v4995 = vpop.f32.mrf.mxu0
  %v4996 = vadd.f32 0.0, %v4995
  %v4997 = vpop.f32.mrf.mxu0
  %4998 = vdwg.mxu0
  %v4999 = vsel %vm1666, %v4044, -inf
  %5000 = vmax.xlane.f32.xlu0 %v4999
  %v5001 = vpop.xlane.xlu0 %5000
  %v5002 = vsel %vm1666, %v4049, -inf
  %5003 = vmax.xlane.f32.xlu0 %v5002
  %v5004 = vpop.xlane.xlu0 %5003
  %v5005 = vsel %vm1666, %v4054, -inf
  %5006 = vmax.xlane.f32.xlu0 %v5005
  %v5007 = vpop.xlane.xlu0 %5006
  %v5008 = vsel %vm1666, %v4059, -inf
  %5009 = vmax.xlane.f32.xlu0 %v5008
  %v5010 = vpop.xlane.xlu0 %5009
  %v5011 = vsel %vm1666, %v4064, -inf
  %5012 = vmax.xlane.f32.xlu0 %v5011
  %v5013 = vpop.xlane.xlu0 %5012
  %v5014 = vsel %vm1666, %v4069, -inf
  %5015 = vmax.xlane.f32.xlu0 %v5014
  %v5016 = vpop.xlane.xlu0 %5015
  %v5017 = vsel %vm1666, %v4074, -inf
  %5018 = vmax.xlane.f32.xlu0 %v5017
  %v5019 = vpop.xlane.xlu0 %5018
  %v5020 = vsel %vm1666, %v4079, -inf
  %5021 = vmax.xlane.f32.xlu0 %v5020
  %v5022 = vpop.xlane.xlu0 %5021
  %v5023 = vsel %vm1666, %v4175, -inf
  %5024 = vmax.xlane.f32.xlu0 %v5023
  %v5025 = vpop.xlane.xlu0 %5024
  %v5026 = vsel %vm1666, %v4180, -inf
  %5027 = vmax.xlane.f32.xlu0 %v5026
  %v5028 = vpop.xlane.xlu0 %5027
  %v5029 = vsel %vm1666, %v4185, -inf
  %5030 = vmax.xlane.f32.xlu0 %v5029
  %v5031 = vpop.xlane.xlu0 %5030
  %v5032 = vsel %vm1666, %v4190, -inf
  %5033 = vmax.xlane.f32.xlu0 %v5032
  %v5034 = vpop.xlane.xlu0 %5033
  %v5035 = vsel %vm1666, %v4195, -inf
  %5036 = vmax.xlane.f32.xlu0 %v5035
  %v5037 = vpop.xlane.xlu0 %5036
  %v5038 = vsel %vm1666, %v4200, -inf
  %5039 = vmax.xlane.f32.xlu0 %v5038
  %v5040 = vpop.xlane.xlu0 %5039
  %v5041 = vsel %vm1666, %v4205, -inf
  %5042 = vmax.xlane.f32.xlu0 %v5041
  %v5043 = vpop.xlane.xlu0 %5042
  %v5044 = vsel %vm1666, %v4210, -inf
  %5045 = vmax.xlane.f32.xlu0 %v5044
  %v5046 = vpop.xlane.xlu0 %5045
  %v5047 = vsel %vm1666, %v4306, -inf
  %5048 = vmax.xlane.f32.xlu0 %v5047
  %v5049 = vpop.xlane.xlu0 %5048
  %v5050 = vsel %vm1666, %v4311, -inf
  %5051 = vmax.xlane.f32.xlu0 %v5050
  %v5052 = vpop.xlane.xlu0 %5051
  %v5053 = vsel %vm1666, %v4316, -inf
  %5054 = vmax.xlane.f32.xlu0 %v5053
  %v5055 = vpop.xlane.xlu0 %5054
  %v5056 = vsel %vm1666, %v4321, -inf
  %5057 = vmax.xlane.f32.xlu0 %v5056
  %v5058 = vpop.xlane.xlu0 %5057
  %v5059 = vsel %vm1666, %v4326, -inf
  %5060 = vmax.xlane.f32.xlu0 %v5059
  %v5061 = vpop.xlane.xlu0 %5060
  %v5062 = vsel %vm1666, %v4331, -inf
  %5063 = vmax.xlane.f32.xlu0 %v5062
  %v5064 = vpop.xlane.xlu0 %5063
  %v5065 = vsel %vm1666, %v4336, -inf
  %5066 = vmax.xlane.f32.xlu0 %v5065
  %v5067 = vpop.xlane.xlu0 %5066
  %v5068 = vsel %vm1666, %v4341, -inf
  %5069 = vmax.xlane.f32.xlu0 %v5068
  %v5070 = vpop.xlane.xlu0 %5069
  %v5071 = vsel %vm1666, %v4437, -inf
  %5072 = vmax.xlane.f32.xlu0 %v5071
  %v5073 = vpop.xlane.xlu0 %5072
  %v5074 = vsel %vm1666, %v4442, -inf
  %5075 = vmax.xlane.f32.xlu0 %v5074
  %v5076 = vpop.xlane.xlu0 %5075
  %v5077 = vsel %vm1666, %v4447, -inf
  %5078 = vmax.xlane.f32.xlu0 %v5077
  %v5079 = vpop.xlane.xlu0 %5078
  %v5080 = vsel %vm1666, %v4452, -inf
  %5081 = vmax.xlane.f32.xlu0 %v5080
  %v5082 = vpop.xlane.xlu0 %5081
  %v5083 = vsel %vm1666, %v4457, -inf
  %5084 = vmax.xlane.f32.xlu0 %v5083
  %v5085 = vpop.xlane.xlu0 %5084
  %v5086 = vsel %vm1666, %v4462, -inf
  %5087 = vmax.xlane.f32.xlu0 %v5086
  %v5088 = vpop.xlane.xlu0 %5087
  %v5089 = vsel %vm1666, %v4467, -inf
  %5090 = vmax.xlane.f32.xlu0 %v5089
  %v5091 = vpop.xlane.xlu0 %5090
  %v5092 = vsel %vm1666, %v4472, -inf
  %5093 = vmax.xlane.f32.xlu0 %v5092
  %v5094 = vpop.xlane.xlu0 %5093
  %v5095 = vsel %vm1666, %v4568, -inf
  %5096 = vmax.xlane.f32.xlu0 %v5095
  %v5097 = vpop.xlane.xlu0 %5096
  %v5098 = vsel %vm1666, %v4573, -inf
  %5099 = vmax.xlane.f32.xlu0 %v5098
  %v5100 = vpop.xlane.xlu0 %5099
  %v5101 = vsel %vm1666, %v4578, -inf
  %5102 = vmax.xlane.f32.xlu0 %v5101
  %v5103 = vpop.xlane.xlu0 %5102
  %v5104 = vsel %vm1666, %v4583, -inf
  %5105 = vmax.xlane.f32.xlu0 %v5104
  %v5106 = vpop.xlane.xlu0 %5105
  %v5107 = vsel %vm1666, %v4588, -inf
  %5108 = vmax.xlane.f32.xlu0 %v5107
  %v5109 = vpop.xlane.xlu0 %5108
  %v5110 = vsel %vm1666, %v4593, -inf
  %5111 = vmax.xlane.f32.xlu0 %v5110
  %v5112 = vpop.xlane.xlu0 %5111
  %v5113 = vsel %vm1666, %v4598, -inf
  %5114 = vmax.xlane.f32.xlu0 %v5113
  %v5115 = vpop.xlane.xlu0 %5114
  %v5116 = vsel %vm1666, %v4603, -inf
  %5117 = vmax.xlane.f32.xlu0 %v5116
  %v5118 = vpop.xlane.xlu0 %5117
  %v5119 = vsel %vm1666, %v4699, -inf
  %5120 = vmax.xlane.f32.xlu0 %v5119
  %v5121 = vpop.xlane.xlu0 %5120
  %v5122 = vsel %vm1666, %v4704, -inf
  %5123 = vmax.xlane.f32.xlu0 %v5122
  %v5124 = vpop.xlane.xlu0 %5123
  %v5125 = vsel %vm1666, %v4709, -inf
  %5126 = vmax.xlane.f32.xlu0 %v5125
  %v5127 = vpop.xlane.xlu0 %5126
  %v5128 = vsel %vm1666, %v4714, -inf
  %5129 = vmax.xlane.f32.xlu0 %v5128
  %v5130 = vpop.xlane.xlu0 %5129
  %v5131 = vsel %vm1666, %v4719, -inf
  %5132 = vmax.xlane.f32.xlu0 %v5131
  %v5133 = vpop.xlane.xlu0 %5132
  %v5134 = vsel %vm1666, %v4724, -inf
  %5135 = vmax.xlane.f32.xlu0 %v5134
  %v5136 = vpop.xlane.xlu0 %5135
  %v5137 = vsel %vm1666, %v4729, -inf
  %5138 = vmax.xlane.f32.xlu0 %v5137
  %v5139 = vpop.xlane.xlu0 %5138
  %v5140 = vsel %vm1666, %v4734, -inf
  %5141 = vmax.xlane.f32.xlu0 %v5140
  %v5142 = vpop.xlane.xlu0 %5141
  %v5143 = vsel %vm1666, %v4830, -inf
  %5144 = vmax.xlane.f32.xlu0 %v5143
  %v5145 = vpop.xlane.xlu0 %5144
  %v5146 = vsel %vm1666, %v4835, -inf
  %5147 = vmax.xlane.f32.xlu0 %v5146
  %v5148 = vpop.xlane.xlu0 %5147
  %v5149 = vsel %vm1666, %v4840, -inf
  %5150 = vmax.xlane.f32.xlu0 %v5149
  %v5151 = vpop.xlane.xlu0 %5150
  %v5152 = vsel %vm1666, %v4845, -inf
  %5153 = vmax.xlane.f32.xlu0 %v5152
  %v5154 = vpop.xlane.xlu0 %5153
  %v5155 = vsel %vm1666, %v4850, -inf
  %5156 = vmax.xlane.f32.xlu0 %v5155
  %v5157 = vpop.xlane.xlu0 %5156
  %v5158 = vsel %vm1666, %v4855, -inf
  %5159 = vmax.xlane.f32.xlu0 %v5158
  %v5160 = vpop.xlane.xlu0 %5159
  %v5161 = vsel %vm1666, %v4860, -inf
  %5162 = vmax.xlane.f32.xlu0 %v5161
  %v5163 = vpop.xlane.xlu0 %5162
  %v5164 = vsel %vm1666, %v4865, -inf
  %5165 = vmax.xlane.f32.xlu0 %v5164
  %v5166 = vpop.xlane.xlu0 %5165
  %v5167 = vsel %vm1666, %v4961, -inf
  %5168 = vmax.xlane.f32.xlu0 %v5167
  %v5169 = vpop.xlane.xlu0 %5168
  %v5170 = vsel %vm1666, %v4966, -inf
  %5171 = vmax.xlane.f32.xlu0 %v5170
  %v5172 = vpop.xlane.xlu0 %5171
  %v5173 = vsel %vm1666, %v4971, -inf
  %5174 = vmax.xlane.f32.xlu0 %v5173
  %v5175 = vpop.xlane.xlu0 %5174
  %v5176 = vsel %vm1666, %v4976, -inf
  %5177 = vmax.xlane.f32.xlu0 %v5176
  %v5178 = vpop.xlane.xlu0 %5177
  %v5179 = vsel %vm1666, %v4981, -inf
  %5180 = vmax.xlane.f32.xlu0 %v5179
  %v5181 = vpop.xlane.xlu0 %5180
  %v5182 = vsel %vm1666, %v4986, -inf
  %5183 = vmax.xlane.f32.xlu0 %v5182
  %v5184 = vpop.xlane.xlu0 %5183
  %v5185 = vsel %vm1666, %v4991, -inf
  %5186 = vmax.xlane.f32.xlu0 %v5185
  %v5187 = vpop.xlane.xlu0 %5186
  %v5188 = vsel %vm1666, %v4996, -inf
  %5189 = vmax.xlane.f32.xlu0 %v5188
  %v5190 = vpop.xlane.xlu0 %5189
  %v5191 = vsub.f32 %v4044, %v5001
  %v5192 = vsub.f32 %v4049, %v5004
  %v5193 = vsub.f32 %v4054, %v5007
  %v5194 = vsub.f32 %v4059, %v5010
  %v5195 = vsub.f32 %v4064, %v5013
  %v5196 = vsub.f32 %v4069, %v5016
  %v5197 = vsub.f32 %v4074, %v5019
  %v5198 = vsub.f32 %v4079, %v5022
  %v5199 = vsub.f32 %v4175, %v5025
  %v5200 = vsub.f32 %v4180, %v5028
  %v5201 = vsub.f32 %v4185, %v5031
  %v5202 = vsub.f32 %v4190, %v5034
  %v5203 = vsub.f32 %v4195, %v5037
  %v5204 = vsub.f32 %v4200, %v5040
  %v5205 = vsub.f32 %v4205, %v5043
  %v5206 = vsub.f32 %v4210, %v5046
  %v5207 = vsub.f32 %v4306, %v5049
  %v5208 = vsub.f32 %v4311, %v5052
  %v5209 = vsub.f32 %v4316, %v5055
  %v5210 = vsub.f32 %v4321, %v5058
  %v5211 = vsub.f32 %v4326, %v5061
  %v5212 = vsub.f32 %v4331, %v5064
  %v5213 = vsub.f32 %v4336, %v5067
  %v5214 = vsub.f32 %v4341, %v5070
  %v5215 = vsub.f32 %v4437, %v5073
  %v5216 = vsub.f32 %v4442, %v5076
  %v5217 = vsub.f32 %v4447, %v5079
  %v5218 = vsub.f32 %v4452, %v5082
  %v5219 = vsub.f32 %v4457, %v5085
  %v5220 = vsub.f32 %v4462, %v5088
  %v5221 = vsub.f32 %v4467, %v5091
  %v5222 = vsub.f32 %v4472, %v5094
  %v5223 = vsub.f32 %v4568, %v5097
  %v5224 = vsub.f32 %v4573, %v5100
  %v5225 = vsub.f32 %v4578, %v5103
  %v5226 = vsub.f32 %v4583, %v5106
  %v5227 = vsub.f32 %v4588, %v5109
  %v5228 = vsub.f32 %v4593, %v5112
  %v5229 = vsub.f32 %v4598, %v5115
  %v5230 = vsub.f32 %v4603, %v5118
  %v5231 = vsub.f32 %v4699, %v5121
  %v5232 = vsub.f32 %v4704, %v5124
  %v5233 = vsub.f32 %v4709, %v5127
  %v5234 = vsub.f32 %v4714, %v5130
  %v5235 = vsub.f32 %v4719, %v5133
  %v5236 = vsub.f32 %v4724, %v5136
  %v5237 = vsub.f32 %v4729, %v5139
  %v5238 = vsub.f32 %v4734, %v5142
  %v5239 = vsub.f32 %v4830, %v5145
  %v5240 = vsub.f32 %v4835, %v5148
  %v5241 = vsub.f32 %v4840, %v5151
  %v5242 = vsub.f32 %v4845, %v5154
  %v5243 = vsub.f32 %v4850, %v5157
  %v5244 = vsub.f32 %v4855, %v5160
  %v5245 = vsub.f32 %v4860, %v5163
  %v5246 = vsub.f32 %v4865, %v5166
  %v5247 = vsub.f32 %v4961, %v5169
  %v5248 = vsub.f32 %v4966, %v5172
  %v5249 = vsub.f32 %v4971, %v5175
  %v5250 = vsub.f32 %v4976, %v5178
  %v5251 = vsub.f32 %v4981, %v5181
  %v5252 = vsub.f32 %v4986, %v5184
  %v5253 = vsub.f32 %v4991, %v5187
  %v5254 = vsub.f32 %v4996, %v5190
  %v5255 = vmul.f32 %v5191, 1.442695
  %v5256 = vpow.pop %v5255
  %v5257 = vmul.f32 %v5192, 1.442695
  %v5258 = vpow.pop %v5257
  %v5259 = vmul.f32 %v5193, 1.442695
  %v5260 = vpow.pop %v5259
  %v5261 = vmul.f32 %v5194, 1.442695
  %v5262 = vpow.pop %v5261
  %v5263 = vmul.f32 %v5195, 1.442695
  %v5264 = vpow.pop %v5263
  %v5265 = vmul.f32 %v5196, 1.442695
  %v5266 = vpow.pop %v5265
  %v5267 = vmul.f32 %v5197, 1.442695
  %v5268 = vpow.pop %v5267
  %v5269 = vmul.f32 %v5198, 1.442695
  %v5270 = vpow.pop %v5269
  %v5271 = vmul.f32 %v5199, 1.442695
  %v5272 = vpow.pop %v5271
  %v5273 = vmul.f32 %v5200, 1.442695
  %v5274 = vpow.pop %v5273
  %v5275 = vmul.f32 %v5201, 1.442695
  %v5276 = vpow.pop %v5275
  %v5277 = vmul.f32 %v5202, 1.442695
  %v5278 = vpow.pop %v5277
  %v5279 = vmul.f32 %v5203, 1.442695
  %v5280 = vpow.pop %v5279
  %v5281 = vmul.f32 %v5204, 1.442695
  %v5282 = vpow.pop %v5281
  %v5283 = vmul.f32 %v5205, 1.442695
  %v5284 = vpow.pop %v5283
  %v5285 = vmul.f32 %v5206, 1.442695
  %v5286 = vpow.pop %v5285
  %v5287 = vmul.f32 %v5207, 1.442695
  %v5288 = vpow.pop %v5287
  %v5289 = vmul.f32 %v5208, 1.442695
  %v5290 = vpow.pop %v5289
  %v5291 = vmul.f32 %v5209, 1.442695
  %v5292 = vpow.pop %v5291
  %v5293 = vmul.f32 %v5210, 1.442695
  %v5294 = vpow.pop %v5293
  %v5295 = vmul.f32 %v5211, 1.442695
  %v5296 = vpow.pop %v5295
  %v5297 = vmul.f32 %v5212, 1.442695
  %v5298 = vpow.pop %v5297
  %v5299 = vmul.f32 %v5213, 1.442695
  %v5300 = vpow.pop %v5299
  %v5301 = vmul.f32 %v5214, 1.442695
  %v5302 = vpow.pop %v5301
  %v5303 = vmul.f32 %v5215, 1.442695
  %v5304 = vpow.pop %v5303
  %v5305 = vmul.f32 %v5216, 1.442695
  %v5306 = vpow.pop %v5305
  %v5307 = vmul.f32 %v5217, 1.442695
  %v5308 = vpow.pop %v5307
  %v5309 = vmul.f32 %v5218, 1.442695
  %v5310 = vpow.pop %v5309
  %v5311 = vmul.f32 %v5219, 1.442695
  %v5312 = vpow.pop %v5311
  %v5313 = vmul.f32 %v5220, 1.442695
  %v5314 = vpow.pop %v5313
  %v5315 = vmul.f32 %v5221, 1.442695
  %v5316 = vpow.pop %v5315
  %v5317 = vmul.f32 %v5222, 1.442695
  %v5318 = vpow.pop %v5317
  %v5319 = vmul.f32 %v5223, 1.442695
  %v5320 = vpow.pop %v5319
  %v5321 = vmul.f32 %v5224, 1.442695
  %v5322 = vpow.pop %v5321
  %v5323 = vmul.f32 %v5225, 1.442695
  %v5324 = vpow.pop %v5323
  %v5325 = vmul.f32 %v5226, 1.442695
  %v5326 = vpow.pop %v5325
  %v5327 = vmul.f32 %v5227, 1.442695
  %v5328 = vpow.pop %v5327
  %v5329 = vmul.f32 %v5228, 1.442695
  %v5330 = vpow.pop %v5329
  %v5331 = vmul.f32 %v5229, 1.442695
  %v5332 = vpow.pop %v5331
  %v5333 = vmul.f32 %v5230, 1.442695
  %v5334 = vpow.pop %v5333
  %v5335 = vmul.f32 %v5231, 1.442695
  %v5336 = vpow.pop %v5335
  %v5337 = vmul.f32 %v5232, 1.442695
  %v5338 = vpow.pop %v5337
  %v5339 = vmul.f32 %v5233, 1.442695
  %v5340 = vpow.pop %v5339
  %v5341 = vmul.f32 %v5234, 1.442695
  %v5342 = vpow.pop %v5341
  %v5343 = vmul.f32 %v5235, 1.442695
  %v5344 = vpow.pop %v5343
  %v5345 = vmul.f32 %v5236, 1.442695
  %v5346 = vpow.pop %v5345
  %v5347 = vmul.f32 %v5237, 1.442695
  %v5348 = vpow.pop %v5347
  %v5349 = vmul.f32 %v5238, 1.442695
  %v5350 = vpow.pop %v5349
  %v5351 = vmul.f32 %v5239, 1.442695
  %v5352 = vpow.pop %v5351
  %v5353 = vmul.f32 %v5240, 1.442695
  %v5354 = vpow.pop %v5353
  %v5355 = vmul.f32 %v5241, 1.442695
  %v5356 = vpow.pop %v5355
  %v5357 = vmul.f32 %v5242, 1.442695
  %v5358 = vpow.pop %v5357
  %v5359 = vmul.f32 %v5243, 1.442695
  %v5360 = vpow.pop %v5359
  %v5361 = vmul.f32 %v5244, 1.442695
  %v5362 = vpow.pop %v5361
  %v5363 = vmul.f32 %v5245, 1.442695
  %v5364 = vpow.pop %v5363
  %v5365 = vmul.f32 %v5246, 1.442695
  %v5366 = vpow.pop %v5365
  %v5367 = vmul.f32 %v5247, 1.442695
  %v5368 = vpow.pop %v5367
  %v5369 = vmul.f32 %v5248, 1.442695
  %v5370 = vpow.pop %v5369
  %v5371 = vmul.f32 %v5249, 1.442695
  %v5372 = vpow.pop %v5371
  %v5373 = vmul.f32 %v5250, 1.442695
  %v5374 = vpow.pop %v5373
  %v5375 = vmul.f32 %v5251, 1.442695
  %v5376 = vpow.pop %v5375
  %v5377 = vmul.f32 %v5252, 1.442695
  %v5378 = vpow.pop %v5377
  %v5379 = vmul.f32 %v5253, 1.442695
  %v5380 = vpow.pop %v5379
  %v5381 = vmul.f32 %v5254, 1.442695
  %v5382 = vpow.pop %v5381
  %v5383 = vsel %vm1666, %v5256, 0.0
  %5384 = vadd.xlane.f32.xlu0 %v5383
  %v5385 = vpop.xlane.xlu0 %5384
  %v5386 = vsel %vm1666, %v5258, 0.0
  %5387 = vadd.xlane.f32.xlu0 %v5386
  %v5388 = vpop.xlane.xlu0 %5387
  %v5389 = vsel %vm1666, %v5260, 0.0
  %5390 = vadd.xlane.f32.xlu0 %v5389
  %v5391 = vpop.xlane.xlu0 %5390
  %v5392 = vsel %vm1666, %v5262, 0.0
  %5393 = vadd.xlane.f32.xlu0 %v5392
  %v5394 = vpop.xlane.xlu0 %5393
  %v5395 = vsel %vm1666, %v5264, 0.0
  %5396 = vadd.xlane.f32.xlu0 %v5395
  %v5397 = vpop.xlane.xlu0 %5396
  %v5398 = vsel %vm1666, %v5266, 0.0
  %5399 = vadd.xlane.f32.xlu0 %v5398
  %v5400 = vpop.xlane.xlu0 %5399
  %v5401 = vsel %vm1666, %v5268, 0.0
  %5402 = vadd.xlane.f32.xlu0 %v5401
  %v5403 = vpop.xlane.xlu0 %5402
  %v5404 = vsel %vm1666, %v5270, 0.0
  %5405 = vadd.xlane.f32.xlu0 %v5404
  %v5406 = vpop.xlane.xlu0 %5405
  %v5407 = vsel %vm1666, %v5272, 0.0
  %5408 = vadd.xlane.f32.xlu0 %v5407
  %v5409 = vpop.xlane.xlu0 %5408
  %v5410 = vsel %vm1666, %v5274, 0.0
  %5411 = vadd.xlane.f32.xlu0 %v5410
  %v5412 = vpop.xlane.xlu0 %5411
  %v5413 = vsel %vm1666, %v5276, 0.0
  %5414 = vadd.xlane.f32.xlu0 %v5413
  %v5415 = vpop.xlane.xlu0 %5414
  %v5416 = vsel %vm1666, %v5278, 0.0
  %5417 = vadd.xlane.f32.xlu0 %v5416
  %v5418 = vpop.xlane.xlu0 %5417
  %v5419 = vsel %vm1666, %v5280, 0.0
  %5420 = vadd.xlane.f32.xlu0 %v5419
  %v5421 = vpop.xlane.xlu0 %5420
  %v5422 = vsel %vm1666, %v5282, 0.0
  %5423 = vadd.xlane.f32.xlu0 %v5422
  %v5424 = vpop.xlane.xlu0 %5423
  %v5425 = vsel %vm1666, %v5284, 0.0
  %5426 = vadd.xlane.f32.xlu0 %v5425
  %v5427 = vpop.xlane.xlu0 %5426
  %v5428 = vsel %vm1666, %v5286, 0.0
  %5429 = vadd.xlane.f32.xlu0 %v5428
  %v5430 = vpop.xlane.xlu0 %5429
  %v5431 = vsel %vm1666, %v5288, 0.0
  %5432 = vadd.xlane.f32.xlu0 %v5431
  %v5433 = vpop.xlane.xlu0 %5432
  %v5434 = vsel %vm1666, %v5290, 0.0
  %5435 = vadd.xlane.f32.xlu0 %v5434
  %v5436 = vpop.xlane.xlu0 %5435
  %v5437 = vsel %vm1666, %v5292, 0.0
  %5438 = vadd.xlane.f32.xlu0 %v5437
  %v5439 = vpop.xlane.xlu0 %5438
  %v5440 = vsel %vm1666, %v5294, 0.0
  %5441 = vadd.xlane.f32.xlu0 %v5440
  %v5442 = vpop.xlane.xlu0 %5441
  %v5443 = vsel %vm1666, %v5296, 0.0
  %5444 = vadd.xlane.f32.xlu0 %v5443
  %v5445 = vpop.xlane.xlu0 %5444
  %v5446 = vsel %vm1666, %v5298, 0.0
  %5447 = vadd.xlane.f32.xlu0 %v5446
  %v5448 = vpop.xlane.xlu0 %5447
  %v5449 = vsel %vm1666, %v5300, 0.0
  %5450 = vadd.xlane.f32.xlu0 %v5449
  %v5451 = vpop.xlane.xlu0 %5450
  %v5452 = vsel %vm1666, %v5302, 0.0
  %5453 = vadd.xlane.f32.xlu0 %v5452
  %v5454 = vpop.xlane.xlu0 %5453
  %v5455 = vsel %vm1666, %v5304, 0.0
  %5456 = vadd.xlane.f32.xlu0 %v5455
  %v5457 = vpop.xlane.xlu0 %5456
  %v5458 = vsel %vm1666, %v5306, 0.0
  %5459 = vadd.xlane.f32.xlu0 %v5458
  %v5460 = vpop.xlane.xlu0 %5459
  %v5461 = vsel %vm1666, %v5308, 0.0
  %5462 = vadd.xlane.f32.xlu0 %v5461
  %v5463 = vpop.xlane.xlu0 %5462
  %v5464 = vsel %vm1666, %v5310, 0.0
  %5465 = vadd.xlane.f32.xlu0 %v5464
  %v5466 = vpop.xlane.xlu0 %5465
  %v5467 = vsel %vm1666, %v5312, 0.0
  %5468 = vadd.xlane.f32.xlu0 %v5467
  %v5469 = vpop.xlane.xlu0 %5468
  %v5470 = vsel %vm1666, %v5314, 0.0
  %5471 = vadd.xlane.f32.xlu0 %v5470
  %v5472 = vpop.xlane.xlu0 %5471
  %v5473 = vsel %vm1666, %v5316, 0.0
  %5474 = vadd.xlane.f32.xlu0 %v5473
  %v5475 = vpop.xlane.xlu0 %5474
  %v5476 = vsel %vm1666, %v5318, 0.0
  %5477 = vadd.xlane.f32.xlu0 %v5476
  %v5478 = vpop.xlane.xlu0 %5477
  %v5479 = vsel %vm1666, %v5320, 0.0
  %5480 = vadd.xlane.f32.xlu0 %v5479
  %v5481 = vpop.xlane.xlu0 %5480
  %v5482 = vsel %vm1666, %v5322, 0.0
  %5483 = vadd.xlane.f32.xlu0 %v5482
  %v5484 = vpop.xlane.xlu0 %5483
  %v5485 = vsel %vm1666, %v5324, 0.0
  %5486 = vadd.xlane.f32.xlu0 %v5485
  %v5487 = vpop.xlane.xlu0 %5486
  %v5488 = vsel %vm1666, %v5326, 0.0
  %5489 = vadd.xlane.f32.xlu0 %v5488
  %v5490 = vpop.xlane.xlu0 %5489
  %v5491 = vsel %vm1666, %v5328, 0.0
  %5492 = vadd.xlane.f32.xlu0 %v5491
  %v5493 = vpop.xlane.xlu0 %5492
  %v5494 = vsel %vm1666, %v5330, 0.0
  %5495 = vadd.xlane.f32.xlu0 %v5494
  %v5496 = vpop.xlane.xlu0 %5495
  %v5497 = vsel %vm1666, %v5332, 0.0
  %5498 = vadd.xlane.f32.xlu0 %v5497
  %v5499 = vpop.xlane.xlu0 %5498
  %v5500 = vsel %vm1666, %v5334, 0.0
  %5501 = vadd.xlane.f32.xlu0 %v5500
  %v5502 = vpop.xlane.xlu0 %5501
  %v5503 = vsel %vm1666, %v5336, 0.0
  %5504 = vadd.xlane.f32.xlu0 %v5503
  %v5505 = vpop.xlane.xlu0 %5504
  %v5506 = vsel %vm1666, %v5338, 0.0
  %5507 = vadd.xlane.f32.xlu0 %v5506
  %v5508 = vpop.xlane.xlu0 %5507
  %v5509 = vsel %vm1666, %v5340, 0.0
  %5510 = vadd.xlane.f32.xlu0 %v5509
  %v5511 = vpop.xlane.xlu0 %5510
  %v5512 = vsel %vm1666, %v5342, 0.0
  %5513 = vadd.xlane.f32.xlu0 %v5512
  %v5514 = vpop.xlane.xlu0 %5513
  %v5515 = vsel %vm1666, %v5344, 0.0
  %5516 = vadd.xlane.f32.xlu0 %v5515
  %v5517 = vpop.xlane.xlu0 %5516
  %v5518 = vsel %vm1666, %v5346, 0.0
  %5519 = vadd.xlane.f32.xlu0 %v5518
  %v5520 = vpop.xlane.xlu0 %5519
  %v5521 = vsel %vm1666, %v5348, 0.0
  %5522 = vadd.xlane.f32.xlu0 %v5521
  %v5523 = vpop.xlane.xlu0 %5522
  %v5524 = vsel %vm1666, %v5350, 0.0
  %5525 = vadd.xlane.f32.xlu0 %v5524
  %v5526 = vpop.xlane.xlu0 %5525
  %v5527 = vsel %vm1666, %v5352, 0.0
  %5528 = vadd.xlane.f32.xlu0 %v5527
  %v5529 = vpop.xlane.xlu0 %5528
  %v5530 = vsel %vm1666, %v5354, 0.0
  %5531 = vadd.xlane.f32.xlu0 %v5530
  %v5532 = vpop.xlane.xlu0 %5531
  %v5533 = vsel %vm1666, %v5356, 0.0
  %5534 = vadd.xlane.f32.xlu0 %v5533
  %v5535 = vpop.xlane.xlu0 %5534
  %v5536 = vsel %vm1666, %v5358, 0.0
  %5537 = vadd.xlane.f32.xlu0 %v5536
  %v5538 = vpop.xlane.xlu0 %5537
  %v5539 = vsel %vm1666, %v5360, 0.0
  %5540 = vadd.xlane.f32.xlu0 %v5539
  %v5541 = vpop.xlane.xlu0 %5540
  %v5542 = vsel %vm1666, %v5362, 0.0
  %5543 = vadd.xlane.f32.xlu0 %v5542
  %v5544 = vpop.xlane.xlu0 %5543
  %v5545 = vsel %vm1666, %v5364, 0.0
  %5546 = vadd.xlane.f32.xlu0 %v5545
  %v5547 = vpop.xlane.xlu0 %5546
  %v5548 = vsel %vm1666, %v5366, 0.0
  %5549 = vadd.xlane.f32.xlu0 %v5548
  %v5550 = vpop.xlane.xlu0 %5549
  %v5551 = vsel %vm1666, %v5368, 0.0
  %5552 = vadd.xlane.f32.xlu0 %v5551
  %v5553 = vpop.xlane.xlu0 %5552
  %v5554 = vsel %vm1666, %v5370, 0.0
  %5555 = vadd.xlane.f32.xlu0 %v5554
  %v5556 = vpop.xlane.xlu0 %5555
  %v5557 = vsel %vm1666, %v5372, 0.0
  %5558 = vadd.xlane.f32.xlu0 %v5557
  %v5559 = vpop.xlane.xlu0 %5558
  %v5560 = vsel %vm1666, %v5374, 0.0
  %5561 = vadd.xlane.f32.xlu0 %v5560
  %v5562 = vpop.xlane.xlu0 %5561
  %v5563 = vsel %vm1666, %v5376, 0.0
  %5564 = vadd.xlane.f32.xlu0 %v5563
  %v5565 = vpop.xlane.xlu0 %5564
  %v5566 = vsel %vm1666, %v5378, 0.0
  %5567 = vadd.xlane.f32.xlu0 %v5566
  %v5568 = vpop.xlane.xlu0 %5567
  %v5569 = vsel %vm1666, %v5380, 0.0
  %5570 = vadd.xlane.f32.xlu0 %v5569
  %v5571 = vpop.xlane.xlu0 %5570
  %v5572 = vsel %vm1666, %v5382, 0.0
  %5573 = vadd.xlane.f32.xlu0 %v5572
  %v5574 = vpop.xlane.xlu0 %5573
  %v5575 = vrcp.pop %v5385
  %v5576 = vrcp.pop %v5388
  %v5577 = vrcp.pop %v5391
  %v5578 = vrcp.pop %v5394
  %v5579 = vrcp.pop %v5397
  %v5580 = vrcp.pop %v5400
  %v5581 = vrcp.pop %v5403
  %v5582 = vrcp.pop %v5406
  %v5583 = vrcp.pop %v5409
  %v5584 = vrcp.pop %v5412
  %v5585 = vrcp.pop %v5415
  %v5586 = vrcp.pop %v5418
  %v5587 = vrcp.pop %v5421
  %v5588 = vrcp.pop %v5424
  %v5589 = vrcp.pop %v5427
  %v5590 = vrcp.pop %v5430
  %v5591 = vrcp.pop %v5433
  %v5592 = vrcp.pop %v5436
  %v5593 = vrcp.pop %v5439
  %v5594 = vrcp.pop %v5442
  %v5595 = vrcp.pop %v5445
  %v5596 = vrcp.pop %v5448
  %v5597 = vrcp.pop %v5451
  %v5598 = vrcp.pop %v5454
  %v5599 = vrcp.pop %v5457
  %v5600 = vrcp.pop %v5460
  %v5601 = vrcp.pop %v5463
  %v5602 = vrcp.pop %v5466
  %v5603 = vrcp.pop %v5469
  %v5604 = vrcp.pop %v5472
  %v5605 = vrcp.pop %v5475
  %v5606 = vrcp.pop %v5478
  %v5607 = vrcp.pop %v5481
  %v5608 = vrcp.pop %v5484
  %v5609 = vrcp.pop %v5487
  %v5610 = vrcp.pop %v5490
  %v5611 = vrcp.pop %v5493
  %v5612 = vrcp.pop %v5496
  %v5613 = vrcp.pop %v5499
  %v5614 = vrcp.pop %v5502
  %v5615 = vrcp.pop %v5505
  %v5616 = vrcp.pop %v5508
  %v5617 = vrcp.pop %v5511
  %v5618 = vrcp.pop %v5514
  %v5619 = vrcp.pop %v5517
  %v5620 = vrcp.pop %v5520
  %v5621 = vrcp.pop %v5523
  %v5622 = vrcp.pop %v5526
  %v5623 = vrcp.pop %v5529
  %v5624 = vrcp.pop %v5532
  %v5625 = vrcp.pop %v5535
  %v5626 = vrcp.pop %v5538
  %v5627 = vrcp.pop %v5541
  %v5628 = vrcp.pop %v5544
  %v5629 = vrcp.pop %v5547
  %v5630 = vrcp.pop %v5550
  %v5631 = vrcp.pop %v5553
  %v5632 = vrcp.pop %v5556
  %v5633 = vrcp.pop %v5559
  %v5634 = vrcp.pop %v5562
  %v5635 = vrcp.pop %v5565
  %v5636 = vrcp.pop %v5568
  %v5637 = vrcp.pop %v5571
  %v5638 = vrcp.pop %v5574
  %v5639 = vmul.f32 %v5385, %v5575
  %v5640 = vmul.f32 %v5388, %v5576
  %v5641 = vmul.f32 %v5391, %v5577
  %v5642 = vmul.f32 %v5394, %v5578
  %v5643 = vmul.f32 %v5397, %v5579
  %v5644 = vmul.f32 %v5400, %v5580
  %v5645 = vmul.f32 %v5403, %v5581
  %v5646 = vmul.f32 %v5406, %v5582
  %v5647 = vmul.f32 %v5409, %v5583
  %v5648 = vmul.f32 %v5412, %v5584
  %v5649 = vmul.f32 %v5415, %v5585
  %v5650 = vmul.f32 %v5418, %v5586
  %v5651 = vmul.f32 %v5421, %v5587
  %v5652 = vmul.f32 %v5424, %v5588
  %v5653 = vmul.f32 %v5427, %v5589
  %v5654 = vmul.f32 %v5430, %v5590
  %v5655 = vmul.f32 %v5433, %v5591
  %v5656 = vmul.f32 %v5436, %v5592
  %v5657 = vmul.f32 %v5439, %v5593
  %v5658 = vmul.f32 %v5442, %v5594
  %v5659 = vmul.f32 %v5445, %v5595
  %v5660 = vmul.f32 %v5448, %v5596
  %v5661 = vmul.f32 %v5451, %v5597
  %v5662 = vmul.f32 %v5454, %v5598
  %v5663 = vmul.f32 %v5457, %v5599
  %v5664 = vmul.f32 %v5460, %v5600
  %v5665 = vmul.f32 %v5463, %v5601
  %v5666 = vmul.f32 %v5466, %v5602
  %v5667 = vmul.f32 %v5469, %v5603
  %v5668 = vmul.f32 %v5472, %v5604
  %v5669 = vmul.f32 %v5475, %v5605
  %v5670 = vmul.f32 %v5478, %v5606
  %v5671 = vmul.f32 %v5481, %v5607
  %v5672 = vmul.f32 %v5484, %v5608
  %v5673 = vmul.f32 %v5487, %v5609
  %v5674 = vmul.f32 %v5490, %v5610
  %v5675 = vmul.f32 %v5493, %v5611
  %v5676 = vmul.f32 %v5496, %v5612
  %v5677 = vmul.f32 %v5499, %v5613
  %v5678 = vmul.f32 %v5502, %v5614
  %v5679 = vmul.f32 %v5505, %v5615
  %v5680 = vmul.f32 %v5508, %v5616
  %v5681 = vmul.f32 %v5511, %v5617
  %v5682 = vmul.f32 %v5514, %v5618
  %v5683 = vmul.f32 %v5517, %v5619
  %v5684 = vmul.f32 %v5520, %v5620
  %v5685 = vmul.f32 %v5523, %v5621
  %v5686 = vmul.f32 %v5526, %v5622
  %v5687 = vmul.f32 %v5529, %v5623
  %v5688 = vmul.f32 %v5532, %v5624
  %v5689 = vmul.f32 %v5535, %v5625
  %v5690 = vmul.f32 %v5538, %v5626
  %v5691 = vmul.f32 %v5541, %v5627
  %v5692 = vmul.f32 %v5544, %v5628
  %v5693 = vmul.f32 %v5547, %v5629
  %v5694 = vmul.f32 %v5550, %v5630
  %v5695 = vmul.f32 %v5553, %v5631
  %v5696 = vmul.f32 %v5556, %v5632
  %v5697 = vmul.f32 %v5559, %v5633
  %v5698 = vmul.f32 %v5562, %v5634
  %v5699 = vmul.f32 %v5565, %v5635
  %v5700 = vmul.f32 %v5568, %v5636
  %v5701 = vmul.f32 %v5571, %v5637
  %v5702 = vmul.f32 %v5574, %v5638
  %v5703 = vsub.f32 2.0, %v5639
  %v5704 = vsub.f32 2.0, %v5640
  %v5705 = vsub.f32 2.0, %v5641
  %v5706 = vsub.f32 2.0, %v5642
  %v5707 = vsub.f32 2.0, %v5643
  %v5708 = vsub.f32 2.0, %v5644
  %v5709 = vsub.f32 2.0, %v5645
  %v5710 = vsub.f32 2.0, %v5646
  %v5711 = vsub.f32 2.0, %v5647
  %v5712 = vsub.f32 2.0, %v5648
  %v5713 = vsub.f32 2.0, %v5649
  %v5714 = vsub.f32 2.0, %v5650
  %v5715 = vsub.f32 2.0, %v5651
  %v5716 = vsub.f32 2.0, %v5652
  %v5717 = vsub.f32 2.0, %v5653
  %v5718 = vsub.f32 2.0, %v5654
  %v5719 = vsub.f32 2.0, %v5655
  %v5720 = vsub.f32 2.0, %v5656
  %v5721 = vsub.f32 2.0, %v5657
  %v5722 = vsub.f32 2.0, %v5658
  %v5723 = vsub.f32 2.0, %v5659
  %v5724 = vsub.f32 2.0, %v5660
  %v5725 = vsub.f32 2.0, %v5661
  %v5726 = vsub.f32 2.0, %v5662
  %v5727 = vsub.f32 2.0, %v5663
  %v5728 = vsub.f32 2.0, %v5664
  %v5729 = vsub.f32 2.0, %v5665
  %v5730 = vsub.f32 2.0, %v5666
  %v5731 = vsub.f32 2.0, %v5667
  %v5732 = vsub.f32 2.0, %v5668
  %v5733 = vsub.f32 2.0, %v5669
  %v5734 = vsub.f32 2.0, %v5670
  %v5735 = vsub.f32 2.0, %v5671
  %v5736 = vsub.f32 2.0, %v5672
  %v5737 = vsub.f32 2.0, %v5673
  %v5738 = vsub.f32 2.0, %v5674
  %v5739 = vsub.f32 2.0, %v5675
  %v5740 = vsub.f32 2.0, %v5676
  %v5741 = vsub.f32 2.0, %v5677
  %v5742 = vsub.f32 2.0, %v5678
  %v5743 = vsub.f32 2.0, %v5679
  %v5744 = vsub.f32 2.0, %v5680
  %v5745 = vsub.f32 2.0, %v5681
  %v5746 = vsub.f32 2.0, %v5682
  %v5747 = vsub.f32 2.0, %v5683
  %v5748 = vsub.f32 2.0, %v5684
  %v5749 = vsub.f32 2.0, %v5685
  %v5750 = vsub.f32 2.0, %v5686
  %v5751 = vsub.f32 2.0, %v5687
  %v5752 = vsub.f32 2.0, %v5688
  %v5753 = vsub.f32 2.0, %v5689
  %v5754 = vsub.f32 2.0, %v5690
  %v5755 = vsub.f32 2.0, %v5691
  %v5756 = vsub.f32 2.0, %v5692
  %v5757 = vsub.f32 2.0, %v5693
  %v5758 = vsub.f32 2.0, %v5694
  %v5759 = vsub.f32 2.0, %v5695
  %v5760 = vsub.f32 2.0, %v5696
  %v5761 = vsub.f32 2.0, %v5697
  %v5762 = vsub.f32 2.0, %v5698
  %v5763 = vsub.f32 2.0, %v5699
  %v5764 = vsub.f32 2.0, %v5700
  %v5765 = vsub.f32 2.0, %v5701
  %v5766 = vsub.f32 2.0, %v5702
  %v5767 = vmul.f32 %v5575, %v5703
  %v5768 = vmul.f32 %v5576, %v5704
  %v5769 = vmul.f32 %v5577, %v5705
  %v5770 = vmul.f32 %v5578, %v5706
  %v5771 = vmul.f32 %v5579, %v5707
  %v5772 = vmul.f32 %v5580, %v5708
  %v5773 = vmul.f32 %v5581, %v5709
  %v5774 = vmul.f32 %v5582, %v5710
  %v5775 = vmul.f32 %v5583, %v5711
  %v5776 = vmul.f32 %v5584, %v5712
  %v5777 = vmul.f32 %v5585, %v5713
  %v5778 = vmul.f32 %v5586, %v5714
  %v5779 = vmul.f32 %v5587, %v5715
  %v5780 = vmul.f32 %v5588, %v5716
  %v5781 = vmul.f32 %v5589, %v5717
  %v5782 = vmul.f32 %v5590, %v5718
  %v5783 = vmul.f32 %v5591, %v5719
  %v5784 = vmul.f32 %v5592, %v5720
  %v5785 = vmul.f32 %v5593, %v5721
  %v5786 = vmul.f32 %v5594, %v5722
  %v5787 = vmul.f32 %v5595, %v5723
  %v5788 = vmul.f32 %v5596, %v5724
  %v5789 = vmul.f32 %v5597, %v5725
  %v5790 = vmul.f32 %v5598, %v5726
  %v5791 = vmul.f32 %v5599, %v5727
  %v5792 = vmul.f32 %v5600, %v5728
  %v5793 = vmul.f32 %v5601, %v5729
  %v5794 = vmul.f32 %v5602, %v5730
  %v5795 = vmul.f32 %v5603, %v5731
  %v5796 = vmul.f32 %v5604, %v5732
  %v5797 = vmul.f32 %v5605, %v5733
  %v5798 = vmul.f32 %v5606, %v5734
  %v5799 = vmul.f32 %v5607, %v5735
  %v5800 = vmul.f32 %v5608, %v5736
  %v5801 = vmul.f32 %v5609, %v5737
  %v5802 = vmul.f32 %v5610, %v5738
  %v5803 = vmul.f32 %v5611, %v5739
  %v5804 = vmul.f32 %v5612, %v5740
  %v5805 = vmul.f32 %v5613, %v5741
  %v5806 = vmul.f32 %v5614, %v5742
  %v5807 = vmul.f32 %v5615, %v5743
  %v5808 = vmul.f32 %v5616, %v5744
  %v5809 = vmul.f32 %v5617, %v5745
  %v5810 = vmul.f32 %v5618, %v5746
  %v5811 = vmul.f32 %v5619, %v5747
  %v5812 = vmul.f32 %v5620, %v5748
  %v5813 = vmul.f32 %v5621, %v5749
  %v5814 = vmul.f32 %v5622, %v5750
  %v5815 = vmul.f32 %v5623, %v5751
  %v5816 = vmul.f32 %v5624, %v5752
  %v5817 = vmul.f32 %v5625, %v5753
  %v5818 = vmul.f32 %v5626, %v5754
  %v5819 = vmul.f32 %v5627, %v5755
  %v5820 = vmul.f32 %v5628, %v5756
  %v5821 = vmul.f32 %v5629, %v5757
  %v5822 = vmul.f32 %v5630, %v5758
  %v5823 = vmul.f32 %v5631, %v5759
  %v5824 = vmul.f32 %v5632, %v5760
  %v5825 = vmul.f32 %v5633, %v5761
  %v5826 = vmul.f32 %v5634, %v5762
  %v5827 = vmul.f32 %v5635, %v5763
  %v5828 = vmul.f32 %v5636, %v5764
  %v5829 = vmul.f32 %v5637, %v5765
  %v5830 = vmul.f32 %v5638, %v5766
  %v5831 = vmul.f32 %v5256, %v5767
  %v5832 = vmul.f32 %v5258, %v5768
  %v5833 = vmul.f32 %v5260, %v5769
  %v5834 = vmul.f32 %v5262, %v5770
  %v5835 = vmul.f32 %v5264, %v5771
  %v5836 = vmul.f32 %v5266, %v5772
  %v5837 = vmul.f32 %v5268, %v5773
  %v5838 = vmul.f32 %v5270, %v5774
  %v5839 = vmul.f32 %v5272, %v5775
  %v5840 = vmul.f32 %v5274, %v5776
  %v5841 = vmul.f32 %v5276, %v5777
  %v5842 = vmul.f32 %v5278, %v5778
  %v5843 = vmul.f32 %v5280, %v5779
  %v5844 = vmul.f32 %v5282, %v5780
  %v5845 = vmul.f32 %v5284, %v5781
  %v5846 = vmul.f32 %v5286, %v5782
  %v5847 = vmul.f32 %v5288, %v5783
  %v5848 = vmul.f32 %v5290, %v5784
  %v5849 = vmul.f32 %v5292, %v5785
  %v5850 = vmul.f32 %v5294, %v5786
  %v5851 = vmul.f32 %v5296, %v5787
  %v5852 = vmul.f32 %v5298, %v5788
  %v5853 = vmul.f32 %v5300, %v5789
  %v5854 = vmul.f32 %v5302, %v5790
  %v5855 = vmul.f32 %v5304, %v5791
  %v5856 = vmul.f32 %v5306, %v5792
  %v5857 = vmul.f32 %v5308, %v5793
  %v5858 = vmul.f32 %v5310, %v5794
  %v5859 = vmul.f32 %v5312, %v5795
  %v5860 = vmul.f32 %v5314, %v5796
  %v5861 = vmul.f32 %v5316, %v5797
  %v5862 = vmul.f32 %v5318, %v5798
  %v5863 = vmul.f32 %v5320, %v5799
  %v5864 = vmul.f32 %v5322, %v5800
  %v5865 = vmul.f32 %v5324, %v5801
  %v5866 = vmul.f32 %v5326, %v5802
  %v5867 = vmul.f32 %v5328, %v5803
  %v5868 = vmul.f32 %v5330, %v5804
  %v5869 = vmul.f32 %v5332, %v5805
  %v5870 = vmul.f32 %v5334, %v5806
  %v5871 = vmul.f32 %v5336, %v5807
  %v5872 = vmul.f32 %v5338, %v5808
  %v5873 = vmul.f32 %v5340, %v5809
  %v5874 = vmul.f32 %v5342, %v5810
  %v5875 = vmul.f32 %v5344, %v5811
  %v5876 = vmul.f32 %v5346, %v5812
  %v5877 = vmul.f32 %v5348, %v5813
  %v5878 = vmul.f32 %v5350, %v5814
  %v5879 = vmul.f32 %v5352, %v5815
  %v5880 = vmul.f32 %v5354, %v5816
  %v5881 = vmul.f32 %v5356, %v5817
  %v5882 = vmul.f32 %v5358, %v5818
  %v5883 = vmul.f32 %v5360, %v5819
  %v5884 = vmul.f32 %v5362, %v5820
  %v5885 = vmul.f32 %v5364, %v5821
  %v5886 = vmul.f32 %v5366, %v5822
  %v5887 = vmul.f32 %v5368, %v5823
  %v5888 = vmul.f32 %v5370, %v5824
  %v5889 = vmul.f32 %v5372, %v5825
  %v5890 = vmul.f32 %v5374, %v5826
  %v5891 = vmul.f32 %v5376, %v5827
  %v5892 = vmul.f32 %v5378, %v5828
  %v5893 = vmul.f32 %v5380, %v5829
  %v5894 = vmul.f32 %v5382, %v5830
  %v5895 = vsel %vm1666, %v3649, 0
  %v5898 = vsel %vm1666, %v5831, 0
  %v5901 = vsel %vm1666, %v5832, 0
  %v5904 = vsel %vm1666, %v5833, 0
  %v5907 = vsel %vm1666, %v5834, 0
  %v5910 = vsel %vm1666, %v5835, 0
  %v5913 = vsel %vm1666, %v5836, 0
  %v5916 = vsel %vm1666, %v5837, 0
  %v5919 = vsel %vm1666, %v5838, 0
  %5921 = vmatprep.subr.mxu0 0.0
  %5922 = vmatpush1.xpose.msra.mxu0 0.0
  %5923 = vmatprep.subr.mxu0 0.0
  %5924 = vmatpush1.xpose.msra.mxu0 0.0
  %5925 = vmatprep.subr.mxu0 0.0
  %5926 = vmatpush1.xpose.msra.mxu0 0.0
  %5927 = vmatprep.subr.mxu0 0.0
  %5928 = vmatpush1.xpose.msra.mxu0 0.0
  %5929 = vmatprep.subr.mxu0 0.0
  %5930 = vmatpush1.xpose.msra.mxu0 0.0
  %5931 = vmatprep.subr.mxu0 0.0
  %5932 = vmatpush1.xpose.msra.mxu0 0.0
  %5933 = vmatprep.subr.mxu0 0.0
  %5934 = vmatpush1.xpose.msra.mxu0 0.0
  %5935 = vmatprep.subr.mxu0 0.0
  %5936 = vmatpush1.xpose.msra.mxu0 0.0
  %5937 = vmatprep.subr.mxu0 0.0
  %5938 = vmatpush1.xpose.msra.mxu0 %v5919
  %5939 = vmatprep.subr.mxu0 0.0
  %5940 = vmatpush1.xpose.msra.mxu0 %v5916
  %5941 = vmatprep.subr.mxu0 0.0
  %5942 = vmatpush1.xpose.msra.mxu0 %v5913
  %5943 = vmatprep.subr.mxu0 0.0
  %5944 = vmatpush1.xpose.msra.mxu0 %v5910
  %5945 = vmatprep.subr.mxu0 0.0
  %5946 = vmatpush1.xpose.msra.mxu0 %v5907
  %5947 = vmatprep.subr.mxu0 0.0
  %5948 = vmatpush1.xpose.msra.mxu0 %v5904
  %5949 = vmatprep.subr.mxu0 0.0
  %5950 = vmatpush1.xpose.msra.mxu0 %v5901
  %5951 = vmatprep.subr.mxu0 0.0
  %5952 = vmatpush1.xpose.msra.mxu0 %v5898
  %5953 = vmatprep.subr.mxu0 0.0
  %5954 = vmatpush2.xpose.msra.mxu0 0.0
  %5955 = vmatprep.subr.mxu0 0.0
  %5956 = vmatpush2.xpose.msra.mxu0 0.0
  %5957 = vmatprep.subr.mxu0 0.0
  %5958 = vmatpush2.xpose.msra.mxu0 0.0
  %5959 = vmatprep.subr.mxu0 0.0
  %5960 = vmatpush2.xpose.msra.mxu0 0.0
  %5961 = vmatprep.subr.mxu0 0.0
  %5962 = vmatpush2.xpose.msra.mxu0 0.0
  %5963 = vmatprep.subr.mxu0 0.0
  %5964 = vmatpush2.xpose.msra.mxu0 0.0
  %5965 = vmatprep.subr.mxu0 0.0
  %5966 = vmatpush2.xpose.msra.mxu0 0.0
  %5967 = vmatprep.subr.mxu0 0.0
  %5968 = vmatpush2.xpose.msra.mxu0 0.0
  %5969 = vmatprep.subr.mxu0 0.0
  %5970 = vmatpush2.xpose.msra.mxu0 0.0
  %5971 = vmatprep.subr.mxu0 0.0
  %5972 = vmatpush2.xpose.msra.mxu0 0.0
  %5973 = vmatprep.subr.mxu0 0.0
  %5974 = vmatpush2.xpose.msra.mxu0 0.0
  %5975 = vmatprep.subr.mxu0 0.0
  %5976 = vmatpush2.xpose.msra.mxu0 0.0
  %5977 = vmatprep.subr.mxu0 0.0
  %5978 = vmatpush2.xpose.msra.mxu0 0.0
  %5979 = vmatprep.subr.mxu0 0.0
  %5980 = vmatpush2.xpose.msra.mxu0 0.0
  %5981 = vmatprep.subr.mxu0 0.0
  %5982 = vmatpush2.xpose.msra.mxu0 0.0
  %5983 = vmatprep.subr.mxu0 0.0
  %5984 = vmatpush2.xpose.msra.mxu0 0.0
  %5985 = vmatprep.mubr.f32.mxu0 0.0
  %5986 = vmatmul.mubr.f32.gmra.mxu0 %v5895
  %v5987 = vpop.f32.mrf.mxu0
  %v5988 = vadd.f32 0.0, %v5987
  %v5989 = vpop.f32.mrf.mxu0
  %5990 = vdwg.mxu0
  %v5991 = vsel %vm1666, %v3691, 0
  %v5994 = vsel %vm1666, %v5839, 0
  %v5997 = vsel %vm1666, %v5840, 0
  %v6000 = vsel %vm1666, %v5841, 0
  %v6003 = vsel %vm1666, %v5842, 0
  %v6006 = vsel %vm1666, %v5843, 0
  %v6009 = vsel %vm1666, %v5844, 0
  %v6012 = vsel %vm1666, %v5845, 0
  %v6015 = vsel %vm1666, %v5846, 0
  %6017 = vmatprep.subr.mxu0 0.0
  %6018 = vmatpush1.xpose.msra.mxu0 0.0
  %6019 = vmatprep.subr.mxu0 0.0
  %6020 = vmatpush1.xpose.msra.mxu0 0.0
  %6021 = vmatprep.subr.mxu0 0.0
  %6022 = vmatpush1.xpose.msra.mxu0 0.0
  %6023 = vmatprep.subr.mxu0 0.0
  %6024 = vmatpush1.xpose.msra.mxu0 0.0
  %6025 = vmatprep.subr.mxu0 0.0
  %6026 = vmatpush1.xpose.msra.mxu0 0.0
  %6027 = vmatprep.subr.mxu0 0.0
  %6028 = vmatpush1.xpose.msra.mxu0 0.0
  %6029 = vmatprep.subr.mxu0 0.0
  %6030 = vmatpush1.xpose.msra.mxu0 0.0
  %6031 = vmatprep.subr.mxu0 0.0
  %6032 = vmatpush1.xpose.msra.mxu0 0.0
  %6033 = vmatprep.subr.mxu0 0.0
  %6034 = vmatpush1.xpose.msra.mxu0 %v6015
  %6035 = vmatprep.subr.mxu0 0.0
  %6036 = vmatpush1.xpose.msra.mxu0 %v6012
  %6037 = vmatprep.subr.mxu0 0.0
  %6038 = vmatpush1.xpose.msra.mxu0 %v6009
  %6039 = vmatprep.subr.mxu0 0.0
  %6040 = vmatpush1.xpose.msra.mxu0 %v6006
  %6041 = vmatprep.subr.mxu0 0.0
  %6042 = vmatpush1.xpose.msra.mxu0 %v6003
  %6043 = vmatprep.subr.mxu0 0.0
  %6044 = vmatpush1.xpose.msra.mxu0 %v6000
  %6045 = vmatprep.subr.mxu0 0.0
  %6046 = vmatpush1.xpose.msra.mxu0 %v5997
  %6047 = vmatprep.subr.mxu0 0.0
  %6048 = vmatpush1.xpose.msra.mxu0 %v5994
  %6049 = vmatprep.subr.mxu0 0.0
  %6050 = vmatpush2.xpose.msra.mxu0 0.0
  %6051 = vmatprep.subr.mxu0 0.0
  %6052 = vmatpush2.xpose.msra.mxu0 0.0
  %6053 = vmatprep.subr.mxu0 0.0
  %6054 = vmatpush2.xpose.msra.mxu0 0.0
  %6055 = vmatprep.subr.mxu0 0.0
  %6056 = vmatpush2.xpose.msra.mxu0 0.0
  %6057 = vmatprep.subr.mxu0 0.0
  %6058 = vmatpush2.xpose.msra.mxu0 0.0
  %6059 = vmatprep.subr.mxu0 0.0
  %6060 = vmatpush2.xpose.msra.mxu0 0.0
  %6061 = vmatprep.subr.mxu0 0.0
  %6062 = vmatpush2.xpose.msra.mxu0 0.0
  %6063 = vmatprep.subr.mxu0 0.0
  %6064 = vmatpush2.xpose.msra.mxu0 0.0
  %6065 = vmatprep.subr.mxu0 0.0
  %6066 = vmatpush2.xpose.msra.mxu0 0.0
  %6067 = vmatprep.subr.mxu0 0.0
  %6068 = vmatpush2.xpose.msra.mxu0 0.0
  %6069 = vmatprep.subr.mxu0 0.0
  %6070 = vmatpush2.xpose.msra.mxu0 0.0
  %6071 = vmatprep.subr.mxu0 0.0
  %6072 = vmatpush2.xpose.msra.mxu0 0.0
  %6073 = vmatprep.subr.mxu0 0.0
  %6074 = vmatpush2.xpose.msra.mxu0 0.0
  %6075 = vmatprep.subr.mxu0 0.0
  %6076 = vmatpush2.xpose.msra.mxu0 0.0
  %6077 = vmatprep.subr.mxu0 0.0
  %6078 = vmatpush2.xpose.msra.mxu0 0.0
  %6079 = vmatprep.subr.mxu0 0.0
  %6080 = vmatpush2.xpose.msra.mxu0 0.0
  %6081 = vmatprep.mubr.f32.mxu0 0.0
  %6082 = vmatmul.mubr.f32.gmra.mxu0 %v5991
  %v6083 = vpop.f32.mrf.mxu0
  %v6084 = vadd.f32 0.0, %v6083
  %v6085 = vpop.f32.mrf.mxu0
  %6086 = vdwg.mxu0
  %v6087 = vsel %vm1666, %v3654, 0
  %v6090 = vsel %vm1666, %v5847, 0
  %v6093 = vsel %vm1666, %v5848, 0
  %v6096 = vsel %vm1666, %v5849, 0
  %v6099 = vsel %vm1666, %v5850, 0
  %v6102 = vsel %vm1666, %v5851, 0
  %v6105 = vsel %vm1666, %v5852, 0
  %v6108 = vsel %vm1666, %v5853, 0
  %v6111 = vsel %vm1666, %v5854, 0
  %6113 = vmatprep.subr.mxu0 0.0
  %6114 = vmatpush1.xpose.msra.mxu0 0.0
  %6115 = vmatprep.subr.mxu0 0.0
  %6116 = vmatpush1.xpose.msra.mxu0 0.0
  %6117 = vmatprep.subr.mxu0 0.0
  %6118 = vmatpush1.xpose.msra.mxu0 0.0
  %6119 = vmatprep.subr.mxu0 0.0
  %6120 = vmatpush1.xpose.msra.mxu0 0.0
  %6121 = vmatprep.subr.mxu0 0.0
  %6122 = vmatpush1.xpose.msra.mxu0 0.0
  %6123 = vmatprep.subr.mxu0 0.0
  %6124 = vmatpush1.xpose.msra.mxu0 0.0
  %6125 = vmatprep.subr.mxu0 0.0
  %6126 = vmatpush1.xpose.msra.mxu0 0.0
  %6127 = vmatprep.subr.mxu0 0.0
  %6128 = vmatpush1.xpose.msra.mxu0 0.0
  %6129 = vmatprep.subr.mxu0 0.0
  %6130 = vmatpush1.xpose.msra.mxu0 %v6111
  %6131 = vmatprep.subr.mxu0 0.0
  %6132 = vmatpush1.xpose.msra.mxu0 %v6108
  %6133 = vmatprep.subr.mxu0 0.0
  %6134 = vmatpush1.xpose.msra.mxu0 %v6105
  %6135 = vmatprep.subr.mxu0 0.0
  %6136 = vmatpush1.xpose.msra.mxu0 %v6102
  %6137 = vmatprep.subr.mxu0 0.0
  %6138 = vmatpush1.xpose.msra.mxu0 %v6099
  %6139 = vmatprep.subr.mxu0 0.0
  %6140 = vmatpush1.xpose.msra.mxu0 %v6096
  %6141 = vmatprep.subr.mxu0 0.0
  %6142 = vmatpush1.xpose.msra.mxu0 %v6093
  %6143 = vmatprep.subr.mxu0 0.0
  %6144 = vmatpush1.xpose.msra.mxu0 %v6090
  %6145 = vmatprep.subr.mxu0 0.0
  %6146 = vmatpush2.xpose.msra.mxu0 0.0
  %6147 = vmatprep.subr.mxu0 0.0
  %6148 = vmatpush2.xpose.msra.mxu0 0.0
  %6149 = vmatprep.subr.mxu0 0.0
  %6150 = vmatpush2.xpose.msra.mxu0 0.0
  %6151 = vmatprep.subr.mxu0 0.0
  %6152 = vmatpush2.xpose.msra.mxu0 0.0
  %6153 = vmatprep.subr.mxu0 0.0
  %6154 = vmatpush2.xpose.msra.mxu0 0.0
  %6155 = vmatprep.subr.mxu0 0.0
  %6156 = vmatpush2.xpose.msra.mxu0 0.0
  %6157 = vmatprep.subr.mxu0 0.0
  %6158 = vmatpush2.xpose.msra.mxu0 0.0
  %6159 = vmatprep.subr.mxu0 0.0
  %6160 = vmatpush2.xpose.msra.mxu0 0.0
  %6161 = vmatprep.subr.mxu0 0.0
  %6162 = vmatpush2.xpose.msra.mxu0 0.0
  %6163 = vmatprep.subr.mxu0 0.0
  %6164 = vmatpush2.xpose.msra.mxu0 0.0
  %6165 = vmatprep.subr.mxu0 0.0
  %6166 = vmatpush2.xpose.msra.mxu0 0.0
  %6167 = vmatprep.subr.mxu0 0.0
  %6168 = vmatpush2.xpose.msra.mxu0 0.0
  %6169 = vmatprep.subr.mxu0 0.0
  %6170 = vmatpush2.xpose.msra.mxu0 0.0
  %6171 = vmatprep.subr.mxu0 0.0
  %6172 = vmatpush2.xpose.msra.mxu0 0.0
  %6173 = vmatprep.subr.mxu0 0.0
  %6174 = vmatpush2.xpose.msra.mxu0 0.0
  %6175 = vmatprep.subr.mxu0 0.0
  %6176 = vmatpush2.xpose.msra.mxu0 0.0
  %6177 = vmatprep.mubr.f32.mxu0 0.0
  %6178 = vmatmul.mubr.f32.gmra.mxu0 %v6087
  %v6179 = vpop.f32.mrf.mxu0
  %v6180 = vadd.f32 0.0, %v6179
  %v6181 = vpop.f32.mrf.mxu0
  %6182 = vdwg.mxu0
  %v6183 = vsel %vm1666, %v3692, 0
  %v6186 = vsel %vm1666, %v5855, 0
  %v6189 = vsel %vm1666, %v5856, 0
  %v6192 = vsel %vm1666, %v5857, 0
  %v6195 = vsel %vm1666, %v5858, 0
  %v6198 = vsel %vm1666, %v5859, 0
  %v6201 = vsel %vm1666, %v5860, 0
  %v6204 = vsel %vm1666, %v5861, 0
  %v6207 = vsel %vm1666, %v5862, 0
  %6209 = vmatprep.subr.mxu0 0.0
  %6210 = vmatpush1.xpose.msra.mxu0 0.0
  %6211 = vmatprep.subr.mxu0 0.0
  %6212 = vmatpush1.xpose.msra.mxu0 0.0
  %6213 = vmatprep.subr.mxu0 0.0
  %6214 = vmatpush1.xpose.msra.mxu0 0.0
  %6215 = vmatprep.subr.mxu0 0.0
  %6216 = vmatpush1.xpose.msra.mxu0 0.0
  %6217 = vmatprep.subr.mxu0 0.0
  %6218 = vmatpush1.xpose.msra.mxu0 0.0
  %6219 = vmatprep.subr.mxu0 0.0
  %6220 = vmatpush1.xpose.msra.mxu0 0.0
  %6221 = vmatprep.subr.mxu0 0.0
  %6222 = vmatpush1.xpose.msra.mxu0 0.0
  %6223 = vmatprep.subr.mxu0 0.0
  %6224 = vmatpush1.xpose.msra.mxu0 0.0
  %6225 = vmatprep.subr.mxu0 0.0
  %6226 = vmatpush1.xpose.msra.mxu0 %v6207
  %6227 = vmatprep.subr.mxu0 0.0
  %6228 = vmatpush1.xpose.msra.mxu0 %v6204
  %6229 = vmatprep.subr.mxu0 0.0
  %6230 = vmatpush1.xpose.msra.mxu0 %v6201
  %6231 = vmatprep.subr.mxu0 0.0
  %6232 = vmatpush1.xpose.msra.mxu0 %v6198
  %6233 = vmatprep.subr.mxu0 0.0
  %6234 = vmatpush1.xpose.msra.mxu0 %v6195
  %6235 = vmatprep.subr.mxu0 0.0
  %6236 = vmatpush1.xpose.msra.mxu0 %v6192
  %6237 = vmatprep.subr.mxu0 0.0
  %6238 = vmatpush1.xpose.msra.mxu0 %v6189
  %6239 = vmatprep.subr.mxu0 0.0
  %6240 = vmatpush1.xpose.msra.mxu0 %v6186
  %6241 = vmatprep.subr.mxu0 0.0
  %6242 = vmatpush2.xpose.msra.mxu0 0.0
  %6243 = vmatprep.subr.mxu0 0.0
  %6244 = vmatpush2.xpose.msra.mxu0 0.0
  %6245 = vmatprep.subr.mxu0 0.0
  %6246 = vmatpush2.xpose.msra.mxu0 0.0
  %6247 = vmatprep.subr.mxu0 0.0
  %6248 = vmatpush2.xpose.msra.mxu0 0.0
  %6249 = vmatprep.subr.mxu0 0.0
  %6250 = vmatpush2.xpose.msra.mxu0 0.0
  %6251 = vmatprep.subr.mxu0 0.0
  %6252 = vmatpush2.xpose.msra.mxu0 0.0
  %6253 = vmatprep.subr.mxu0 0.0
  %6254 = vmatpush2.xpose.msra.mxu0 0.0
  %6255 = vmatprep.subr.mxu0 0.0
  %6256 = vmatpush2.xpose.msra.mxu0 0.0
  %6257 = vmatprep.subr.mxu0 0.0
  %6258 = vmatpush2.xpose.msra.mxu0 0.0
  %6259 = vmatprep.subr.mxu0 0.0
  %6260 = vmatpush2.xpose.msra.mxu0 0.0
  %6261 = vmatprep.subr.mxu0 0.0
  %6262 = vmatpush2.xpose.msra.mxu0 0.0
  %6263 = vmatprep.subr.mxu0 0.0
  %6264 = vmatpush2.xpose.msra.mxu0 0.0
  %6265 = vmatprep.subr.mxu0 0.0
  %6266 = vmatpush2.xpose.msra.mxu0 0.0
  %6267 = vmatprep.subr.mxu0 0.0
  %6268 = vmatpush2.xpose.msra.mxu0 0.0
  %6269 = vmatprep.subr.mxu0 0.0
  %6270 = vmatpush2.xpose.msra.mxu0 0.0
  %6271 = vmatprep.subr.mxu0 0.0
  %6272 = vmatpush2.xpose.msra.mxu0 0.0
  %6273 = vmatprep.mubr.f32.mxu0 0.0
  %6274 = vmatmul.mubr.f32.gmra.mxu0 %v6183
  %v6275 = vpop.f32.mrf.mxu0
  %v6276 = vadd.f32 0.0, %v6275
  %v6277 = vpop.f32.mrf.mxu0
  %6278 = vdwg.mxu0
  %v6279 = vsel %vm1666, %v3659, 0
  %v6282 = vsel %vm1666, %v5863, 0
  %v6285 = vsel %vm1666, %v5864, 0
  %v6288 = vsel %vm1666, %v5865, 0
  %v6291 = vsel %vm1666, %v5866, 0
  %v6294 = vsel %vm1666, %v5867, 0
  %v6297 = vsel %vm1666, %v5868, 0
  %v6300 = vsel %vm1666, %v5869, 0
  %v6303 = vsel %vm1666, %v5870, 0
  %6305 = vmatprep.subr.mxu0 0.0
  %6306 = vmatpush1.xpose.msra.mxu0 0.0
  %6307 = vmatprep.subr.mxu0 0.0
  %6308 = vmatpush1.xpose.msra.mxu0 0.0
  %6309 = vmatprep.subr.mxu0 0.0
  %6310 = vmatpush1.xpose.msra.mxu0 0.0
  %6311 = vmatprep.subr.mxu0 0.0
  %6312 = vmatpush1.xpose.msra.mxu0 0.0
  %6313 = vmatprep.subr.mxu0 0.0
  %6314 = vmatpush1.xpose.msra.mxu0 0.0
  %6315 = vmatprep.subr.mxu0 0.0
  %6316 = vmatpush1.xpose.msra.mxu0 0.0
  %6317 = vmatprep.subr.mxu0 0.0
  %6318 = vmatpush1.xpose.msra.mxu0 0.0
  %6319 = vmatprep.subr.mxu0 0.0
  %6320 = vmatpush1.xpose.msra.mxu0 0.0
  %6321 = vmatprep.subr.mxu0 0.0
  %6322 = vmatpush1.xpose.msra.mxu0 %v6303
  %6323 = vmatprep.subr.mxu0 0.0
  %6324 = vmatpush1.xpose.msra.mxu0 %v6300
  %6325 = vmatprep.subr.mxu0 0.0
  %6326 = vmatpush1.xpose.msra.mxu0 %v6297
  %6327 = vmatprep.subr.mxu0 0.0
  %6328 = vmatpush1.xpose.msra.mxu0 %v6294
  %6329 = vmatprep.subr.mxu0 0.0
  %6330 = vmatpush1.xpose.msra.mxu0 %v6291
  %6331 = vmatprep.subr.mxu0 0.0
  %6332 = vmatpush1.xpose.msra.mxu0 %v6288
  %6333 = vmatprep.subr.mxu0 0.0
  %6334 = vmatpush1.xpose.msra.mxu0 %v6285
  %6335 = vmatprep.subr.mxu0 0.0
  %6336 = vmatpush1.xpose.msra.mxu0 %v6282
  %6337 = vmatprep.subr.mxu0 0.0
  %6338 = vmatpush2.xpose.msra.mxu0 0.0
  %6339 = vmatprep.subr.mxu0 0.0
  %6340 = vmatpush2.xpose.msra.mxu0 0.0
  %6341 = vmatprep.subr.mxu0 0.0
  %6342 = vmatpush2.xpose.msra.mxu0 0.0
  %6343 = vmatprep.subr.mxu0 0.0
  %6344 = vmatpush2.xpose.msra.mxu0 0.0
  %6345 = vmatprep.subr.mxu0 0.0
  %6346 = vmatpush2.xpose.msra.mxu0 0.0
  %6347 = vmatprep.subr.mxu0 0.0
  %6348 = vmatpush2.xpose.msra.mxu0 0.0
  %6349 = vmatprep.subr.mxu0 0.0
  %6350 = vmatpush2.xpose.msra.mxu0 0.0
  %6351 = vmatprep.subr.mxu0 0.0
  %6352 = vmatpush2.xpose.msra.mxu0 0.0
  %6353 = vmatprep.subr.mxu0 0.0
  %6354 = vmatpush2.xpose.msra.mxu0 0.0
  %6355 = vmatprep.subr.mxu0 0.0
  %6356 = vmatpush2.xpose.msra.mxu0 0.0
  %6357 = vmatprep.subr.mxu0 0.0
  %6358 = vmatpush2.xpose.msra.mxu0 0.0
  %6359 = vmatprep.subr.mxu0 0.0
  %6360 = vmatpush2.xpose.msra.mxu0 0.0
  %6361 = vmatprep.subr.mxu0 0.0
  %6362 = vmatpush2.xpose.msra.mxu0 0.0
  %6363 = vmatprep.subr.mxu0 0.0
  %6364 = vmatpush2.xpose.msra.mxu0 0.0
  %6365 = vmatprep.subr.mxu0 0.0
  %6366 = vmatpush2.xpose.msra.mxu0 0.0
  %6367 = vmatprep.subr.mxu0 0.0
  %6368 = vmatpush2.xpose.msra.mxu0 0.0
  %6369 = vmatprep.mubr.f32.mxu0 0.0
  %6370 = vmatmul.mubr.f32.gmra.mxu0 %v6279
  %v6371 = vpop.f32.mrf.mxu0
  %v6372 = vadd.f32 0.0, %v6371
  %v6373 = vpop.f32.mrf.mxu0
  %6374 = vdwg.mxu0
  %v6375 = vsel %vm1666, %v3693, 0
  %v6378 = vsel %vm1666, %v5871, 0
  %v6381 = vsel %vm1666, %v5872, 0
  %v6384 = vsel %vm1666, %v5873, 0
  %v6387 = vsel %vm1666, %v5874, 0
  %v6390 = vsel %vm1666, %v5875, 0
  %v6393 = vsel %vm1666, %v5876, 0
  %v6396 = vsel %vm1666, %v5877, 0
  %v6399 = vsel %vm1666, %v5878, 0
  %6401 = vmatprep.subr.mxu0 0.0
  %6402 = vmatpush1.xpose.msra.mxu0 0.0
  %6403 = vmatprep.subr.mxu0 0.0
  %6404 = vmatpush1.xpose.msra.mxu0 0.0
  %6405 = vmatprep.subr.mxu0 0.0
  %6406 = vmatpush1.xpose.msra.mxu0 0.0
  %6407 = vmatprep.subr.mxu0 0.0
  %6408 = vmatpush1.xpose.msra.mxu0 0.0
  %6409 = vmatprep.subr.mxu0 0.0
  %6410 = vmatpush1.xpose.msra.mxu0 0.0
  %6411 = vmatprep.subr.mxu0 0.0
  %6412 = vmatpush1.xpose.msra.mxu0 0.0
  %6413 = vmatprep.subr.mxu0 0.0
  %6414 = vmatpush1.xpose.msra.mxu0 0.0
  %6415 = vmatprep.subr.mxu0 0.0
  %6416 = vmatpush1.xpose.msra.mxu0 0.0
  %6417 = vmatprep.subr.mxu0 0.0
  %6418 = vmatpush1.xpose.msra.mxu0 %v6399
  %6419 = vmatprep.subr.mxu0 0.0
  %6420 = vmatpush1.xpose.msra.mxu0 %v6396
  %6421 = vmatprep.subr.mxu0 0.0
  %6422 = vmatpush1.xpose.msra.mxu0 %v6393
  %6423 = vmatprep.subr.mxu0 0.0
  %6424 = vmatpush1.xpose.msra.mxu0 %v6390
  %6425 = vmatprep.subr.mxu0 0.0
  %6426 = vmatpush1.xpose.msra.mxu0 %v6387
  %6427 = vmatprep.subr.mxu0 0.0
  %6428 = vmatpush1.xpose.msra.mxu0 %v6384
  %6429 = vmatprep.subr.mxu0 0.0
  %6430 = vmatpush1.xpose.msra.mxu0 %v6381
  %6431 = vmatprep.subr.mxu0 0.0
  %6432 = vmatpush1.xpose.msra.mxu0 %v6378
  %6433 = vmatprep.subr.mxu0 0.0
  %6434 = vmatpush2.xpose.msra.mxu0 0.0
  %6435 = vmatprep.subr.mxu0 0.0
  %6436 = vmatpush2.xpose.msra.mxu0 0.0
  %6437 = vmatprep.subr.mxu0 0.0
  %6438 = vmatpush2.xpose.msra.mxu0 0.0
  %6439 = vmatprep.subr.mxu0 0.0
  %6440 = vmatpush2.xpose.msra.mxu0 0.0
  %6441 = vmatprep.subr.mxu0 0.0
  %6442 = vmatpush2.xpose.msra.mxu0 0.0
  %6443 = vmatprep.subr.mxu0 0.0
  %6444 = vmatpush2.xpose.msra.mxu0 0.0
  %6445 = vmatprep.subr.mxu0 0.0
  %6446 = vmatpush2.xpose.msra.mxu0 0.0
  %6447 = vmatprep.subr.mxu0 0.0
  %6448 = vmatpush2.xpose.msra.mxu0 0.0
  %6449 = vmatprep.subr.mxu0 0.0
  %6450 = vmatpush2.xpose.msra.mxu0 0.0
  %6451 = vmatprep.subr.mxu0 0.0
  %6452 = vmatpush2.xpose.msra.mxu0 0.0
  %6453 = vmatprep.subr.mxu0 0.0
  %6454 = vmatpush2.xpose.msra.mxu0 0.0
  %6455 = vmatprep.subr.mxu0 0.0
  %6456 = vmatpush2.xpose.msra.mxu0 0.0
  %6457 = vmatprep.subr.mxu0 0.0
  %6458 = vmatpush2.xpose.msra.mxu0 0.0
  %6459 = vmatprep.subr.mxu0 0.0
  %6460 = vmatpush2.xpose.msra.mxu0 0.0
  %6461 = vmatprep.subr.mxu0 0.0
  %6462 = vmatpush2.xpose.msra.mxu0 0.0
  %6463 = vmatprep.subr.mxu0 0.0
  %6464 = vmatpush2.xpose.msra.mxu0 0.0
  %6465 = vmatprep.mubr.f32.mxu0 0.0
  %6466 = vmatmul.mubr.f32.gmra.mxu0 %v6375
  %v6467 = vpop.f32.mrf.mxu0
  %v6468 = vadd.f32 0.0, %v6467
  %v6469 = vpop.f32.mrf.mxu0
  %6470 = vdwg.mxu0
  %v6471 = vsel %vm1666, %v3664, 0
  %v6474 = vsel %vm1666, %v5879, 0
  %v6477 = vsel %vm1666, %v5880, 0
  %v6480 = vsel %vm1666, %v5881, 0
  %v6483 = vsel %vm1666, %v5882, 0
  %v6486 = vsel %vm1666, %v5883, 0
  %v6489 = vsel %vm1666, %v5884, 0
  %v6492 = vsel %vm1666, %v5885, 0
  %v6495 = vsel %vm1666, %v5886, 0
  %6497 = vmatprep.subr.mxu0 0.0
  %6498 = vmatpush1.xpose.msra.mxu0 0.0
  %6499 = vmatprep.subr.mxu0 0.0
  %6500 = vmatpush1.xpose.msra.mxu0 0.0
  %6501 = vmatprep.subr.mxu0 0.0
  %6502 = vmatpush1.xpose.msra.mxu0 0.0
  %6503 = vmatprep.subr.mxu0 0.0
  %6504 = vmatpush1.xpose.msra.mxu0 0.0
  %6505 = vmatprep.subr.mxu0 0.0
  %6506 = vmatpush1.xpose.msra.mxu0 0.0
  %6507 = vmatprep.subr.mxu0 0.0
  %6508 = vmatpush1.xpose.msra.mxu0 0.0
  %6509 = vmatprep.subr.mxu0 0.0
  %6510 = vmatpush1.xpose.msra.mxu0 0.0
  %6511 = vmatprep.subr.mxu0 0.0
  %6512 = vmatpush1.xpose.msra.mxu0 0.0
  %6513 = vmatprep.subr.mxu0 0.0
  %6514 = vmatpush1.xpose.msra.mxu0 %v6495
  %6515 = vmatprep.subr.mxu0 0.0
  %6516 = vmatpush1.xpose.msra.mxu0 %v6492
  %6517 = vmatprep.subr.mxu0 0.0
  %6518 = vmatpush1.xpose.msra.mxu0 %v6489
  %6519 = vmatprep.subr.mxu0 0.0
  %6520 = vmatpush1.xpose.msra.mxu0 %v6486
  %6521 = vmatprep.subr.mxu0 0.0
  %6522 = vmatpush1.xpose.msra.mxu0 %v6483
  %6523 = vmatprep.subr.mxu0 0.0
  %6524 = vmatpush1.xpose.msra.mxu0 %v6480
  %6525 = vmatprep.subr.mxu0 0.0
  %6526 = vmatpush1.xpose.msra.mxu0 %v6477
  %6527 = vmatprep.subr.mxu0 0.0
  %6528 = vmatpush1.xpose.msra.mxu0 %v6474
  %6529 = vmatprep.subr.mxu0 0.0
  %6530 = vmatpush2.xpose.msra.mxu0 0.0
  %6531 = vmatprep.subr.mxu0 0.0
  %6532 = vmatpush2.xpose.msra.mxu0 0.0
  %6533 = vmatprep.subr.mxu0 0.0
  %6534 = vmatpush2.xpose.msra.mxu0 0.0
  %6535 = vmatprep.subr.mxu0 0.0
  %6536 = vmatpush2.xpose.msra.mxu0 0.0
  %6537 = vmatprep.subr.mxu0 0.0
  %6538 = vmatpush2.xpose.msra.mxu0 0.0
  %6539 = vmatprep.subr.mxu0 0.0
  %6540 = vmatpush2.xpose.msra.mxu0 0.0
  %6541 = vmatprep.subr.mxu0 0.0
  %6542 = vmatpush2.xpose.msra.mxu0 0.0
  %6543 = vmatprep.subr.mxu0 0.0
  %6544 = vmatpush2.xpose.msra.mxu0 0.0
  %6545 = vmatprep.subr.mxu0 0.0
  %6546 = vmatpush2.xpose.msra.mxu0 0.0
  %6547 = vmatprep.subr.mxu0 0.0
  %6548 = vmatpush2.xpose.msra.mxu0 0.0
  %6549 = vmatprep.subr.mxu0 0.0
  %6550 = vmatpush2.xpose.msra.mxu0 0.0
  %6551 = vmatprep.subr.mxu0 0.0
  %6552 = vmatpush2.xpose.msra.mxu0 0.0
  %6553 = vmatprep.subr.mxu0 0.0
  %6554 = vmatpush2.xpose.msra.mxu0 0.0
  %6555 = vmatprep.subr.mxu0 0.0
  %6556 = vmatpush2.xpose.msra.mxu0 0.0
  %6557 = vmatprep.subr.mxu0 0.0
  %6558 = vmatpush2.xpose.msra.mxu0 0.0
  %6559 = vmatprep.subr.mxu0 0.0
  %6560 = vmatpush2.xpose.msra.mxu0 0.0
  %6561 = vmatprep.mubr.f32.mxu0 0.0
  %6562 = vmatmul.mubr.f32.gmra.mxu0 %v6471
  %v6563 = vpop.f32.mrf.mxu0
  %v6564 = vadd.f32 0.0, %v6563
  %v6565 = vpop.f32.mrf.mxu0
  %6566 = vdwg.mxu0
  %v6567 = vsel %vm1666, %v3694, 0
  %v6570 = vsel %vm1666, %v5887, 0
  %v6573 = vsel %vm1666, %v5888, 0
  %v6576 = vsel %vm1666, %v5889, 0
  %v6579 = vsel %vm1666, %v5890, 0
  %v6582 = vsel %vm1666, %v5891, 0
  %v6585 = vsel %vm1666, %v5892, 0
  %v6588 = vsel %vm1666, %v5893, 0
  %v6591 = vsel %vm1666, %v5894, 0
  %6593 = vmatprep.subr.mxu0 0.0
  %6594 = vmatpush1.xpose.msra.mxu0 0.0
  %6595 = vmatprep.subr.mxu0 0.0
  %6596 = vmatpush1.xpose.msra.mxu0 0.0
  %6597 = vmatprep.subr.mxu0 0.0
  %6598 = vmatpush1.xpose.msra.mxu0 0.0
  %6599 = vmatprep.subr.mxu0 0.0
  %6600 = vmatpush1.xpose.msra.mxu0 0.0
  %6601 = vmatprep.subr.mxu0 0.0
  %6602 = vmatpush1.xpose.msra.mxu0 0.0
  %6603 = vmatprep.subr.mxu0 0.0
  %6604 = vmatpush1.xpose.msra.mxu0 0.0
  %6605 = vmatprep.subr.mxu0 0.0
  %6606 = vmatpush1.xpose.msra.mxu0 0.0
  %6607 = vmatprep.subr.mxu0 0.0
  %6608 = vmatpush1.xpose.msra.mxu0 0.0
  %6609 = vmatprep.subr.mxu0 0.0
  %6610 = vmatpush1.xpose.msra.mxu0 %v6591
  %6611 = vmatprep.subr.mxu0 0.0
  %6612 = vmatpush1.xpose.msra.mxu0 %v6588
  %6613 = vmatprep.subr.mxu0 0.0
  %6614 = vmatpush1.xpose.msra.mxu0 %v6585
  %6615 = vmatprep.subr.mxu0 0.0
  %6616 = vmatpush1.xpose.msra.mxu0 %v6582
  %6617 = vmatprep.subr.mxu0 0.0
  %6618 = vmatpush1.xpose.msra.mxu0 %v6579
  %6619 = vmatprep.subr.mxu0 0.0
  %6620 = vmatpush1.xpose.msra.mxu0 %v6576
  %6621 = vmatprep.subr.mxu0 0.0
  %6622 = vmatpush1.xpose.msra.mxu0 %v6573
  %6623 = vmatprep.subr.mxu0 0.0
  %6624 = vmatpush1.xpose.msra.mxu0 %v6570
  %6625 = vmatprep.subr.mxu0 0.0
  %6626 = vmatpush2.xpose.msra.mxu0 0.0
  %6627 = vmatprep.subr.mxu0 0.0
  %6628 = vmatpush2.xpose.msra.mxu0 0.0
  %6629 = vmatprep.subr.mxu0 0.0
  %6630 = vmatpush2.xpose.msra.mxu0 0.0
  %6631 = vmatprep.subr.mxu0 0.0
  %6632 = vmatpush2.xpose.msra.mxu0 0.0
  %6633 = vmatprep.subr.mxu0 0.0
  %6634 = vmatpush2.xpose.msra.mxu0 0.0
  %6635 = vmatprep.subr.mxu0 0.0
  %6636 = vmatpush2.xpose.msra.mxu0 0.0
  %6637 = vmatprep.subr.mxu0 0.0
  %6638 = vmatpush2.xpose.msra.mxu0 0.0
  %6639 = vmatprep.subr.mxu0 0.0
  %6640 = vmatpush2.xpose.msra.mxu0 0.0
  %6641 = vmatprep.subr.mxu0 0.0
  %6642 = vmatpush2.xpose.msra.mxu0 0.0
  %6643 = vmatprep.subr.mxu0 0.0
  %6644 = vmatpush2.xpose.msra.mxu0 0.0
  %6645 = vmatprep.subr.mxu0 0.0
  %6646 = vmatpush2.xpose.msra.mxu0 0.0
  %6647 = vmatprep.subr.mxu0 0.0
  %6648 = vmatpush2.xpose.msra.mxu0 0.0
  %6649 = vmatprep.subr.mxu0 0.0
  %6650 = vmatpush2.xpose.msra.mxu0 0.0
  %6651 = vmatprep.subr.mxu0 0.0
  %6652 = vmatpush2.xpose.msra.mxu0 0.0
  %6653 = vmatprep.subr.mxu0 0.0
  %6654 = vmatpush2.xpose.msra.mxu0 0.0
  %6655 = vmatprep.subr.mxu0 0.0
  %6656 = vmatpush2.xpose.msra.mxu0 0.0
  %6657 = vmatprep.mubr.f32.mxu0 0.0
  %6658 = vmatmul.mubr.f32.gmra.mxu0 %v6567
  %v6659 = vpop.f32.mrf.mxu0
  %v6660 = vadd.f32 0.0, %v6659
  %v6661 = vpop.f32.mrf.mxu0
  %6662 = vdwg.mxu0
  %v6671 = vcombine.low %v5988, %v6084
  %v6672 = vcombine.low %v6180, %v6276
  %v6673 = vcombine.low %v6372, %v6468
  %v6674 = vcombine.low %v6564, %v6660
  %v6675 = vsel %vm1666, %v6671, 0
  %v6677 = vsel %vm1666, %v6672, 0
  %v6679 = vsel %vm1666, %v6673, 0
  %v6681 = vsel %vm1666, %v6674, 0
  %6683 = vmatprep.subr.mxu0 0.0
  %6684 = vmatpush1.msra.mxu0 0.0
  %6685 = vmatprep.subr.mxu0 0.0
  %6686 = vmatpush1.msra.mxu0 0.0
  %6687 = vmatprep.subr.mxu0 0.0
  %6688 = vmatpush1.msra.mxu0 0.0
  %6689 = vmatprep.subr.mxu0 0.0
  %6690 = vmatpush1.msra.mxu0 0.0
  %6691 = vmatprep.subr.mxu0 0.0
  %6692 = vmatpush1.msra.mxu0 0.0
  %6693 = vmatprep.subr.mxu0 0.0
  %6694 = vmatpush1.msra.mxu0 0.0
  %6695 = vmatprep.subr.mxu0 0.0
  %6696 = vmatpush1.msra.mxu0 0.0
  %6697 = vmatprep.subr.mxu0 0.0
  %6698 = vmatpush1.msra.mxu0 0.0
  %6699 = vmatprep.subr.mxu0 %v76
  %6700 = vmatpush1.msra.mxu0 %v75
  %6701 = vmatprep.subr.mxu0 %v74
  %6702 = vmatpush1.msra.mxu0 %v73
  %6703 = vmatprep.subr.mxu0 %v72
  %6704 = vmatpush1.msra.mxu0 %v71
  %6705 = vmatprep.subr.mxu0 %v70
  %6706 = vmatpush1.msra.mxu0 %v69
  %6707 = vmatprep.subr.mxu0 %v68
  %6708 = vmatpush1.msra.mxu0 %v67
  %6709 = vmatprep.subr.mxu0 %v66
  %6710 = vmatpush1.msra.mxu0 %v65
  %6711 = vmatprep.subr.mxu0 %v64
  %6712 = vmatpush1.msra.mxu0 %v63
  %6713 = vmatprep.subr.mxu0 %v62
  %6714 = vmatpush1.msra.mxu0 %v61
  %6715 = vmatprep.subr.mxu0 0.0
  %6716 = vmatpush2.msra.mxu0 0.0
  %6717 = vmatprep.subr.mxu0 0.0
  %6718 = vmatpush2.msra.mxu0 0.0
  %6719 = vmatprep.subr.mxu0 0.0
  %6720 = vmatpush2.msra.mxu0 0.0
  %6721 = vmatprep.subr.mxu0 0.0
  %6722 = vmatpush2.msra.mxu0 0.0
  %6723 = vmatprep.subr.mxu0 0.0
  %6724 = vmatpush2.msra.mxu0 0.0
  %6725 = vmatprep.subr.mxu0 0.0
  %6726 = vmatpush2.msra.mxu0 0.0
  %6727 = vmatprep.subr.mxu0 0.0
  %6728 = vmatpush2.msra.mxu0 0.0
  %6729 = vmatprep.subr.mxu0 0.0
  %6730 = vmatpush2.msra.mxu0 0.0
  %6731 = vmatprep.subr.mxu0 0.0
  %6732 = vmatpush2.msra.mxu0 0.0
  %6733 = vmatprep.subr.mxu0 0.0
  %6734 = vmatpush2.msra.mxu0 0.0
  %6735 = vmatprep.subr.mxu0 0.0
  %6736 = vmatpush2.msra.mxu0 0.0
  %6737 = vmatprep.subr.mxu0 0.0
  %6738 = vmatpush2.msra.mxu0 0.0
  %6739 = vmatprep.subr.mxu0 0.0
  %6740 = vmatpush2.msra.mxu0 0.0
  %6741 = vmatprep.subr.mxu0 0.0
  %6742 = vmatpush2.msra.mxu0 0.0
  %6743 = vmatprep.subr.mxu0 0.0
  %6744 = vmatpush2.msra.mxu0 0.0
  %6745 = vmatprep.subr.mxu0 0.0
  %6746 = vmatpush2.msra.mxu0 0.0
  %6747 = vmatprep.mubr.f32.mxu0 0.0
  %6748 = vmatmul.mubr.f32.gmra.mxu0 %v6675
  %v6749 = vpop.f32.mrf.mxu0
  %v6750 = vadd.f32 0.0, %v6749
  %v6751 = vpop.f32.mrf.mxu0
  %v6752 = vadd.f32 0.0, %v6751
  %6753 = vmatprep.mubr.f32.mxu0 0.0
  %6754 = vmatmul.mubr.f32.gmra.mxu0 %v6677
  %v6755 = vpop.f32.mrf.mxu0
  %v6756 = vadd.f32 0.0, %v6755
  %v6757 = vpop.f32.mrf.mxu0
  %v6758 = vadd.f32 0.0, %v6757
  %6759 = vmatprep.mubr.f32.mxu0 0.0
  %6760 = vmatmul.mubr.f32.gmra.mxu0 %v6679
  %v6761 = vpop.f32.mrf.mxu0
  %v6762 = vadd.f32 0.0, %v6761
  %v6763 = vpop.f32.mrf.mxu0
  %v6764 = vadd.f32 0.0, %v6763
  %6765 = vmatprep.mubr.f32.mxu0 0.0
  %6766 = vmatmul.mubr.f32.gmra.mxu0 %v6681
  %v6767 = vpop.f32.mrf.mxu0
  %v6768 = vadd.f32 0.0, %v6767
  %v6769 = vpop.f32.mrf.mxu0
  %v6770 = vadd.f32 0.0, %v6769
  %6771 = vdwg.mxu0
  %s6772 = scalar_lea.vmem %s4, 64
  %6773 = vst [vmem:[%s6772] sm:$0xff] %v6750
  %6774 = vst [vmem:[%s6772 + $0x8] sm:$0xff] %v6752
  %6775 = vst [vmem:[%s6772 + $0x10] sm:$0xff] %v6756
  %6776 = vst [vmem:[%s6772 + $0x18] sm:$0xff] %v6758
  %6777 = vst [vmem:[%s6772 + $0x20] sm:$0xff] %v6762
  %6778 = vst [vmem:[%s6772 + $0x28] sm:$0xff] %v6764
  %6779 = vst [vmem:[%s6772 + $0x30] sm:$0xff] %v6768
  %6780 = vst [vmem:[%s6772 + $0x38] sm:$0xff] %v6770
  // Predicated region
  $region18: #{low_mixer_forward.1} parent=0 // pred_check
    _
  $region19: #{low_mixer_forward.1} parent=0 // pred_check_branch
    %6782 = sbr.rel (0) target = $region21
  $region20: #{low_mixer_forward.1} parent=0 // pred_region
    _
  $region21: #{low_mixer_forward.1} parent=0 // pred_fallthru
    _
  // Predicated region
  $region22: #{low_mixer_forward.1} parent=0 // pred_check
    _
  $region23: #{low_mixer_forward.1} parent=0 // pred_check_branch
    %6784 = sbr.rel (0) target = $region25
  $region24: #{low_mixer_forward.1} parent=0 // pred_region
    _
  $region25: #{low_mixer_forward.1} parent=0 // pred_fallthru
    _

</llo_original>
